<compile_context>
chip_gen: v7x
topology: tpu7x:2x2x1
jax: 0.10.0
libtpu: 0.0.40
codegen_flags: <defaults>
</compile_context>

<pallas_src>
MATMUL_DTYPE = None  # set below after imports

import jax
import jax.numpy as jnp
from jax import lax
from jax.experimental import pallas as pl
from jax.experimental.pallas import tpu as pltpu
import numpy as np

MATMUL_DTYPE = jnp.float32  # jnp.bfloat16 for ~3x fewer MXU passes on the serial path

# Normalization constants (defaults of RNNModel.__init__).
# TODO(synk): if learned / data-dependent normalization stats are needed, pass
# them as SMEM scalar inputs instead of module-level Python constants.
MEAN_DYN = 0.0
STD_DYN = 1.0
MEAN_STAT = 0.0
STD_STAT = 1.0


def rnn_model_kernel(inp_ref, s_ref,
                     wih_g_ref, bih_g_ref, whh_g_ref, bhh_g_ref,
                     wa1_ref, ba1_ref, wa2_ref, ba2_ref,
                     wl_ref, bl_ref,
                     wf1a_ref, wf1b_ref, bf1_ref, wf2_ref, bf2_ref,
                     out_ref, h_scr):
    Tc, Bblk, D = inp_ref.shape          # time-chunk length, batch block, 2C+1
    C = (D - 1) // 2
    H = whh_g_ref.shape[1]
    t_idx = pl.program_id(1)

    # ---- h carried across T-chunks in persistent VMEM scratch ----
    @pl.when(t_idx == 0)
    def _():
        h_scr[...] = jnp.zeros_like(h_scr)

    # ---- loop-invariant loads / broadcasts (hoisted; JAX does not CSE broadcasts) ----
    wih_r = wih_g_ref[0].astype(MATMUL_DTYPE)   # (D, H)
    wih_z = wih_g_ref[1].astype(MATMUL_DTYPE)
    wih_n = wih_g_ref[2].astype(MATMUL_DTYPE)
    whh_r = whh_g_ref[0].astype(MATMUL_DTYPE)   # (H, H)
    whh_z = whh_g_ref[1].astype(MATMUL_DTYPE)
    whh_n = whh_g_ref[2].astype(MATMUL_DTYPE)
    bih_r = jnp.broadcast_to(bih_g_ref[0], (Bblk, H))
    bih_z = jnp.broadcast_to(bih_g_ref[1], (Bblk, H))
    bih_n = jnp.broadcast_to(bih_g_ref[2], (Bblk, H))
    bhh_r = jnp.broadcast_to(bhh_g_ref[0], (Bblk, H))
    bhh_z = jnp.broadcast_to(bhh_g_ref[1], (Bblk, H))
    bhh_n = jnp.broadcast_to(bhh_g_ref[2], (Bblk, H))

    def precompute(j):
        # Independent of h: input projection + observation mask for step j.
        x = inp_ref[j]                                           # (Bblk, D) = [Xn | M | tc]
        obs = (jnp.max(x[:, C:2 * C], axis=-1, keepdims=True) > 0.5).astype(jnp.float32)
        xm = x.astype(MATMUL_DTYPE)
        gi_r = jnp.dot(xm, wih_r, preferred_element_type=jnp.float32) + bih_r
        gi_z = jnp.dot(xm, wih_z, preferred_element_type=jnp.float32) + bih_z
        gi_n = jnp.dot(xm, wih_n, preferred_element_type=jnp.float32) + bih_n
        return gi_r, gi_z, gi_n, obs

    def step(i, carry):
        h, gi_r, gi_z, gi_n, obs = carry
        # Skewed precompute for step i+1 — no dependence on h, so its MXU pushes
        # hide under the serial h @ Whh latency below (clamped on the last step).
        nxt = precompute(jnp.minimum(i + 1, Tc - 1))
        # Serial GRU-dt update for step i (evolve == identity).
        hm = h.astype(MATMUL_DTYPE)
        gh_r = jnp.dot(hm, whh_r, preferred_element_type=jnp.float32) + bhh_r
        gh_z = jnp.dot(hm, whh_z, preferred_element_type=jnp.float32) + bhh_z
        gh_n = jnp.dot(hm, whh_n, preferred_element_type=jnp.float32) + bhh_n
        r = jax.nn.sigmoid(gi_r + gh_r)
        z = jax.nn.sigmoid(gi_z + gh_z)
        n = jnp.tanh(gi_n + r * gh_n)
        new_h = (1.0 - z) * n + z * h
        # torch's `if observation.any()` early-skip is a host-side branch; the
        # unconditional compute + per-row where below is semantically identical.
        h = jnp.where(obs > 0.5, new_h, h)
        return (h, *nxt)

    carry0 = (h_scr[...], *precompute(0))
    unroll = min(8, Tc)                      # partial unroll: LLO visibility without spills
    h = lax.fori_loop(0, Tc, step, carry0, unroll=unroll)[0]
    h_scr[...] = h

    # ---- static branch + heads only on the last T-chunk ----
    @pl.when(t_idx == pl.num_programs(1) - 1)
    def _():
        sn = (s_ref[...] - MEAN_STAT) / STD_STAT
        a1 = jnp.maximum(
            jnp.dot(sn, wa1_ref[...], preferred_element_type=jnp.float32) + ba1_ref[...], 0.0)
        out_A = jnp.maximum(
            jnp.dot(a1, wa2_ref[...], preferred_element_type=jnp.float32) + ba2_ref[...], 0.0)
        out_B = jnp.dot(h, wl_ref[...], preferred_element_type=jnp.float32) + bl_ref[...]
        # final_mlp on concat([out_A, out_B], dim=1) done as a split matmul
        f1 = jnp.maximum(
            jnp.dot(out_A, wf1a_ref[...], preferred_element_type=jnp.float32)
            + jnp.dot(out_B, wf1b_ref[...], preferred_element_type=jnp.float32)
            + bf1_ref[...], 0.0)
        out_ref[...] = (jnp.dot(f1, wf2_ref[...], preferred_element_type=jnp.float32)
                        + bf2_ref[...])


def rnn_model_forward(params, X, M, t, s, *, t_chunk=64, b_block=None):
    """X, M: (B, T, C); t: (B, T, 1); s: (B, S)  ->  (B, output_dim)."""
    B, T, C = X.shape
    S = s.shape[1]
    D = 2 * C + 1
    H = params['whh'].shape[0]
    O = params['wf2'].shape[1]

    if b_block is None:
        b_block = B
    assert B % b_block == 0, "b_block must divide batch"
    t_chunk = max(1, min(t_chunk, T))

    # ---- one-time off-critical-path input prep (single fused XLA pass) ----
    # tc = t - t[0, :]  — literal PyTorch semantics: subtract batch-0's timestamps.
    # TODO(synk): verify against the source data pipeline whether the intent was
    # per-sequence elapsed time (t[b,i]-t[b,0]) instead; the code here matches the
    # module as written.
    tc = t - t[0:1]
    Xn = (X - MEAN_DYN) / STD_DYN
    inp = jnp.concatenate([Xn, M, tc], axis=-1)            # (B, T, D) = [Xn | M | tc]
    inp = jnp.transpose(inp, (1, 0, 2))                    # time-major (T, B, D)
    n_chunks = -(-T // t_chunk)
    T_pad = n_chunks * t_chunk
    if T_pad != T:
        # zero padding => M part is 0 => no observation => h unchanged (no-op steps)
        inp = jnp.pad(inp, ((0, T_pad - T), (0, 0), (0, 0)))

    # ---- gate-major weight layout: (3, in, H) so per-gate extraction is a leading-axis index ----
    def split3(w):
        return jnp.transpose(w.reshape(w.shape[0], 3, H), (1, 0, 2))
    wih_g, whh_g = split3(params['wih']), split3(params['whh'])
    bih_g, bhh_g = split3(params['bih']), split3(params['bhh'])
    wf1a, wf1b = params['wf1'][:H], params['wf1'][H:]

    weights = (wih_g, bih_g, whh_g, bhh_g,
               params['wa1'], params['ba1'], params['wa2'], params['ba2'],
               params['wl'], params['bl'],
               wf1a, wf1b, params['bf1'], params['wf2'], params['bf2'])

    def full_spec(a):
        zero = (0,) * a.ndim
        return pl.BlockSpec(a.shape, lambda b, tt: zero)   # resident, never re-fetched

    grid = (B // b_block, T_pad // t_chunk)
    in_specs = ([pl.BlockSpec((t_chunk, b_block, D), lambda b, tt: (tt, b, 0)),
                 pl.BlockSpec((b_block, S), lambda b, tt: (b, 0))]
                + [full_spec(w) for w in weights])
    out_specs = pl.BlockSpec((b_block, O), lambda b, tt: (b, 0))

    return pl.pallas_call(
        rnn_model_kernel,
        out_shape=jax.ShapeDtypeStruct((B, O), jnp.float32),
        grid=grid,
        in_specs=in_specs,
        out_specs=out_specs,
        scratch_shapes=[pltpu.VMEM((b_block, H), jnp.float32)],   # h carried across T-chunks
        compiler_params=pltpu.CompilerParams(
            dimension_semantics=("parallel", "arbitrary"),        # batch across cores; T serial
            vmem_limit_bytes=64 * 1024 * 1024),                   # explicit, <= v7x physical
    )(inp, s, *weights)


# ---------------- pure-JAX reference (mirrors the PyTorch code) ----------------
def reference_forward(params, X, M, t, s):
    Xn = (X - MEAN_DYN) / STD_DYN
    sn = (s - MEAN_STAT) / STD_STAT
    a1 = jax.nn.relu(sn @ params['wa1'] + params['ba1'])
    out_A = jax.nn.relu(a1 @ params['wa2'] + params['ba2'])

    tc = t - t[0:1, :, :]                    # torch: tc -= t[0, :]
    B, T, C = X.shape
    H = params['whh'].shape[0]
    h = jnp.zeros((B, H), jnp.float32)
    for i in range(T):                       # GRU-dt: evolve is identity
        Xi, Mi, ti = Xn[:, i, :], M[:, i, :], tc[:, i, :]
        inp = jnp.concatenate([Xi, Mi, ti], axis=-1)
        gi = inp @ params['wih'] + params['bih']
        gh = h @ params['whh'] + params['bhh']
        r = jax.nn.sigmoid(gi[:, :H] + gh[:, :H])
        z = jax.nn.sigmoid(gi[:, H:2 * H] + gh[:, H:2 * H])
        n = jnp.tanh(gi[:, 2 * H:] + r * gh[:, 2 * H:])
        new_h = (1.0 - z) * n + z * h
        obs = jnp.max(Mi, axis=1, keepdims=True) > 0.5
        h = jnp.where(obs, new_h, h)
    out_B = h @ params['wl'] + params['bl']
    cat = jnp.concatenate([out_A, out_B], axis=-1)
    f1 = jax.nn.relu(cat @ params['wf1'] + params['bf1'])
    return f1 @ params['wf2'] + params['bf2']


# ---------------- deterministic parameter init (torch-style uniform) ----------------
def init_params(key, s_dim, feat_dim, hidden_dim, output_dim):
    ks = jax.random.split(key, 9)

    def lin(k, fan_in, fan_out):
        kw, kb = jax.random.split(k)
        bound = 1.0 / float(np.sqrt(fan_in))
        w = jax.random.uniform(kw, (fan_in, fan_out), jnp.float32, -bound, bound)
        b = jax.random.uniform(kb, (1, fan_out), jnp.float32, -bound, bound)
        return w, b

    gru_in = feat_dim * 2 + 1
    wa1, ba1 = lin(ks[0], s_dim, hidden_dim)
    wa2, ba2 = lin(ks[1], hidden_dim, hidden_dim)
    bound = 1.0 / float(np.sqrt(hidden_dim))
    wih = jax.random.uniform(ks[2], (gru_in, 3 * hidden_dim), jnp.float32, -bound, bound)
    whh = jax.random.uniform(ks[3], (hidden_dim, 3 * hidden_dim), jnp.float32, -bound, bound)
    bih = jax.random.uniform(ks[4], (1, 3 * hidden_dim), jnp.float32, -bound, bound)
    bhh = jax.random.uniform(ks[5], (1, 3 * hidden_dim), jnp.float32, -bound, bound)
    wl, bl = lin(ks[6], hidden_dim, hidden_dim)          # rnn.linear (output = hidden_dim)
    wf1, bf1 = lin(ks[7], 2 * hidden_dim, hidden_dim)
    wf2, bf2 = lin(ks[8], hidden_dim, output_dim)
    return dict(wa1=wa1, ba1=ba1, wa2=wa2, ba2=ba2, wih=wih, bih=bih,
                whh=whh, bhh=bhh, wl=wl, bl=bl, wf1=wf1, bf1=bf1, wf2=wf2, bf2=bf2)


if __name__ == "__main__":
    # TODO(synk): only the GRU-dt / GRU configuration is implemented; GRU-D decay,
    # LSTM/RNN cells and ODERNN (torchdiffeq odeint) variants are not covered.
    # Shapes chosen small but so that the grid genuinely exercises 2 batch blocks,
    # 3 T-chunks and T-padding (T=10 padded to 12 with t_chunk=4).
    B, T, C, S, H, O = 16, 10, 4, 5, 32, 3
    key = jax.random.PRNGKey(0)
    kp, kx, km, kt, kss = jax.random.split(key, 5)

    params = init_params(kp, s_dim=S, feat_dim=C, hidden_dim=H, output_dim=O)
    X = jax.random.normal(kx, (B, T, C), jnp.float32)
    M = (jax.random.uniform(km, (B, T, C)) > 0.3).astype(jnp.float32)
    t = jnp.cumsum(jax.random.uniform(kt, (B, T, 1), jnp.float32, 0.1, 1.0), axis=1)
    s = jax.random.normal(kss, (B, S), jnp.float32)

    out = rnn_model_forward(params, X, M, t, s, t_chunk=4, b_block=8)
    out = jax.block_until_ready(out)
    assert out.shape == (B, O)

    ref = reference_forward(params, X, M, t, s)
    np.testing.assert_allclose(np.asarray(out), np.asarray(ref), rtol=1e-4, atol=1e-4)
    print("KERNEL_OK")
</pallas_src>

<mosaic_0001>
module attributes {stable_mosaic.version = 11 : i64} {
  func.func @rnn_model_kernel(%arg0: i32, %arg1: i32, %arg2: memref<4x8x9xf32, #tpu.memory_space<vmem>>, %arg3: memref<8x5xf32, #tpu.memory_space<vmem>>, %arg4: memref<3x9x32xf32, #tpu.memory_space<vmem>>, %arg5: memref<3x1x32xf32, #tpu.memory_space<vmem>>, %arg6: memref<3x32x32xf32, #tpu.memory_space<vmem>>, %arg7: memref<3x1x32xf32, #tpu.memory_space<vmem>>, %arg8: memref<5x32xf32, #tpu.memory_space<vmem>>, %arg9: memref<1x32xf32, #tpu.memory_space<vmem>>, %arg10: memref<32x32xf32, #tpu.memory_space<vmem>>, %arg11: memref<1x32xf32, #tpu.memory_space<vmem>>, %arg12: memref<32x32xf32, #tpu.memory_space<vmem>>, %arg13: memref<1x32xf32, #tpu.memory_space<vmem>>, %arg14: memref<32x32xf32, #tpu.memory_space<vmem>>, %arg15: memref<32x32xf32, #tpu.memory_space<vmem>>, %arg16: memref<1x32xf32, #tpu.memory_space<vmem>>, %arg17: memref<32x3xf32, #tpu.memory_space<vmem>>, %arg18: memref<1x3xf32, #tpu.memory_space<vmem>>, %arg19: memref<8x3xf32, #tpu.memory_space<vmem>>, %arg20: memref<8x32xf32, #tpu.memory_space<vmem>>) attributes {dimension_semantics = [#tpu.dimension_semantics<parallel>, #tpu.dimension_semantics<arbitrary>], iteration_bounds = array<i64: 2, 3>, scalar_prefetch = 0 : i64, scratch_operands = 1 : i64, tpu.core_type = #tpu.core_type<tc>, window_params = [{transform_indices = @transform_0, window_bounds = array<i64: 4, 8, 9>}, {transform_indices = @transform_1, window_bounds = array<i64: 8, 5>}, {pipeline_mode = #tpu.pipeline_mode<synchronous>, transform_indices = @transform_2, window_bounds = array<i64: 3, 9, 32>}, {pipeline_mode = #tpu.pipeline_mode<synchronous>, transform_indices = @transform_3, window_bounds = array<i64: 3, 1, 32>}, {pipeline_mode = #tpu.pipeline_mode<synchronous>, transform_indices = @transform_4, window_bounds = array<i64: 3, 32, 32>}, {pipeline_mode = #tpu.pipeline_mode<synchronous>, transform_indices = @transform_5, window_bounds = array<i64: 3, 1, 32>}, {pipeline_mode = #tpu.pipeline_mode<synchronous>, transform_indices = @transform_6, window_bounds = array<i64: 5, 32>}, {pipeline_mode = #tpu.pipeline_mode<synchronous>, transform_indices = @transform_7, window_bounds = array<i64: 1, 32>}, {pipeline_mode = #tpu.pipeline_mode<synchronous>, transform_indices = @transform_8, window_bounds = array<i64: 32, 32>}, {pipeline_mode = #tpu.pipeline_mode<synchronous>, transform_indices = @transform_9, window_bounds = array<i64: 1, 32>}, {pipeline_mode = #tpu.pipeline_mode<synchronous>, transform_indices = @transform_10, window_bounds = array<i64: 32, 32>}, {pipeline_mode = #tpu.pipeline_mode<synchronous>, transform_indices = @transform_11, window_bounds = array<i64: 1, 32>}, {pipeline_mode = #tpu.pipeline_mode<synchronous>, transform_indices = @transform_12, window_bounds = array<i64: 32, 32>}, {pipeline_mode = #tpu.pipeline_mode<synchronous>, transform_indices = @transform_13, window_bounds = array<i64: 32, 32>}, {pipeline_mode = #tpu.pipeline_mode<synchronous>, transform_indices = @transform_14, window_bounds = array<i64: 1, 32>}, {pipeline_mode = #tpu.pipeline_mode<synchronous>, transform_indices = @transform_15, window_bounds = array<i64: 32, 3>}, {pipeline_mode = #tpu.pipeline_mode<synchronous>, transform_indices = @transform_16, window_bounds = array<i64: 1, 3>}, {transform_indices = @transform_17, window_bounds = array<i64: 8, 3>}]} {
    %c0_i32 = arith.constant 0 : i32
    %0 = arith.cmpi eq, %arg1, %c0_i32 : i32
    %1 = arith.extui %0 : i1 to i32
    %c0_i32_0 = arith.constant 0 : i32
    %2 = arith.cmpi ne, %1, %c0_i32_0 : i32
    scf.if %2 {
      %cst_112 = arith.constant 0.000000e+00 : f32
      %255 = vector.broadcast %cst_112 : f32 to vector<8x32xf32>
      %c0_113 = arith.constant 0 : index
      %c0_114 = arith.constant 0 : index
      %256 = vector.load %arg20[%c0_113, %c0_114] : memref<8x32xf32, #tpu.memory_space<vmem>>, vector<8x32xf32>
      tpu.vector_store %arg20[%c0_113, %c0_114], %255 {strides = array<i32>} : memref<8x32xf32, #tpu.memory_space<vmem>>, vector<8x32xf32>,
    } else {
    }
    %c0 = arith.constant 0 : index
    %c0_1 = arith.constant 0 : index
    %c0_2 = arith.constant 0 : index
    %3 = vector.load %arg4[%c0, %c0_1, %c0_2] : memref<3x9x32xf32, #tpu.memory_space<vmem>>, vector<1x9x32xf32>
    %4 = vector.shape_cast %3 : vector<1x9x32xf32> to vector<9x32xf32>
    %c1 = arith.constant 1 : index
    %c0_3 = arith.constant 0 : index
    %c0_4 = arith.constant 0 : index
    %5 = vector.load %arg4[%c1, %c0_3, %c0_4] : memref<3x9x32xf32, #tpu.memory_space<vmem>>, vector<1x9x32xf32>
    %6 = vector.shape_cast %5 : vector<1x9x32xf32> to vector<9x32xf32>
    %c2 = arith.constant 2 : index
    %c0_5 = arith.constant 0 : index
    %c0_6 = arith.constant 0 : index
    %7 = vector.load %arg4[%c2, %c0_5, %c0_6] : memref<3x9x32xf32, #tpu.memory_space<vmem>>, vector<1x9x32xf32>
    %8 = vector.shape_cast %7 : vector<1x9x32xf32> to vector<9x32xf32>
    %c0_7 = arith.constant 0 : index
    %c0_8 = arith.constant 0 : index
    %c0_9 = arith.constant 0 : index
    %9 = vector.load %arg6[%c0_7, %c0_8, %c0_9] : memref<3x32x32xf32, #tpu.memory_space<vmem>>, vector<1x32x32xf32>
    %10 = vector.shape_cast %9 : vector<1x32x32xf32> to vector<32x32xf32>
    %c1_10 = arith.constant 1 : index
    %c0_11 = arith.constant 0 : index
    %c0_12 = arith.constant 0 : index
    %11 = vector.load %arg6[%c1_10, %c0_11, %c0_12] : memref<3x32x32xf32, #tpu.memory_space<vmem>>, vector<1x32x32xf32>
    %12 = vector.shape_cast %11 : vector<1x32x32xf32> to vector<32x32xf32>
    %c2_13 = arith.constant 2 : index
    %c0_14 = arith.constant 0 : index
    %c0_15 = arith.constant 0 : index
    %13 = vector.load %arg6[%c2_13, %c0_14, %c0_15] : memref<3x32x32xf32, #tpu.memory_space<vmem>>, vector<1x32x32xf32>
    %14 = vector.shape_cast %13 : vector<1x32x32xf32> to vector<32x32xf32>
    %c0_16 = arith.constant 0 : index
    %c0_17 = arith.constant 0 : index
    %c0_18 = arith.constant 0 : index
    %15 = vector.load %arg5[%c0_16, %c0_17, %c0_18] : memref<3x1x32xf32, #tpu.memory_space<vmem>>, vector<1x1x32xf32>
    %16 = vector.shape_cast %15 : vector<1x1x32xf32> to vector<1x32xf32>
    %17 = vector.shape_cast %16 : vector<1x32xf32> to vector<1x32xf32>
    %18 = vector.broadcast %17 : vector<1x32xf32> to vector<8x32xf32>
    %c1_19 = arith.constant 1 : index
    %c0_20 = arith.constant 0 : index
    %c0_21 = arith.constant 0 : index
    %19 = vector.load %arg5[%c1_19, %c0_20, %c0_21] : memref<3x1x32xf32, #tpu.memory_space<vmem>>, vector<1x1x32xf32>
    %20 = vector.shape_cast %19 : vector<1x1x32xf32> to vector<1x32xf32>
    %21 = vector.shape_cast %20 : vector<1x32xf32> to vector<1x32xf32>
    %22 = vector.broadcast %21 : vector<1x32xf32> to vector<8x32xf32>
    %c2_22 = arith.constant 2 : index
    %c0_23 = arith.constant 0 : index
    %c0_24 = arith.constant 0 : index
    %23 = vector.load %arg5[%c2_22, %c0_23, %c0_24] : memref<3x1x32xf32, #tpu.memory_space<vmem>>, vector<1x1x32xf32>
    %24 = vector.shape_cast %23 : vector<1x1x32xf32> to vector<1x32xf32>
    %25 = vector.shape_cast %24 : vector<1x32xf32> to vector<1x32xf32>
    %26 = vector.broadcast %25 : vector<1x32xf32> to vector<8x32xf32>
    %c0_25 = arith.constant 0 : index
    %c0_26 = arith.constant 0 : index
    %c0_27 = arith.constant 0 : index
    %27 = vector.load %arg7[%c0_25, %c0_26, %c0_27] : memref<3x1x32xf32, #tpu.memory_space<vmem>>, vector<1x1x32xf32>
    %28 = vector.shape_cast %27 : vector<1x1x32xf32> to vector<1x32xf32>
    %29 = vector.shape_cast %28 : vector<1x32xf32> to vector<1x32xf32>
    %30 = vector.broadcast %29 : vector<1x32xf32> to vector<8x32xf32>
    %c1_28 = arith.constant 1 : index
    %c0_29 = arith.constant 0 : index
    %c0_30 = arith.constant 0 : index
    %31 = vector.load %arg7[%c1_28, %c0_29, %c0_30] : memref<3x1x32xf32, #tpu.memory_space<vmem>>, vector<1x1x32xf32>
    %32 = vector.shape_cast %31 : vector<1x1x32xf32> to vector<1x32xf32>
    %33 = vector.shape_cast %32 : vector<1x32xf32> to vector<1x32xf32>
    %34 = vector.broadcast %33 : vector<1x32xf32> to vector<8x32xf32>
    %c2_31 = arith.constant 2 : index
    %c0_32 = arith.constant 0 : index
    %c0_33 = arith.constant 0 : index
    %35 = vector.load %arg7[%c2_31, %c0_32, %c0_33] : memref<3x1x32xf32, #tpu.memory_space<vmem>>, vector<1x1x32xf32>
    %36 = vector.shape_cast %35 : vector<1x1x32xf32> to vector<1x32xf32>
    %37 = vector.shape_cast %36 : vector<1x32xf32> to vector<1x32xf32>
    %38 = vector.broadcast %37 : vector<1x32xf32> to vector<8x32xf32>
    %c0_34 = arith.constant 0 : index
    %c0_35 = arith.constant 0 : index
    %39 = vector.load %arg20[%c0_34, %c0_35] : memref<8x32xf32, #tpu.memory_space<vmem>>, vector<8x32xf32>
    %c0_36 = arith.constant 0 : index
    %c0_37 = arith.constant 0 : index
    %c0_38 = arith.constant 0 : index
    %40 = vector.load %arg2[%c0_36, %c0_37, %c0_38] : memref<4x8x9xf32, #tpu.memory_space<vmem>>, vector<1x8x9xf32>
    %41 = vector.shape_cast %40 : vector<1x8x9xf32> to vector<8x9xf32>
    %42 = vector.extract_strided_slice %41 {offsets = [0, 4], sizes = [8, 4], strides = [1, 1]} : vector<8x9xf32> to vector<8x4xf32>
    %cst = arith.constant dense<0xFF800000> : vector<8xf32>
    %43 = vector.multi_reduction <maximumf>, %42, %cst [1] : vector<8x4xf32> to vector<8xf32>
    %44 = vector.shape_cast %43 : vector<8xf32> to vector<8x1xf32>
    %cst_39 = arith.constant 5.000000e-01 : f32
    %45 = vector.broadcast %cst_39 : f32 to vector<8x1xf32>
    %46 = arith.cmpf ogt, %44, %45 : vector<8x1xf32>
    %47 = arith.extui %46 : vector<8x1xi1> to vector<8x1xi32>
    %48 = arith.sitofp %47 : vector<8x1xi32> to vector<8x1xf32>
    %cst_40 = arith.constant dense<0.000000e+00> : vector<8x32xf32>
    %49 = tpu.matmul %41, %4, %cst_40 {dimension_numbers = #tpu.dot_dimension_numbers<[1], [0], [0], [1], [0, 0, 1, 1], [], []>} : vector<8x9xf32>, vector<9x32xf32>, vector<8x32xf32> -> vector<8x32xf32>
    %50 = arith.addf %49, %18 : vector<8x32xf32>
    %cst_41 = arith.constant dense<0.000000e+00> : vector<8x32xf32>
    %51 = tpu.matmul %41, %6, %cst_41 {dimension_numbers = #tpu.dot_dimension_numbers<[1], [0], [0], [1], [0, 0, 1, 1], [], []>} : vector<8x9xf32>, vector<9x32xf32>, vector<8x32xf32> -> vector<8x32xf32>
    %52 = arith.addf %51, %22 : vector<8x32xf32>
    %cst_42 = arith.constant dense<0.000000e+00> : vector<8x32xf32>
    %53 = tpu.matmul %41, %8, %cst_42 {dimension_numbers = #tpu.dot_dimension_numbers<[1], [0], [0], [1], [0, 0, 1, 1], [], []>} : vector<8x9xf32>, vector<9x32xf32>, vector<8x32xf32> -> vector<8x32xf32>
    %54 = arith.addf %53, %26 : vector<8x32xf32>
    %c0_i32_43 = arith.constant 0 : i32
    %c1_i32 = arith.constant 1 : i32
    %55 = arith.addi %c0_i32_43, %c1_i32 : i32
    %c3_i32 = arith.constant 3 : i32
    %56 = arith.minsi %55, %c3_i32 : i32
    %57 = arith.index_cast %56 : i32 to index
    %c0_44 = arith.constant 0 : index
    %c0_45 = arith.constant 0 : index
    %58 = vector.load %arg2[%57, %c0_44, %c0_45] : memref<4x8x9xf32, #tpu.memory_space<vmem>>, vector<1x8x9xf32>
    %59 = vector.shape_cast %58 : vector<1x8x9xf32> to vector<8x9xf32>
    %60 = vector.extract_strided_slice %59 {offsets = [0, 4], sizes = [8, 4], strides = [1, 1]} : vector<8x9xf32> to vector<8x4xf32>
    %cst_46 = arith.constant dense<0xFF800000> : vector<8xf32>
    %61 = vector.multi_reduction <maximumf>, %60, %cst_46 [1] : vector<8x4xf32> to vector<8xf32>
    %62 = vector.shape_cast %61 : vector<8xf32> to vector<8x1xf32>
    %cst_47 = arith.constant 5.000000e-01 : f32
    %63 = vector.broadcast %cst_47 : f32 to vector<8x1xf32>
    %64 = arith.cmpf ogt, %62, %63 : vector<8x1xf32>
    %65 = arith.extui %64 : vector<8x1xi1> to vector<8x1xi32>
    %66 = arith.sitofp %65 : vector<8x1xi32> to vector<8x1xf32>
    %cst_48 = arith.constant dense<0.000000e+00> : vector<8x32xf32>
    %67 = tpu.matmul %59, %4, %cst_48 {dimension_numbers = #tpu.dot_dimension_numbers<[1], [0], [0], [1], [0, 0, 1, 1], [], []>} : vector<8x9xf32>, vector<9x32xf32>, vector<8x32xf32> -> vector<8x32xf32>
    %68 = arith.addf %67, %18 : vector<8x32xf32>
    %cst_49 = arith.constant dense<0.000000e+00> : vector<8x32xf32>
    %69 = tpu.matmul %59, %6, %cst_49 {dimension_numbers = #tpu.dot_dimension_numbers<[1], [0], [0], [1], [0, 0, 1, 1], [], []>} : vector<8x9xf32>, vector<9x32xf32>, vector<8x32xf32> -> vector<8x32xf32>
    %70 = arith.addf %69, %22 : vector<8x32xf32>
    %cst_50 = arith.constant dense<0.000000e+00> : vector<8x32xf32>
    %71 = tpu.matmul %59, %8, %cst_50 {dimension_numbers = #tpu.dot_dimension_numbers<[1], [0], [0], [1], [0, 0, 1, 1], [], []>} : vector<8x9xf32>, vector<9x32xf32>, vector<8x32xf32> -> vector<8x32xf32>
    %72 = arith.addf %71, %26 : vector<8x32xf32>
    %cst_51 = arith.constant dense<0.000000e+00> : vector<8x32xf32>
    %73 = tpu.matmul %39, %10, %cst_51 {dimension_numbers = #tpu.dot_dimension_numbers<[1], [0], [0], [1], [0, 0, 1, 1], [], []>} : vector<8x32xf32>, vector<32x32xf32>, vector<8x32xf32> -> vector<8x32xf32>
    %74 = arith.addf %73, %30 : vector<8x32xf32>
    %cst_52 = arith.constant dense<0.000000e+00> : vector<8x32xf32>
    %75 = tpu.matmul %39, %12, %cst_52 {dimension_numbers = #tpu.dot_dimension_numbers<[1], [0], [0], [1], [0, 0, 1, 1], [], []>} : vector<8x32xf32>, vector<32x32xf32>, vector<8x32xf32> -> vector<8x32xf32>
    %76 = arith.addf %75, %34 : vector<8x32xf32>
    %cst_53 = arith.constant dense<0.000000e+00> : vector<8x32xf32>
    %77 = tpu.matmul %39, %14, %cst_53 {dimension_numbers = #tpu.dot_dimension_numbers<[1], [0], [0], [1], [0, 0, 1, 1], [], []>} : vector<8x32xf32>, vector<32x32xf32>, vector<8x32xf32> -> vector<8x32xf32>
    %78 = arith.addf %77, %38 : vector<8x32xf32>
    %79 = arith.addf %50, %74 : vector<8x32xf32>
    %80 = arith.negf %79 : vector<8x32xf32>
    %81 = math.exp %80 : vector<8x32xf32>
    %cst_54 = arith.constant 1.000000e+00 : f32
    %82 = vector.broadcast %cst_54 : f32 to vector<8x32xf32>
    %83 = arith.addf %82, %81 : vector<8x32xf32>
    %84 = arith.divf %82, %83 : vector<8x32xf32>
    %85 = arith.addf %52, %76 : vector<8x32xf32>
    %86 = arith.negf %85 : vector<8x32xf32>
    %87 = math.exp %86 : vector<8x32xf32>
    %cst_55 = arith.constant 1.000000e+00 : f32
    %88 = vector.broadcast %cst_55 : f32 to vector<8x32xf32>
    %89 = arith.addf %88, %87 : vector<8x32xf32>
    %90 = arith.divf %88, %89 : vector<8x32xf32>
    %91 = arith.mulf %84, %78 : vector<8x32xf32>
    %92 = arith.addf %54, %91 : vector<8x32xf32>
    %93 = math.tanh %92 : vector<8x32xf32>
    %cst_56 = arith.constant 1.000000e+00 : f32
    %94 = vector.broadcast %cst_56 : f32 to vector<8x32xf32>
    %95 = arith.subf %94, %90 : vector<8x32xf32>
    %96 = arith.mulf %95, %93 : vector<8x32xf32>
    %97 = arith.mulf %90, %39 : vector<8x32xf32>
    %98 = arith.addf %96, %97 : vector<8x32xf32>
    %cst_57 = arith.constant 5.000000e-01 : f32
    %99 = vector.broadcast %cst_57 : f32 to vector<8x1xf32>
    %100 = arith.cmpf ogt, %48, %99 : vector<8x1xf32>
    %101 = vector.shape_cast %100 : vector<8x1xi1> to vector<8x1xi1>
    %102 = vector.broadcast %101 : vector<8x1xi1> to vector<8x32xi1>
    %103 = arith.select %102, %98, %39 : vector<8x32xi1>, vector<8x32xf32>
    %c1_i32_58 = arith.constant 1 : i32
    %c1_i32_59 = arith.constant 1 : i32
    %104 = arith.addi %c1_i32_58, %c1_i32_59 : i32
    %c3_i32_60 = arith.constant 3 : i32
    %105 = arith.minsi %104, %c3_i32_60 : i32
    %106 = arith.index_cast %105 : i32 to index
    %c0_61 = arith.constant 0 : index
    %c0_62 = arith.constant 0 : index
    %107 = vector.load %arg2[%106, %c0_61, %c0_62] : memref<4x8x9xf32, #tpu.memory_space<vmem>>, vector<1x8x9xf32>
    %108 = vector.shape_cast %107 : vector<1x8x9xf32> to vector<8x9xf32>
    %109 = vector.extract_strided_slice %108 {offsets = [0, 4], sizes = [8, 4], strides = [1, 1]} : vector<8x9xf32> to vector<8x4xf32>
    %cst_63 = arith.constant dense<0xFF800000> : vector<8xf32>
    %110 = vector.multi_reduction <maximumf>, %109, %cst_63 [1] : vector<8x4xf32> to vector<8xf32>
    %111 = vector.shape_cast %110 : vector<8xf32> to vector<8x1xf32>
    %cst_64 = arith.constant 5.000000e-01 : f32
    %112 = vector.broadcast %cst_64 : f32 to vector<8x1xf32>
    %113 = arith.cmpf ogt, %111, %112 : vector<8x1xf32>
    %114 = arith.extui %113 : vector<8x1xi1> to vector<8x1xi32>
    %115 = arith.sitofp %114 : vector<8x1xi32> to vector<8x1xf32>
    %cst_65 = arith.constant dense<0.000000e+00> : vector<8x32xf32>
    %116 = tpu.matmul %108, %4, %cst_65 {dimension_numbers = #tpu.dot_dimension_numbers<[1], [0], [0], [1], [0, 0, 1, 1], [], []>} : vector<8x9xf32>, vector<9x32xf32>, vector<8x32xf32> -> vector<8x32xf32>
    %117 = arith.addf %116, %18 : vector<8x32xf32>
    %cst_66 = arith.constant dense<0.000000e+00> : vector<8x32xf32>
    %118 = tpu.matmul %108, %6, %cst_66 {dimension_numbers = #tpu.dot_dimension_numbers<[1], [0], [0], [1], [0, 0, 1, 1], [], []>} : vector<8x9xf32>, vector<9x32xf32>, vector<8x32xf32> -> vector<8x32xf32>
    %119 = arith.addf %118, %22 : vector<8x32xf32>
    %cst_67 = arith.constant dense<0.000000e+00> : vector<8x32xf32>
    %120 = tpu.matmul %108, %8, %cst_67 {dimension_numbers = #tpu.dot_dimension_numbers<[1], [0], [0], [1], [0, 0, 1, 1], [], []>} : vector<8x9xf32>, vector<9x32xf32>, vector<8x32xf32> -> vector<8x32xf32>
    %121 = arith.addf %120, %26 : vector<8x32xf32>
    %cst_68 = arith.constant dense<0.000000e+00> : vector<8x32xf32>
    %122 = tpu.matmul %103, %10, %cst_68 {dimension_numbers = #tpu.dot_dimension_numbers<[1], [0], [0], [1], [0, 0, 1, 1], [], []>} : vector<8x32xf32>, vector<32x32xf32>, vector<8x32xf32> -> vector<8x32xf32>
    %123 = arith.addf %122, %30 : vector<8x32xf32>
    %cst_69 = arith.constant dense<0.000000e+00> : vector<8x32xf32>
    %124 = tpu.matmul %103, %12, %cst_69 {dimension_numbers = #tpu.dot_dimension_numbers<[1], [0], [0], [1], [0, 0, 1, 1], [], []>} : vector<8x32xf32>, vector<32x32xf32>, vector<8x32xf32> -> vector<8x32xf32>
    %125 = arith.addf %124, %34 : vector<8x32xf32>
    %cst_70 = arith.constant dense<0.000000e+00> : vector<8x32xf32>
    %126 = tpu.matmul %103, %14, %cst_70 {dimension_numbers = #tpu.dot_dimension_numbers<[1], [0], [0], [1], [0, 0, 1, 1], [], []>} : vector<8x32xf32>, vector<32x32xf32>, vector<8x32xf32> -> vector<8x32xf32>
    %127 = arith.addf %126, %38 : vector<8x32xf32>
    %128 = arith.addf %68, %123 : vector<8x32xf32>
    %129 = arith.negf %128 : vector<8x32xf32>
    %130 = math.exp %129 : vector<8x32xf32>
    %cst_71 = arith.constant 1.000000e+00 : f32
    %131 = vector.broadcast %cst_71 : f32 to vector<8x32xf32>
    %132 = arith.addf %131, %130 : vector<8x32xf32>
    %133 = arith.divf %131, %132 : vector<8x32xf32>
    %134 = arith.addf %70, %125 : vector<8x32xf32>
    %135 = arith.negf %134 : vector<8x32xf32>
    %136 = math.exp %135 : vector<8x32xf32>
    %cst_72 = arith.constant 1.000000e+00 : f32
    %137 = vector.broadcast %cst_72 : f32 to vector<8x32xf32>
    %138 = arith.addf %137, %136 : vector<8x32xf32>
    %139 = arith.divf %137, %138 : vector<8x32xf32>
    %140 = arith.mulf %133, %127 : vector<8x32xf32>
    %141 = arith.addf %72, %140 : vector<8x32xf32>
    %142 = math.tanh %141 : vector<8x32xf32>
    %cst_73 = arith.constant 1.000000e+00 : f32
    %143 = vector.broadcast %cst_73 : f32 to vector<8x32xf32>
    %144 = arith.subf %143, %139 : vector<8x32xf32>
    %145 = arith.mulf %144, %142 : vector<8x32xf32>
    %146 = arith.mulf %139, %103 : vector<8x32xf32>
    %147 = arith.addf %145, %146 : vector<8x32xf32>
    %cst_74 = arith.constant 5.000000e-01 : f32
    %148 = vector.broadcast %cst_74 : f32 to vector<8x1xf32>
    %149 = arith.cmpf ogt, %66, %148 : vector<8x1xf32>
    %150 = vector.shape_cast %149 : vector<8x1xi1> to vector<8x1xi1>
    %151 = vector.broadcast %150 : vector<8x1xi1> to vector<8x32xi1>
    %152 = arith.select %151, %147, %103 : vector<8x32xi1>, vector<8x32xf32>
    %c2_i32 = arith.constant 2 : i32
    %c1_i32_75 = arith.constant 1 : i32
    %153 = arith.addi %c2_i32, %c1_i32_75 : i32
    %c3_i32_76 = arith.constant 3 : i32
    %154 = arith.minsi %153, %c3_i32_76 : i32
    %155 = arith.index_cast %154 : i32 to index
    %c0_77 = arith.constant 0 : index
    %c0_78 = arith.constant 0 : index
    %156 = vector.load %arg2[%155, %c0_77, %c0_78] : memref<4x8x9xf32, #tpu.memory_space<vmem>>, vector<1x8x9xf32>
    %157 = vector.shape_cast %156 : vector<1x8x9xf32> to vector<8x9xf32>
    %158 = vector.extract_strided_slice %157 {offsets = [0, 4], sizes = [8, 4], strides = [1, 1]} : vector<8x9xf32> to vector<8x4xf32>
    %cst_79 = arith.constant dense<0xFF800000> : vector<8xf32>
    %159 = vector.multi_reduction <maximumf>, %158, %cst_79 [1] : vector<8x4xf32> to vector<8xf32>
    %160 = vector.shape_cast %159 : vector<8xf32> to vector<8x1xf32>
    %cst_80 = arith.constant 5.000000e-01 : f32
    %161 = vector.broadcast %cst_80 : f32 to vector<8x1xf32>
    %162 = arith.cmpf ogt, %160, %161 : vector<8x1xf32>
    %163 = arith.extui %162 : vector<8x1xi1> to vector<8x1xi32>
    %164 = arith.sitofp %163 : vector<8x1xi32> to vector<8x1xf32>
    %cst_81 = arith.constant dense<0.000000e+00> : vector<8x32xf32>
    %165 = tpu.matmul %157, %4, %cst_81 {dimension_numbers = #tpu.dot_dimension_numbers<[1], [0], [0], [1], [0, 0, 1, 1], [], []>} : vector<8x9xf32>, vector<9x32xf32>, vector<8x32xf32> -> vector<8x32xf32>
    %166 = arith.addf %165, %18 : vector<8x32xf32>
    %cst_82 = arith.constant dense<0.000000e+00> : vector<8x32xf32>
    %167 = tpu.matmul %157, %6, %cst_82 {dimension_numbers = #tpu.dot_dimension_numbers<[1], [0], [0], [1], [0, 0, 1, 1], [], []>} : vector<8x9xf32>, vector<9x32xf32>, vector<8x32xf32> -> vector<8x32xf32>
    %168 = arith.addf %167, %22 : vector<8x32xf32>
    %cst_83 = arith.constant dense<0.000000e+00> : vector<8x32xf32>
    %169 = tpu.matmul %157, %8, %cst_83 {dimension_numbers = #tpu.dot_dimension_numbers<[1], [0], [0], [1], [0, 0, 1, 1], [], []>} : vector<8x9xf32>, vector<9x32xf32>, vector<8x32xf32> -> vector<8x32xf32>
    %170 = arith.addf %169, %26 : vector<8x32xf32>
    %cst_84 = arith.constant dense<0.000000e+00> : vector<8x32xf32>
    %171 = tpu.matmul %152, %10, %cst_84 {dimension_numbers = #tpu.dot_dimension_numbers<[1], [0], [0], [1], [0, 0, 1, 1], [], []>} : vector<8x32xf32>, vector<32x32xf32>, vector<8x32xf32> -> vector<8x32xf32>
    %172 = arith.addf %171, %30 : vector<8x32xf32>
    %cst_85 = arith.constant dense<0.000000e+00> : vector<8x32xf32>
    %173 = tpu.matmul %152, %12, %cst_85 {dimension_numbers = #tpu.dot_dimension_numbers<[1], [0], [0], [1], [0, 0, 1, 1], [], []>} : vector<8x32xf32>, vector<32x32xf32>, vector<8x32xf32> -> vector<8x32xf32>
    %174 = arith.addf %173, %34 : vector<8x32xf32>
    %cst_86 = arith.constant dense<0.000000e+00> : vector<8x32xf32>
    %175 = tpu.matmul %152, %14, %cst_86 {dimension_numbers = #tpu.dot_dimension_numbers<[1], [0], [0], [1], [0, 0, 1, 1], [], []>} : vector<8x32xf32>, vector<32x32xf32>, vector<8x32xf32> -> vector<8x32xf32>
    %176 = arith.addf %175, %38 : vector<8x32xf32>
    %177 = arith.addf %117, %172 : vector<8x32xf32>
    %178 = arith.negf %177 : vector<8x32xf32>
    %179 = math.exp %178 : vector<8x32xf32>
    %cst_87 = arith.constant 1.000000e+00 : f32
    %180 = vector.broadcast %cst_87 : f32 to vector<8x32xf32>
    %181 = arith.addf %180, %179 : vector<8x32xf32>
    %182 = arith.divf %180, %181 : vector<8x32xf32>
    %183 = arith.addf %119, %174 : vector<8x32xf32>
    %184 = arith.negf %183 : vector<8x32xf32>
    %185 = math.exp %184 : vector<8x32xf32>
    %cst_88 = arith.constant 1.000000e+00 : f32
    %186 = vector.broadcast %cst_88 : f32 to vector<8x32xf32>
    %187 = arith.addf %186, %185 : vector<8x32xf32>
    %188 = arith.divf %186, %187 : vector<8x32xf32>
    %189 = arith.mulf %182, %176 : vector<8x32xf32>
    %190 = arith.addf %121, %189 : vector<8x32xf32>
    %191 = math.tanh %190 : vector<8x32xf32>
    %cst_89 = arith.constant 1.000000e+00 : f32
    %192 = vector.broadcast %cst_89 : f32 to vector<8x32xf32>
    %193 = arith.subf %192, %188 : vector<8x32xf32>
    %194 = arith.mulf %193, %191 : vector<8x32xf32>
    %195 = arith.mulf %188, %152 : vector<8x32xf32>
    %196 = arith.addf %194, %195 : vector<8x32xf32>
    %cst_90 = arith.constant 5.000000e-01 : f32
    %197 = vector.broadcast %cst_90 : f32 to vector<8x1xf32>
    %198 = arith.cmpf ogt, %115, %197 : vector<8x1xf32>
    %199 = vector.shape_cast %198 : vector<8x1xi1> to vector<8x1xi1>
    %200 = vector.broadcast %199 : vector<8x1xi1> to vector<8x32xi1>
    %201 = arith.select %200, %196, %152 : vector<8x32xi1>, vector<8x32xf32>
    %c3_i32_91 = arith.constant 3 : i32
    %c1_i32_92 = arith.constant 1 : i32
    %202 = arith.addi %c3_i32_91, %c1_i32_92 : i32
    %c3_i32_93 = arith.constant 3 : i32
    %203 = arith.minsi %202, %c3_i32_93 : i32
    %204 = arith.index_cast %203 : i32 to index
    %c0_94 = arith.constant 0 : index
    %c0_95 = arith.constant 0 : index
    %205 = vector.load %arg2[%204, %c0_94, %c0_95] : memref<4x8x9xf32, #tpu.memory_space<vmem>>, vector<1x8x9xf32>
    %206 = vector.shape_cast %205 : vector<1x8x9xf32> to vector<8x9xf32>
    %207 = vector.extract_strided_slice %206 {offsets = [0, 4], sizes = [8, 4], strides = [1, 1]} : vector<8x9xf32> to vector<8x4xf32>
    %cst_96 = arith.constant dense<0xFF800000> : vector<8xf32>
    %208 = vector.multi_reduction <maximumf>, %207, %cst_96 [1] : vector<8x4xf32> to vector<8xf32>
    %209 = vector.shape_cast %208 : vector<8xf32> to vector<8x1xf32>
    %cst_97 = arith.constant 5.000000e-01 : f32
    %210 = vector.broadcast %cst_97 : f32 to vector<8x1xf32>
    %211 = arith.cmpf ogt, %209, %210 : vector<8x1xf32>
    %212 = arith.extui %211 : vector<8x1xi1> to vector<8x1xi32>
    %213 = arith.sitofp %212 : vector<8x1xi32> to vector<8x1xf32>
    %cst_98 = arith.constant dense<0.000000e+00> : vector<8x32xf32>
    %214 = tpu.matmul %206, %4, %cst_98 {dimension_numbers = #tpu.dot_dimension_numbers<[1], [0], [0], [1], [0, 0, 1, 1], [], []>} : vector<8x9xf32>, vector<9x32xf32>, vector<8x32xf32> -> vector<8x32xf32>
    %215 = arith.addf %214, %18 : vector<8x32xf32>
    %cst_99 = arith.constant dense<0.000000e+00> : vector<8x32xf32>
    %216 = tpu.matmul %206, %6, %cst_99 {dimension_numbers = #tpu.dot_dimension_numbers<[1], [0], [0], [1], [0, 0, 1, 1], [], []>} : vector<8x9xf32>, vector<9x32xf32>, vector<8x32xf32> -> vector<8x32xf32>
    %217 = arith.addf %216, %22 : vector<8x32xf32>
    %cst_100 = arith.constant dense<0.000000e+00> : vector<8x32xf32>
    %218 = tpu.matmul %206, %8, %cst_100 {dimension_numbers = #tpu.dot_dimension_numbers<[1], [0], [0], [1], [0, 0, 1, 1], [], []>} : vector<8x9xf32>, vector<9x32xf32>, vector<8x32xf32> -> vector<8x32xf32>
    %219 = arith.addf %218, %26 : vector<8x32xf32>
    %cst_101 = arith.constant dense<0.000000e+00> : vector<8x32xf32>
    %220 = tpu.matmul %201, %10, %cst_101 {dimension_numbers = #tpu.dot_dimension_numbers<[1], [0], [0], [1], [0, 0, 1, 1], [], []>} : vector<8x32xf32>, vector<32x32xf32>, vector<8x32xf32> -> vector<8x32xf32>
    %221 = arith.addf %220, %30 : vector<8x32xf32>
    %cst_102 = arith.constant dense<0.000000e+00> : vector<8x32xf32>
    %222 = tpu.matmul %201, %12, %cst_102 {dimension_numbers = #tpu.dot_dimension_numbers<[1], [0], [0], [1], [0, 0, 1, 1], [], []>} : vector<8x32xf32>, vector<32x32xf32>, vector<8x32xf32> -> vector<8x32xf32>
    %223 = arith.addf %222, %34 : vector<8x32xf32>
    %cst_103 = arith.constant dense<0.000000e+00> : vector<8x32xf32>
    %224 = tpu.matmul %201, %14, %cst_103 {dimension_numbers = #tpu.dot_dimension_numbers<[1], [0], [0], [1], [0, 0, 1, 1], [], []>} : vector<8x32xf32>, vector<32x32xf32>, vector<8x32xf32> -> vector<8x32xf32>
    %225 = arith.addf %224, %38 : vector<8x32xf32>
    %226 = arith.addf %166, %221 : vector<8x32xf32>
    %227 = arith.negf %226 : vector<8x32xf32>
    %228 = math.exp %227 : vector<8x32xf32>
    %cst_104 = arith.constant 1.000000e+00 : f32
    %229 = vector.broadcast %cst_104 : f32 to vector<8x32xf32>
    %230 = arith.addf %229, %228 : vector<8x32xf32>
    %231 = arith.divf %229, %230 : vector<8x32xf32>
    %232 = arith.addf %168, %223 : vector<8x32xf32>
    %233 = arith.negf %232 : vector<8x32xf32>
    %234 = math.exp %233 : vector<8x32xf32>
    %cst_105 = arith.constant 1.000000e+00 : f32
    %235 = vector.broadcast %cst_105 : f32 to vector<8x32xf32>
    %236 = arith.addf %235, %234 : vector<8x32xf32>
    %237 = arith.divf %235, %236 : vector<8x32xf32>
    %238 = arith.mulf %231, %225 : vector<8x32xf32>
    %239 = arith.addf %170, %238 : vector<8x32xf32>
    %240 = math.tanh %239 : vector<8x32xf32>
    %cst_106 = arith.constant 1.000000e+00 : f32
    %241 = vector.broadcast %cst_106 : f32 to vector<8x32xf32>
    %242 = arith.subf %241, %237 : vector<8x32xf32>
    %243 = arith.mulf %242, %240 : vector<8x32xf32>
    %244 = arith.mulf %237, %201 : vector<8x32xf32>
    %245 = arith.addf %243, %244 : vector<8x32xf32>
    %cst_107 = arith.constant 5.000000e-01 : f32
    %246 = vector.broadcast %cst_107 : f32 to vector<8x1xf32>
    %247 = arith.cmpf ogt, %164, %246 : vector<8x1xf32>
    %248 = vector.shape_cast %247 : vector<8x1xi1> to vector<8x1xi1>
    %249 = vector.broadcast %248 : vector<8x1xi1> to vector<8x32xi1>
    %250 = arith.select %249, %245, %201 : vector<8x32xi1>, vector<8x32xf32>
    %c4_i32 = arith.constant 4 : i32
    %c0_108 = arith.constant 0 : index
    %c0_109 = arith.constant 0 : index
    %251 = vector.load %arg20[%c0_108, %c0_109] : memref<8x32xf32, #tpu.memory_space<vmem>>, vector<8x32xf32>
    tpu.vector_store %arg20[%c0_108, %c0_109], %250 {strides = array<i32>} : memref<8x32xf32, #tpu.memory_space<vmem>>, vector<8x32xf32>,
    %c2_i32_110 = arith.constant 2 : i32
    %252 = arith.cmpi eq, %arg1, %c2_i32_110 : i32
    %253 = arith.extui %252 : i1 to i32
    %c0_i32_111 = arith.constant 0 : i32
    %254 = arith.cmpi ne, %253, %c0_i32_111 : i32
    scf.if %254 {
      %c0_112 = arith.constant 0 : index
      %c0_113 = arith.constant 0 : index
      %255 = vector.load %arg3[%c0_112, %c0_113] : memref<8x5xf32, #tpu.memory_space<vmem>>, vector<8x5xf32>
      %cst_114 = arith.constant 0.000000e+00 : f32
      %256 = vector.broadcast %cst_114 : f32 to vector<8x5xf32>
      %257 = arith.subf %255, %256 : vector<8x5xf32>
      %cst_115 = arith.constant 1.000000e+00 : f32
      %258 = vector.broadcast %cst_115 : f32 to vector<8x5xf32>
      %259 = arith.divf %257, %258 : vector<8x5xf32>
      %c0_116 = arith.constant 0 : index
      %c0_117 = arith.constant 0 : index
      %260 = vector.load %arg8[%c0_116, %c0_117] : memref<5x32xf32, #tpu.memory_space<vmem>>, vector<5x32xf32>
      %cst_118 = arith.constant dense<0.000000e+00> : vector<8x32xf32>
      %261 = tpu.matmul %259, %260, %cst_118 {dimension_numbers = #tpu.dot_dimension_numbers<[1], [0], [0], [1], [0, 0, 1, 1], [], []>} : vector<8x5xf32>, vector<5x32xf32>, vector<8x32xf32> -> vector<8x32xf32>
      %c0_119 = arith.constant 0 : index
      %c0_120 = arith.constant 0 : index
      %262 = vector.load %arg9[%c0_119, %c0_120] : memref<1x32xf32, #tpu.memory_space<vmem>>, vector<1x32xf32>
      %263 = vector.broadcast %262 : vector<1x32xf32> to vector<8x32xf32>
      %264 = arith.addf %261, %263 : vector<8x32xf32>
      %cst_121 = arith.constant 0.000000e+00 : f32
      %265 = vector.broadcast %cst_121 : f32 to vector<8x32xf32>
      %266 = arith.maximumf %264, %265 : vector<8x32xf32>
      %c0_122 = arith.constant 0 : index
      %c0_123 = arith.constant 0 : index
      %267 = vector.load %arg10[%c0_122, %c0_123] : memref<32x32xf32, #tpu.memory_space<vmem>>, vector<32x32xf32>
      %cst_124 = arith.constant dense<0.000000e+00> : vector<8x32xf32>
      %268 = tpu.matmul %266, %267, %cst_124 {dimension_numbers = #tpu.dot_dimension_numbers<[1], [0], [0], [1], [0, 0, 1, 1], [], []>} : vector<8x32xf32>, vector<32x32xf32>, vector<8x32xf32> -> vector<8x32xf32>
      %c0_125 = arith.constant 0 : index
      %c0_126 = arith.constant 0 : index
      %269 = vector.load %arg11[%c0_125, %c0_126] : memref<1x32xf32, #tpu.memory_space<vmem>>, vector<1x32xf32>
      %270 = vector.broadcast %269 : vector<1x32xf32> to vector<8x32xf32>
      %271 = arith.addf %268, %270 : vector<8x32xf32>
      %cst_127 = arith.constant 0.000000e+00 : f32
      %272 = vector.broadcast %cst_127 : f32 to vector<8x32xf32>
      %273 = arith.maximumf %271, %272 : vector<8x32xf32>
      %c0_128 = arith.constant 0 : index
      %c0_129 = arith.constant 0 : index
      %274 = vector.load %arg12[%c0_128, %c0_129] : memref<32x32xf32, #tpu.memory_space<vmem>>, vector<32x32xf32>
      %cst_130 = arith.constant dense<0.000000e+00> : vector<8x32xf32>
      %275 = tpu.matmul %250, %274, %cst_130 {dimension_numbers = #tpu.dot_dimension_numbers<[1], [0], [0], [1], [0, 0, 1, 1], [], []>} : vector<8x32xf32>, vector<32x32xf32>, vector<8x32xf32> -> vector<8x32xf32>
      %c0_131 = arith.constant 0 : index
      %c0_132 = arith.constant 0 : index
      %276 = vector.load %arg13[%c0_131, %c0_132] : memref<1x32xf32, #tpu.memory_space<vmem>>, vector<1x32xf32>
      %277 = vector.broadcast %276 : vector<1x32xf32> to vector<8x32xf32>
      %278 = arith.addf %275, %277 : vector<8x32xf32>
      %c0_133 = arith.constant 0 : index
      %c0_134 = arith.constant 0 : index
      %279 = vector.load %arg14[%c0_133, %c0_134] : memref<32x32xf32, #tpu.memory_space<vmem>>, vector<32x32xf32>
      %cst_135 = arith.constant dense<0.000000e+00> : vector<8x32xf32>
      %280 = tpu.matmul %273, %279, %cst_135 {dimension_numbers = #tpu.dot_dimension_numbers<[1], [0], [0], [1], [0, 0, 1, 1], [], []>} : vector<8x32xf32>, vector<32x32xf32>, vector<8x32xf32> -> vector<8x32xf32>
      %c0_136 = arith.constant 0 : index
      %c0_137 = arith.constant 0 : index
      %281 = vector.load %arg15[%c0_136, %c0_137] : memref<32x32xf32, #tpu.memory_space<vmem>>, vector<32x32xf32>
      %cst_138 = arith.constant dense<0.000000e+00> : vector<8x32xf32>
      %282 = tpu.matmul %278, %281, %cst_138 {dimension_numbers = #tpu.dot_dimension_numbers<[1], [0], [0], [1], [0, 0, 1, 1], [], []>} : vector<8x32xf32>, vector<32x32xf32>, vector<8x32xf32> -> vector<8x32xf32>
      %283 = arith.addf %280, %282 : vector<8x32xf32>
      %c0_139 = arith.constant 0 : index
      %c0_140 = arith.constant 0 : index
      %284 = vector.load %arg16[%c0_139, %c0_140] : memref<1x32xf32, #tpu.memory_space<vmem>>, vector<1x32xf32>
      %285 = vector.broadcast %284 : vector<1x32xf32> to vector<8x32xf32>
      %286 = arith.addf %283, %285 : vector<8x32xf32>
      %cst_141 = arith.constant 0.000000e+00 : f32
      %287 = vector.broadcast %cst_141 : f32 to vector<8x32xf32>
      %288 = arith.maximumf %286, %287 : vector<8x32xf32>
      %c0_142 = arith.constant 0 : index
      %c0_143 = arith.constant 0 : index
      %289 = vector.load %arg17[%c0_142, %c0_143] : memref<32x3xf32, #tpu.memory_space<vmem>>, vector<32x3xf32>
      %cst_144 = arith.constant dense<0.000000e+00> : vector<8x3xf32>
      %290 = tpu.matmul %288, %289, %cst_144 {dimension_numbers = #tpu.dot_dimension_numbers<[1], [0], [0], [1], [0, 0, 1, 1], [], []>} : vector<8x32xf32>, vector<32x3xf32>, vector<8x3xf32> -> vector<8x3xf32>
      %c0_145 = arith.constant 0 : index
      %c0_146 = arith.constant 0 : index
      %291 = vector.load %arg18[%c0_145, %c0_146] : memref<1x3xf32, #tpu.memory_space<vmem>>, vector<1x3xf32>
      %292 = vector.broadcast %291 : vector<1x3xf32> to vector<8x3xf32>
      %293 = arith.addf %290, %292 : vector<8x3xf32>
      %c0_147 = arith.constant 0 : index
      %c0_148 = arith.constant 0 : index
      %294 = vector.load %arg19[%c0_147, %c0_148] : memref<8x3xf32, #tpu.memory_space<vmem>>, vector<8x3xf32>
      tpu.vector_store %arg19[%c0_147, %c0_148], %293 {strides = array<i32>} : memref<8x3xf32, #tpu.memory_space<vmem>>, vector<8x3xf32>,
    } else {
    }
    return
  }
  func.func @transform_0(%arg0: i32, %arg1: i32) -> (i32, i32, i32) {
    %c0_i32 = arith.constant 0 : i32
    %c0_i32_0 = arith.constant 0 : i32
    return %arg1, %arg0, %c0_i32 : i32, i32, i32
  }
  func.func @transform_1(%arg0: i32, %arg1: i32) -> (i32, i32) {
    %c0_i32 = arith.constant 0 : i32
    %c0_i32_0 = arith.constant 0 : i32
    return %arg0, %c0_i32 : i32, i32
  }
  func.func @transform_2(%arg0: i32, %arg1: i32) -> (i32, i32, i32) {
    %c0_i32 = arith.constant 0 : i32
    %c0_i32_0 = arith.constant 0 : i32
    %c0_i32_1 = arith.constant 0 : i32
    %c0_i32_2 = arith.constant 0 : i32
    return %c0_i32, %c0_i32_0, %c0_i32_1 : i32, i32, i32
  }
  func.func @transform_3(%arg0: i32, %arg1: i32) -> (i32, i32, i32) {
    %c0_i32 = arith.constant 0 : i32
    %c0_i32_0 = arith.constant 0 : i32
    %c0_i32_1 = arith.constant 0 : i32
    %c0_i32_2 = arith.constant 0 : i32
    return %c0_i32, %c0_i32_0, %c0_i32_1 : i32, i32, i32
  }
  func.func @transform_4(%arg0: i32, %arg1: i32) -> (i32, i32, i32) {
    %c0_i32 = arith.constant 0 : i32
    %c0_i32_0 = arith.constant 0 : i32
    %c0_i32_1 = arith.constant 0 : i32
    %c0_i32_2 = arith.constant 0 : i32
    return %c0_i32, %c0_i32_0, %c0_i32_1 : i32, i32, i32
  }
  func.func @transform_5(%arg0: i32, %arg1: i32) -> (i32, i32, i32) {
    %c0_i32 = arith.constant 0 : i32
    %c0_i32_0 = arith.constant 0 : i32
    %c0_i32_1 = arith.constant 0 : i32
    %c0_i32_2 = arith.constant 0 : i32
    return %c0_i32, %c0_i32_0, %c0_i32_1 : i32, i32, i32
  }
  func.func @transform_6(%arg0: i32, %arg1: i32) -> (i32, i32) {
    %c0_i32 = arith.constant 0 : i32
    %c0_i32_0 = arith.constant 0 : i32
    %c0_i32_1 = arith.constant 0 : i32
    return %c0_i32, %c0_i32_0 : i32, i32
  }
  func.func @transform_7(%arg0: i32, %arg1: i32) -> (i32, i32) {
    %c0_i32 = arith.constant 0 : i32
    %c0_i32_0 = arith.constant 0 : i32
    %c0_i32_1 = arith.constant 0 : i32
    return %c0_i32, %c0_i32_0 : i32, i32
  }
  func.func @transform_8(%arg0: i32, %arg1: i32) -> (i32, i32) {
    %c0_i32 = arith.constant 0 : i32
    %c0_i32_0 = arith.constant 0 : i32
    %c0_i32_1 = arith.constant 0 : i32
    return %c0_i32, %c0_i32_0 : i32, i32
  }
  func.func @transform_9(%arg0: i32, %arg1: i32) -> (i32, i32) {
    %c0_i32 = arith.constant 0 : i32
    %c0_i32_0 = arith.constant 0 : i32
    %c0_i32_1 = arith.constant 0 : i32
    return %c0_i32, %c0_i32_0 : i32, i32
  }
  func.func @transform_10(%arg0: i32, %arg1: i32) -> (i32, i32) {
    %c0_i32 = arith.constant 0 : i32
    %c0_i32_0 = arith.constant 0 : i32
    %c0_i32_1 = arith.constant 0 : i32
    return %c0_i32, %c0_i32_0 : i32, i32
  }
  func.func @transform_11(%arg0: i32, %arg1: i32) -> (i32, i32) {
    %c0_i32 = arith.constant 0 : i32
    %c0_i32_0 = arith.constant 0 : i32
    %c0_i32_1 = arith.constant 0 : i32
    return %c0_i32, %c0_i32_0 : i32, i32
  }
  func.func @transform_12(%arg0: i32, %arg1: i32) -> (i32, i32) {
    %c0_i32 = arith.constant 0 : i32
    %c0_i32_0 = arith.constant 0 : i32
    %c0_i32_1 = arith.constant 0 : i32
    return %c0_i32, %c0_i32_0 : i32, i32
  }
  func.func @transform_13(%arg0: i32, %arg1: i32) -> (i32, i32) {
    %c0_i32 = arith.constant 0 : i32
    %c0_i32_0 = arith.constant 0 : i32
    %c0_i32_1 = arith.constant 0 : i32
    return %c0_i32, %c0_i32_0 : i32, i32
  }
  func.func @transform_14(%arg0: i32, %arg1: i32) -> (i32, i32) {
    %c0_i32 = arith.constant 0 : i32
    %c0_i32_0 = arith.constant 0 : i32
    %c0_i32_1 = arith.constant 0 : i32
    return %c0_i32, %c0_i32_0 : i32, i32
  }
  func.func @transform_15(%arg0: i32, %arg1: i32) -> (i32, i32) {
    %c0_i32 = arith.constant 0 : i32
    %c0_i32_0 = arith.constant 0 : i32
    %c0_i32_1 = arith.constant 0 : i32
    return %c0_i32, %c0_i32_0 : i32, i32
  }
  func.func @transform_16(%arg0: i32, %arg1: i32) -> (i32, i32) {
    %c0_i32 = arith.constant 0 : i32
    %c0_i32_0 = arith.constant 0 : i32
    %c0_i32_1 = arith.constant 0 : i32
    return %c0_i32, %c0_i32_0 : i32, i32
  }
  func.func @transform_17(%arg0: i32, %arg1: i32) -> (i32, i32) {
    %c0_i32 = arith.constant 0 : i32
    %c0_i32_0 = arith.constant 0 : i32
    return %arg0, %c0_i32 : i32, i32
  }
}

</mosaic_0001>

<llo_original>
// kernel: tpu_custom_call.1
$region0: #{tpu_custom_call.1}
  #allocation0 [shape = 'u32[]', space=smem, size = 0x4, offset = 0x4, fixed_abs, tag = 'smem constant byte address 0x4 - core index']
  #allocation1 [shape = 'u32[144,128]{1,0:T(1,128)}', space=vmem, size = 0x12000, scoped, tag = 'internal scratch']
  #allocation2 [shape = 'f32[8,32]{1,0:T(8,128)}', space=vmem, size = 0x1000, scoped, tag = 'scratch operand']
  %s0 = inlined_call_operand.hbm [shape: f32[12,16,9], index: 0, kind: input, shape index: {}]
  %s1 = inlined_call_operand.hbm [shape: f32[16,5], index: 1, kind: input, shape index: {}]
  %s2 = inlined_call_operand.hbm [shape: f32[3,9,32], index: 2, kind: input, shape index: {}]
  %s3 = inlined_call_operand.hbm [shape: f32[3,1,32], index: 3, kind: input, shape index: {}]
  %s4 = inlined_call_operand.hbm [shape: f32[3,32,32], index: 4, kind: input, shape index: {}]
  %s5 = inlined_call_operand.hbm [shape: f32[3,1,32], index: 5, kind: input, shape index: {}]
  %s6 = inlined_call_operand.hbm [shape: f32[5,32], index: 6, kind: input, shape index: {}]
  %s7 = inlined_call_operand.hbm [shape: f32[1,32], index: 7, kind: input, shape index: {}]
  %s8 = inlined_call_operand.hbm [shape: f32[32,32], index: 8, kind: input, shape index: {}]
  %s9 = inlined_call_operand.hbm [shape: f32[1,32], index: 9, kind: input, shape index: {}]
  %s10 = inlined_call_operand.hbm [shape: f32[32,32], index: 10, kind: input, shape index: {}]
  %s11 = inlined_call_operand.hbm [shape: f32[1,32], index: 11, kind: input, shape index: {}]
  %s12 = inlined_call_operand.hbm [shape: f32[32,32], index: 12, kind: input, shape index: {}]
  %s13 = inlined_call_operand.hbm [shape: f32[32,32], index: 13, kind: input, shape index: {}]
  %s14 = inlined_call_operand.hbm [shape: f32[1,32], index: 14, kind: input, shape index: {}]
  %s15 = inlined_call_operand.hbm [shape: f32[32,3], index: 15, kind: input, shape index: {}]
  %s16 = inlined_call_operand.hbm [shape: f32[1,3], index: 16, kind: input, shape index: {}]
  %s17 = inlined_call_operand.hbm [shape: f32[16,3], index: 17, kind: output, shape index: {}]
  %s18 = sld [smem:[#allocation0]]
  $region177: #{tpu_custom_call.1} parent=0
    _
  %s20 = ssub.s32 1, %s18
  %s21 = scalar_select 0, %s20, %s18
  $region1: #{tpu_custom_call.1} parent=0
    #allocation3 [shape = 'u8[32768]{0}', space=vmem, size = 0x8000, scoped, tag = 'input window, operand 0']
    #allocation4 [shape = 's32[2]{0}', space=sflag, size = 0x8, scoped, tag = 'scoped memory for tpu_custom_call.1']
    #allocation5 [shape = 's32[2]{0}', space=sflag, size = 0x8, scoped, tag = 'scoped memory for tpu_custom_call.1']
    #allocation6 [shape = 'u8[8192]{0}', space=vmem, size = 0x2000, scoped, tag = 'input window, operand 1']
    #allocation7 [shape = 's32[2]{0}', space=sflag, size = 0x8, scoped, tag = 'scoped memory for tpu_custom_call.1']
    #allocation8 [shape = 'u8[24576]{0}', space=vmem, size = 0x6000, scoped, tag = 'input window, operand 2, single buffered']
    #allocation9 [shape = 'u8[1536]{0}', space=vmem, size = 0x800, scoped, tag = 'input window, operand 3, single buffered']
    #allocation10 [shape = 's32[1]{0}', space=sflag, size = 0x4, scoped, tag = 'scoped memory for tpu_custom_call.1']
    #allocation11 [shape = 'u8[49152]{0}', space=vmem, size = 0xc000, scoped, tag = 'input window, operand 4, single buffered']
    #allocation12 [shape = 'u8[1536]{0}', space=vmem, size = 0x800, scoped, tag = 'input window, operand 5, single buffered']
    #allocation13 [shape = 's32[1]{0}', space=sflag, size = 0x4, scoped, tag = 'scoped memory for tpu_custom_call.1']
    #allocation14 [shape = 'u8[4096]{0}', space=vmem, size = 0x1000, scoped, tag = 'input window, operand 6, single buffered']
    #allocation15 [shape = 'u8[512]{0}', space=vmem, size = 0x400, scoped, tag = 'input window, operand 7, single buffered']
    #allocation16 [shape = 's32[1]{0}', space=sflag, size = 0x4, scoped, tag = 'scoped memory for tpu_custom_call.1']
    #allocation17 [shape = 'u8[16384]{0}', space=vmem, size = 0x4000, scoped, tag = 'input window, operand 8, single buffered']
    #allocation18 [shape = 'u8[512]{0}', space=vmem, size = 0x400, scoped, tag = 'input window, operand 9, single buffered']
    #allocation19 [shape = 's32[1]{0}', space=sflag, size = 0x4, scoped, tag = 'scoped memory for tpu_custom_call.1']
    #allocation20 [shape = 'u8[16384]{0}', space=vmem, size = 0x4000, scoped, tag = 'input window, operand 10, single buffered']
    #allocation21 [shape = 'u8[512]{0}', space=vmem, size = 0x400, scoped, tag = 'input window, operand 11, single buffered']
    #allocation22 [shape = 's32[1]{0}', space=sflag, size = 0x4, scoped, tag = 'scoped memory for tpu_custom_call.1']
    #allocation23 [shape = 'u8[16384]{0}', space=vmem, size = 0x4000, scoped, tag = 'input window, operand 12, single buffered']
    #allocation24 [shape = 'u8[16384]{0}', space=vmem, size = 0x4000, scoped, tag = 'input window, operand 13, single buffered']
    #allocation25 [shape = 's32[1]{0}', space=sflag, size = 0x4, scoped, tag = 'scoped memory for tpu_custom_call.1']
    #allocation26 [shape = 'u8[512]{0}', space=vmem, size = 0x400, scoped, tag = 'input window, operand 14, single buffered']
    #allocation27 [shape = 'u8[16384]{0}', space=vmem, size = 0x4000, scoped, tag = 'input window, operand 15, single buffered']
    #allocation28 [shape = 's32[1]{0}', space=sflag, size = 0x4, scoped, tag = 'scoped memory for tpu_custom_call.1']
    #allocation29 [shape = 'u8[512]{0}', space=vmem, size = 0x400, scoped, tag = 'input window, operand 16, single buffered']
    #allocation30 [shape = 'u8[8192]{0}', space=vmem, size = 0x2000, scoped, tag = 'output window, operand 0']
    %22 = vsyncpa [#allocation4], 0
    %s23 = scalar_lea.sflag [#allocation4], 1
    %24 = vsyncpa %s23, 0
    %25 = vsyncpa [#allocation7], 0
    %s26 = scalar_lea.sflag [#allocation7], 1
    %27 = vsyncpa %s26, 0
    %28 = vsyncpa [#allocation10], 0
    %29 = vsyncpa [#allocation13], 0
    %30 = vsyncpa [#allocation16], 0
    %31 = vsyncpa [#allocation19], 0
    %32 = vsyncpa [#allocation22], 0
    %33 = vsyncpa [#allocation25], 0
    %34 = vsyncpa [#allocation28], 0
    %35 = vsyncpa [#allocation5], 0
    %s36 = scalar_lea.sflag [#allocation5], 1
    %37 = vsyncpa %s36, 0
    loop: start=0, step=1, limit=8
    $region2: #{tpu_custom_call.1} parent=1 // loop_pre_header
      _
    $region3: #{tpu_custom_call.1} parent=1 // loop_header
      %s39 = sphi 0, %s43
      %p40 = scmp.ge.s32.totalorder %s39, 8
      %s46 = sphi 0, %s58
      %s47 = sphi 0, %s54
      %s48 = sphi 0, %s46
      %s49 = sphi 0, %s47
      %s50 = sphi 0, %s48
      %s51 = sphi 0, %s49
      %s63 = sphi 0, %s65
      %s66 = sphi 0, %s63
      %s67 = sphi 0, %s66
      %s83 = sphi 0, %s67
      %s89 = sphi 0, %s91
      %s92 = sphi 0, %s89
      %s93 = sphi 0, %s92
      %s109 = sphi 0, %s93
      %s113 = sphi 0, %s113
      %s115 = sphi 0, %s113
      %s116 = sphi 0, %s115
      %s130 = sphi 0, %s116
      %s134 = sphi 0, %s134
      %s136 = sphi 0, %s134
      %s137 = sphi 0, %s136
      %s151 = sphi 0, %s137
      %s155 = sphi 0, %s155
      %s157 = sphi 0, %s155
      %s158 = sphi 0, %s157
      %s172 = sphi 0, %s158
      %s176 = sphi 0, %s176
      %s178 = sphi 0, %s176
      %s179 = sphi 0, %s178
      %s193 = sphi 0, %s179
      %s197 = sphi 0, %s197
      %s199 = sphi 0, %s197
      %s200 = sphi 0, %s199
      %s214 = sphi 0, %s200
      %s218 = sphi 0, %s218
      %s220 = sphi 0, %s218
      %s221 = sphi 0, %s220
      %s235 = sphi 0, %s221
      %s239 = sphi 0, %s239
      %s241 = sphi 0, %s239
      %s242 = sphi 0, %s241
      %s256 = sphi 0, %s242
      %s260 = sphi 0, %s260
      %s262 = sphi 0, %s260
      %s263 = sphi 0, %s262
      %s277 = sphi 0, %s263
      %s281 = sphi 0, %s281
      %s283 = sphi 0, %s281
      %s284 = sphi 0, %s283
      %s298 = sphi 0, %s284
      %s302 = sphi 0, %s302
      %s304 = sphi 0, %s302
      %s305 = sphi 0, %s304
      %s319 = sphi 0, %s305
      %s323 = sphi 0, %s323
      %s325 = sphi 0, %s323
      %s326 = sphi 0, %s325
      %s340 = sphi 0, %s326
      %s344 = sphi 0, %s344
      %s346 = sphi 0, %s344
      %s347 = sphi 0, %s346
      %s361 = sphi 0, %s347
      %s365 = sphi 0, %s365
      %s367 = sphi 0, %s365
      %s368 = sphi 0, %s367
      %s382 = sphi 0, %s368
      %s386 = sphi 0, %s386
      %s388 = sphi 0, %s386
      %s389 = sphi 0, %s388
      %s403 = sphi 0, %s389
      %s407 = sphi 0, %s407
      %s409 = sphi 0, %s407
      %s410 = sphi 0, %s409
      %s424 = sphi 0, %s410
      %s430 = sphi 0, %s432
      %s433 = sphi 0, %s430
      %s434 = sphi 0, %s433
      %s450 = sphi 0, %s434
    $region4: #{tpu_custom_call.1} parent=1 // loop_header_branch
      %42 = sbr.rel (%p40) target = $region8
    $region5: #{tpu_custom_call.1} parent=1 // loop_body
      %s44 = ssub.s32 %s39, 1
      %s45 = ssub.s32 %s39, 2
      %s52 = sadd.s32 1, %s47
      %p53 = scmp.ge.s32.totalorder %s52, 3
      %s54 = scalar_select %p53, 0, %s52
      %s55 = sadd.s32 1, %s46
      %s56 = scalar_select %p53, %s55, %s46
      %p57 = scmp.ge.s32.totalorder %s56, 2
      %s58 = scalar_select %p57, 0, %s56
      %s59 = ssub.s32 %s47, %s54
      %s60 = ssub.s32 %s46, %s58
      %s61 = sor.u32 %s59, %s60
      %p62 = scmp.eq.s32.totalorder %s61, 0
      %s64 = sadd.s32 %s63, 1
      %s65 = scalar_select %p62, %s63, %s64
      %p68 = pneg %p62
      %p69 = scmp.eq.s32.totalorder %s39, 5
      %p70 = por %p68, %p69
      %p71 = scmp.ne.s32.totalorder %s63, %s66
      %p72 = scmp.eq.s32.totalorder %s39, 0
      %p73 = por %p71, %p72
      %p74 = scmp.ne.s32.totalorder %s63, %s66
      %p75 = scmp.eq.s32.totalorder %s44, 5
      %p76 = por %p74, %p75
      %p77 = scmp.ne.s32.totalorder %s66, %s67
      %p78 = scmp.eq.s32.totalorder %s44, 0
      %p79 = por %p77, %p78
      %p80 = scmp.ne.s32.totalorder %s66, %s67
      %p81 = scmp.eq.s32.totalorder %s45, 5
      %p82 = por %p80, %p81
      %p84 = scmp.ne.s32.totalorder %s67, %s83
      %p85 = scmp.eq.s32.totalorder %s45, 0
      %p86 = por %p84, %p85
      %s87 = ssub.s32 %s46, %s58
      %p88 = scmp.eq.s32.totalorder %s87, 0
      %s90 = sadd.s32 %s89, 1
      %s91 = scalar_select %p88, %s89, %s90
      %p94 = pneg %p88
      %p95 = scmp.eq.s32.totalorder %s39, 5
      %p96 = por %p94, %p95
      %p97 = scmp.ne.s32.totalorder %s89, %s92
      %p98 = scmp.eq.s32.totalorder %s39, 0
      %p99 = por %p97, %p98
      %p100 = scmp.ne.s32.totalorder %s89, %s92
      %p101 = scmp.eq.s32.totalorder %s44, 5
      %p102 = por %p100, %p101
      %p103 = scmp.ne.s32.totalorder %s92, %s93
      %p104 = scmp.eq.s32.totalorder %s44, 0
      %p105 = por %p103, %p104
      %p106 = scmp.ne.s32.totalorder %s92, %s93
      %p107 = scmp.eq.s32.totalorder %s45, 5
      %p108 = por %p106, %p107
      %p110 = scmp.ne.s32.totalorder %s93, %s109
      %p111 = scmp.eq.s32.totalorder %s45, 0
      %p112 = por %p110, %p111
      %s114 = sadd.s32 %s113, 1
      %p117 = scmp.eq.s32.totalorder %s39, 5
      %p118 = scmp.ne.s32.totalorder %s113, %s115
      %p119 = scmp.eq.s32.totalorder %s39, 0
      %p120 = por %p118, %p119
      %p121 = scmp.ne.s32.totalorder %s113, %s115
      %p122 = scmp.eq.s32.totalorder %s44, 5
      %p123 = por %p121, %p122
      %p124 = scmp.ne.s32.totalorder %s115, %s116
      %p125 = scmp.eq.s32.totalorder %s44, 0
      %p126 = por %p124, %p125
      %p127 = scmp.ne.s32.totalorder %s115, %s116
      %p128 = scmp.eq.s32.totalorder %s45, 5
      %p129 = por %p127, %p128
      %p131 = scmp.ne.s32.totalorder %s116, %s130
      %p132 = scmp.eq.s32.totalorder %s45, 0
      %p133 = por %p131, %p132
      %s135 = sadd.s32 %s134, 1
      %p138 = scmp.eq.s32.totalorder %s39, 5
      %p139 = scmp.ne.s32.totalorder %s134, %s136
      %p140 = scmp.eq.s32.totalorder %s39, 0
      %p141 = por %p139, %p140
      %p142 = scmp.ne.s32.totalorder %s134, %s136
      %p143 = scmp.eq.s32.totalorder %s44, 5
      %p144 = por %p142, %p143
      %p145 = scmp.ne.s32.totalorder %s136, %s137
      %p146 = scmp.eq.s32.totalorder %s44, 0
      %p147 = por %p145, %p146
      %p148 = scmp.ne.s32.totalorder %s136, %s137
      %p149 = scmp.eq.s32.totalorder %s45, 5
      %p150 = por %p148, %p149
      %p152 = scmp.ne.s32.totalorder %s137, %s151
      %p153 = scmp.eq.s32.totalorder %s45, 0
      %p154 = por %p152, %p153
      %s156 = sadd.s32 %s155, 1
      %p159 = scmp.eq.s32.totalorder %s39, 5
      %p160 = scmp.ne.s32.totalorder %s155, %s157
      %p161 = scmp.eq.s32.totalorder %s39, 0
      %p162 = por %p160, %p161
      %p163 = scmp.ne.s32.totalorder %s155, %s157
      %p164 = scmp.eq.s32.totalorder %s44, 5
      %p165 = por %p163, %p164
      %p166 = scmp.ne.s32.totalorder %s157, %s158
      %p167 = scmp.eq.s32.totalorder %s44, 0
      %p168 = por %p166, %p167
      %p169 = scmp.ne.s32.totalorder %s157, %s158
      %p170 = scmp.eq.s32.totalorder %s45, 5
      %p171 = por %p169, %p170
      %p173 = scmp.ne.s32.totalorder %s158, %s172
      %p174 = scmp.eq.s32.totalorder %s45, 0
      %p175 = por %p173, %p174
      %s177 = sadd.s32 %s176, 1
      %p180 = scmp.eq.s32.totalorder %s39, 5
      %p181 = scmp.ne.s32.totalorder %s176, %s178
      %p182 = scmp.eq.s32.totalorder %s39, 0
      %p183 = por %p181, %p182
      %p184 = scmp.ne.s32.totalorder %s176, %s178
      %p185 = scmp.eq.s32.totalorder %s44, 5
      %p186 = por %p184, %p185
      %p187 = scmp.ne.s32.totalorder %s178, %s179
      %p188 = scmp.eq.s32.totalorder %s44, 0
      %p189 = por %p187, %p188
      %p190 = scmp.ne.s32.totalorder %s178, %s179
      %p191 = scmp.eq.s32.totalorder %s45, 5
      %p192 = por %p190, %p191
      %p194 = scmp.ne.s32.totalorder %s179, %s193
      %p195 = scmp.eq.s32.totalorder %s45, 0
      %p196 = por %p194, %p195
      %s198 = sadd.s32 %s197, 1
      %p201 = scmp.eq.s32.totalorder %s39, 5
      %p202 = scmp.ne.s32.totalorder %s197, %s199
      %p203 = scmp.eq.s32.totalorder %s39, 0
      %p204 = por %p202, %p203
      %p205 = scmp.ne.s32.totalorder %s197, %s199
      %p206 = scmp.eq.s32.totalorder %s44, 5
      %p207 = por %p205, %p206
      %p208 = scmp.ne.s32.totalorder %s199, %s200
      %p209 = scmp.eq.s32.totalorder %s44, 0
      %p210 = por %p208, %p209
      %p211 = scmp.ne.s32.totalorder %s199, %s200
      %p212 = scmp.eq.s32.totalorder %s45, 5
      %p213 = por %p211, %p212
      %p215 = scmp.ne.s32.totalorder %s200, %s214
      %p216 = scmp.eq.s32.totalorder %s45, 0
      %p217 = por %p215, %p216
      %s219 = sadd.s32 %s218, 1
      %p222 = scmp.eq.s32.totalorder %s39, 5
      %p223 = scmp.ne.s32.totalorder %s218, %s220
      %p224 = scmp.eq.s32.totalorder %s39, 0
      %p225 = por %p223, %p224
      %p226 = scmp.ne.s32.totalorder %s218, %s220
      %p227 = scmp.eq.s32.totalorder %s44, 5
      %p228 = por %p226, %p227
      %p229 = scmp.ne.s32.totalorder %s220, %s221
      %p230 = scmp.eq.s32.totalorder %s44, 0
      %p231 = por %p229, %p230
      %p232 = scmp.ne.s32.totalorder %s220, %s221
      %p233 = scmp.eq.s32.totalorder %s45, 5
      %p234 = por %p232, %p233
      %p236 = scmp.ne.s32.totalorder %s221, %s235
      %p237 = scmp.eq.s32.totalorder %s45, 0
      %p238 = por %p236, %p237
      %s240 = sadd.s32 %s239, 1
      %p243 = scmp.eq.s32.totalorder %s39, 5
      %p244 = scmp.ne.s32.totalorder %s239, %s241
      %p245 = scmp.eq.s32.totalorder %s39, 0
      %p246 = por %p244, %p245
      %p247 = scmp.ne.s32.totalorder %s239, %s241
      %p248 = scmp.eq.s32.totalorder %s44, 5
      %p249 = por %p247, %p248
      %p250 = scmp.ne.s32.totalorder %s241, %s242
      %p251 = scmp.eq.s32.totalorder %s44, 0
      %p252 = por %p250, %p251
      %p253 = scmp.ne.s32.totalorder %s241, %s242
      %p254 = scmp.eq.s32.totalorder %s45, 5
      %p255 = por %p253, %p254
      %p257 = scmp.ne.s32.totalorder %s242, %s256
      %p258 = scmp.eq.s32.totalorder %s45, 0
      %p259 = por %p257, %p258
      %s261 = sadd.s32 %s260, 1
      %p264 = scmp.eq.s32.totalorder %s39, 5
      %p265 = scmp.ne.s32.totalorder %s260, %s262
      %p266 = scmp.eq.s32.totalorder %s39, 0
      %p267 = por %p265, %p266
      %p268 = scmp.ne.s32.totalorder %s260, %s262
      %p269 = scmp.eq.s32.totalorder %s44, 5
      %p270 = por %p268, %p269
      %p271 = scmp.ne.s32.totalorder %s262, %s263
      %p272 = scmp.eq.s32.totalorder %s44, 0
      %p273 = por %p271, %p272
      %p274 = scmp.ne.s32.totalorder %s262, %s263
      %p275 = scmp.eq.s32.totalorder %s45, 5
      %p276 = por %p274, %p275
      %p278 = scmp.ne.s32.totalorder %s263, %s277
      %p279 = scmp.eq.s32.totalorder %s45, 0
      %p280 = por %p278, %p279
      %s282 = sadd.s32 %s281, 1
      %p285 = scmp.eq.s32.totalorder %s39, 5
      %p286 = scmp.ne.s32.totalorder %s281, %s283
      %p287 = scmp.eq.s32.totalorder %s39, 0
      %p288 = por %p286, %p287
      %p289 = scmp.ne.s32.totalorder %s281, %s283
      %p290 = scmp.eq.s32.totalorder %s44, 5
      %p291 = por %p289, %p290
      %p292 = scmp.ne.s32.totalorder %s283, %s284
      %p293 = scmp.eq.s32.totalorder %s44, 0
      %p294 = por %p292, %p293
      %p295 = scmp.ne.s32.totalorder %s283, %s284
      %p296 = scmp.eq.s32.totalorder %s45, 5
      %p297 = por %p295, %p296
      %p299 = scmp.ne.s32.totalorder %s284, %s298
      %p300 = scmp.eq.s32.totalorder %s45, 0
      %p301 = por %p299, %p300
      %s303 = sadd.s32 %s302, 1
      %p306 = scmp.eq.s32.totalorder %s39, 5
      %p307 = scmp.ne.s32.totalorder %s302, %s304
      %p308 = scmp.eq.s32.totalorder %s39, 0
      %p309 = por %p307, %p308
      %p310 = scmp.ne.s32.totalorder %s302, %s304
      %p311 = scmp.eq.s32.totalorder %s44, 5
      %p312 = por %p310, %p311
      %p313 = scmp.ne.s32.totalorder %s304, %s305
      %p314 = scmp.eq.s32.totalorder %s44, 0
      %p315 = por %p313, %p314
      %p316 = scmp.ne.s32.totalorder %s304, %s305
      %p317 = scmp.eq.s32.totalorder %s45, 5
      %p318 = por %p316, %p317
      %p320 = scmp.ne.s32.totalorder %s305, %s319
      %p321 = scmp.eq.s32.totalorder %s45, 0
      %p322 = por %p320, %p321
      %s324 = sadd.s32 %s323, 1
      %p327 = scmp.eq.s32.totalorder %s39, 5
      %p328 = scmp.ne.s32.totalorder %s323, %s325
      %p329 = scmp.eq.s32.totalorder %s39, 0
      %p330 = por %p328, %p329
      %p331 = scmp.ne.s32.totalorder %s323, %s325
      %p332 = scmp.eq.s32.totalorder %s44, 5
      %p333 = por %p331, %p332
      %p334 = scmp.ne.s32.totalorder %s325, %s326
      %p335 = scmp.eq.s32.totalorder %s44, 0
      %p336 = por %p334, %p335
      %p337 = scmp.ne.s32.totalorder %s325, %s326
      %p338 = scmp.eq.s32.totalorder %s45, 5
      %p339 = por %p337, %p338
      %p341 = scmp.ne.s32.totalorder %s326, %s340
      %p342 = scmp.eq.s32.totalorder %s45, 0
      %p343 = por %p341, %p342
      %s345 = sadd.s32 %s344, 1
      %p348 = scmp.eq.s32.totalorder %s39, 5
      %p349 = scmp.ne.s32.totalorder %s344, %s346
      %p350 = scmp.eq.s32.totalorder %s39, 0
      %p351 = por %p349, %p350
      %p352 = scmp.ne.s32.totalorder %s344, %s346
      %p353 = scmp.eq.s32.totalorder %s44, 5
      %p354 = por %p352, %p353
      %p355 = scmp.ne.s32.totalorder %s346, %s347
      %p356 = scmp.eq.s32.totalorder %s44, 0
      %p357 = por %p355, %p356
      %p358 = scmp.ne.s32.totalorder %s346, %s347
      %p359 = scmp.eq.s32.totalorder %s45, 5
      %p360 = por %p358, %p359
      %p362 = scmp.ne.s32.totalorder %s347, %s361
      %p363 = scmp.eq.s32.totalorder %s45, 0
      %p364 = por %p362, %p363
      %s366 = sadd.s32 %s365, 1
      %p369 = scmp.eq.s32.totalorder %s39, 5
      %p370 = scmp.ne.s32.totalorder %s365, %s367
      %p371 = scmp.eq.s32.totalorder %s39, 0
      %p372 = por %p370, %p371
      %p373 = scmp.ne.s32.totalorder %s365, %s367
      %p374 = scmp.eq.s32.totalorder %s44, 5
      %p375 = por %p373, %p374
      %p376 = scmp.ne.s32.totalorder %s367, %s368
      %p377 = scmp.eq.s32.totalorder %s44, 0
      %p378 = por %p376, %p377
      %p379 = scmp.ne.s32.totalorder %s367, %s368
      %p380 = scmp.eq.s32.totalorder %s45, 5
      %p381 = por %p379, %p380
      %p383 = scmp.ne.s32.totalorder %s368, %s382
      %p384 = scmp.eq.s32.totalorder %s45, 0
      %p385 = por %p383, %p384
      %s387 = sadd.s32 %s386, 1
      %p390 = scmp.eq.s32.totalorder %s39, 5
      %p391 = scmp.ne.s32.totalorder %s386, %s388
      %p392 = scmp.eq.s32.totalorder %s39, 0
      %p393 = por %p391, %p392
      %p394 = scmp.ne.s32.totalorder %s386, %s388
      %p395 = scmp.eq.s32.totalorder %s44, 5
      %p396 = por %p394, %p395
      %p397 = scmp.ne.s32.totalorder %s388, %s389
      %p398 = scmp.eq.s32.totalorder %s44, 0
      %p399 = por %p397, %p398
      %p400 = scmp.ne.s32.totalorder %s388, %s389
      %p401 = scmp.eq.s32.totalorder %s45, 5
      %p402 = por %p400, %p401
      %p404 = scmp.ne.s32.totalorder %s389, %s403
      %p405 = scmp.eq.s32.totalorder %s45, 0
      %p406 = por %p404, %p405
      %s408 = sadd.s32 %s407, 1
      %p411 = scmp.eq.s32.totalorder %s39, 5
      %p412 = scmp.ne.s32.totalorder %s407, %s409
      %p413 = scmp.eq.s32.totalorder %s39, 0
      %p414 = por %p412, %p413
      %p415 = scmp.ne.s32.totalorder %s407, %s409
      %p416 = scmp.eq.s32.totalorder %s44, 5
      %p417 = por %p415, %p416
      %p418 = scmp.ne.s32.totalorder %s409, %s410
      %p419 = scmp.eq.s32.totalorder %s44, 0
      %p420 = por %p418, %p419
      %p421 = scmp.ne.s32.totalorder %s409, %s410
      %p422 = scmp.eq.s32.totalorder %s45, 5
      %p423 = por %p421, %p422
      %p425 = scmp.ne.s32.totalorder %s410, %s424
      %p426 = scmp.eq.s32.totalorder %s45, 0
      %p427 = por %p425, %p426
      %s428 = ssub.s32 %s46, %s58
      %p429 = scmp.eq.s32.totalorder %s428, 0
      %s431 = sadd.s32 %s430, 1
      %s432 = scalar_select %p429, %s430, %s431
      %p435 = pneg %p429
      %p436 = scmp.eq.s32.totalorder %s39, 5
      %p437 = por %p435, %p436
      %p438 = scmp.ne.s32.totalorder %s430, %s433
      %p439 = scmp.eq.s32.totalorder %s39, 0
      %p440 = por %p438, %p439
      %p441 = scmp.ne.s32.totalorder %s430, %s433
      %p442 = scmp.eq.s32.totalorder %s44, 5
      %p443 = por %p441, %p442
      %p444 = scmp.ne.s32.totalorder %s433, %s434
      %p445 = scmp.eq.s32.totalorder %s44, 0
      %p446 = por %p444, %p445
      %p447 = scmp.ne.s32.totalorder %s433, %s434
      %p448 = scmp.eq.s32.totalorder %s45, 5
      %p449 = por %p447, %p448
      %p451 = scmp.ne.s32.totalorder %s434, %s450
      %p452 = scmp.eq.s32.totalorder %s45, 0
      %p453 = por %p451, %p452
      %p454 = scmp.le.s32.totalorder 1, %s39
      %p455 = scmp.lt.s32.totalorder %s39, 7
      %p456 = pnand %p454, %p455
      %p457 = pneg %p456
      // Predicated region
      $region9: #{tpu_custom_call.1} parent=5 // pred_check
        _
      $region10: #{tpu_custom_call.1} parent=5 // pred_check_branch
        %459 = sbr.rel (%p456) target = $region12
      $region11: #{tpu_custom_call.1} parent=5 // pred_region
        %s460 = ssub.s32 %s39, 1
        // Predicated region
        $region13: #{tpu_custom_call.1} parent=11 // pred_check
          %p461 = pneg %p126
        $region14: #{tpu_custom_call.1} parent=11 // pred_check_branch
          %463 = sbr.rel (%p461) target = $region16
        $region15: #{tpu_custom_call.1} parent=11 // pred_region
          %s465 = ssub.s32 768, 768
          %466 = vsyncadd [#allocation7], %s465
          %s467 = sshll.u32 [#allocation8], 4
          %s468 = int_to_ptr.vmem [resolvable:$true] %s467
          %473 = dma.hbm_to_vmem [thread:$0]  %s2, 768, %s468, [#allocation7], 128, 128, 8
        $region16: #{tpu_custom_call.1} parent=11 // pred_fallthru
          _
        // Predicated region
        $region17: #{tpu_custom_call.1} parent=11 // pred_check
          %p474 = pneg %p147
        $region18: #{tpu_custom_call.1} parent=11 // pred_check_branch
          %476 = sbr.rel (%p474) target = $region20
        $region19: #{tpu_custom_call.1} parent=11 // pred_region
          %s478 = ssub.s32 48, 48
          %479 = vsyncadd [#allocation10], %s478
          %s480 = sshll.u32 [#allocation9], 4
          %s481 = int_to_ptr.vmem [resolvable:$true] %s480
          %486 = dma.hbm_to_vmem [thread:$0]  %s3, 48, %s481, [#allocation10], 16, 16, 1
        $region20: #{tpu_custom_call.1} parent=11 // pred_fallthru
          _
        // Predicated region
        $region21: #{tpu_custom_call.1} parent=11 // pred_check
          %p487 = pneg %p168
        $region22: #{tpu_custom_call.1} parent=11 // pred_check_branch
          %489 = sbr.rel (%p487) target = $region24
        $region23: #{tpu_custom_call.1} parent=11 // pred_region
          %s491 = ssub.s32 1536, 1536
          %492 = vsyncadd [#allocation10], %s491
          %s493 = sshll.u32 [#allocation11], 4
          %s494 = int_to_ptr.vmem [resolvable:$true] %s493
          %499 = dma.hbm_to_vmem [thread:$0]  %s4, 1536, %s494, [#allocation10], 128, 128, 8
        $region24: #{tpu_custom_call.1} parent=11 // pred_fallthru
          _
        // Predicated region
        $region25: #{tpu_custom_call.1} parent=11 // pred_check
          %p500 = pneg %p189
        $region26: #{tpu_custom_call.1} parent=11 // pred_check_branch
          %502 = sbr.rel (%p500) target = $region28
        $region27: #{tpu_custom_call.1} parent=11 // pred_region
          %s504 = ssub.s32 48, 48
          %505 = vsyncadd [#allocation13], %s504
          %s506 = sshll.u32 [#allocation12], 4
          %s507 = int_to_ptr.vmem [resolvable:$true] %s506
          %512 = dma.hbm_to_vmem [thread:$0]  %s5, 48, %s507, [#allocation13], 16, 16, 1
        $region28: #{tpu_custom_call.1} parent=11 // pred_fallthru
          _
        // Predicated region
        $region29: #{tpu_custom_call.1} parent=11 // pred_check
          %p513 = pneg %p210
        $region30: #{tpu_custom_call.1} parent=11 // pred_check_branch
          %515 = sbr.rel (%p513) target = $region32
        $region31: #{tpu_custom_call.1} parent=11 // pred_region
          %s517 = ssub.s32 128, 128
          %518 = vsyncadd [#allocation13], %s517
          %s520 = sshll.u32 [#allocation14], 4
          %s521 = int_to_ptr.vmem [resolvable:$true] %s520
          %523 = dma.hbm_to_vmem [thread:$0]  %s6, 128, %s521, [#allocation13]
        $region32: #{tpu_custom_call.1} parent=11 // pred_fallthru
          _
        // Predicated region
        $region33: #{tpu_custom_call.1} parent=11 // pred_check
          %p524 = pneg %p231
        $region34: #{tpu_custom_call.1} parent=11 // pred_check_branch
          %526 = sbr.rel (%p524) target = $region36
        $region35: #{tpu_custom_call.1} parent=11 // pred_region
          %s528 = ssub.s32 16, 16
          %529 = vsyncadd [#allocation16], %s528
          %s531 = sshll.u32 [#allocation15], 4
          %s532 = int_to_ptr.vmem [resolvable:$true] %s531
          %534 = dma.hbm_to_vmem [thread:$0]  %s7, 16, %s532, [#allocation16]
        $region36: #{tpu_custom_call.1} parent=11 // pred_fallthru
          _
        // Predicated region
        $region37: #{tpu_custom_call.1} parent=11 // pred_check
          %p535 = pneg %p252
        $region38: #{tpu_custom_call.1} parent=11 // pred_check_branch
          %537 = sbr.rel (%p535) target = $region40
        $region39: #{tpu_custom_call.1} parent=11 // pred_region
          %s539 = ssub.s32 512, 512
          %540 = vsyncadd [#allocation16], %s539
          %s541 = sshll.u32 [#allocation17], 4
          %s542 = int_to_ptr.vmem [resolvable:$true] %s541
          %547 = dma.hbm_to_vmem [thread:$0]  %s8, 512, %s542, [#allocation16], 128, 128, 8
        $region40: #{tpu_custom_call.1} parent=11 // pred_fallthru
          _
        // Predicated region
        $region41: #{tpu_custom_call.1} parent=11 // pred_check
          %p548 = pneg %p273
        $region42: #{tpu_custom_call.1} parent=11 // pred_check_branch
          %550 = sbr.rel (%p548) target = $region44
        $region43: #{tpu_custom_call.1} parent=11 // pred_region
          %s552 = ssub.s32 16, 16
          %553 = vsyncadd [#allocation19], %s552
          %s555 = sshll.u32 [#allocation18], 4
          %s556 = int_to_ptr.vmem [resolvable:$true] %s555
          %558 = dma.hbm_to_vmem [thread:$0]  %s9, 16, %s556, [#allocation19]
        $region44: #{tpu_custom_call.1} parent=11 // pred_fallthru
          _
        // Predicated region
        $region45: #{tpu_custom_call.1} parent=11 // pred_check
          %p559 = pneg %p294
        $region46: #{tpu_custom_call.1} parent=11 // pred_check_branch
          %561 = sbr.rel (%p559) target = $region48
        $region47: #{tpu_custom_call.1} parent=11 // pred_region
          %s563 = ssub.s32 512, 512
          %564 = vsyncadd [#allocation19], %s563
          %s565 = sshll.u32 [#allocation20], 4
          %s566 = int_to_ptr.vmem [resolvable:$true] %s565
          %571 = dma.hbm_to_vmem [thread:$0]  %s10, 512, %s566, [#allocation19], 128, 128, 8
        $region48: #{tpu_custom_call.1} parent=11 // pred_fallthru
          _
        // Predicated region
        $region49: #{tpu_custom_call.1} parent=11 // pred_check
          %p572 = pneg %p315
        $region50: #{tpu_custom_call.1} parent=11 // pred_check_branch
          %574 = sbr.rel (%p572) target = $region52
        $region51: #{tpu_custom_call.1} parent=11 // pred_region
          %s576 = ssub.s32 16, 16
          %577 = vsyncadd [#allocation22], %s576
          %s579 = sshll.u32 [#allocation21], 4
          %s580 = int_to_ptr.vmem [resolvable:$true] %s579
          %582 = dma.hbm_to_vmem [thread:$0]  %s11, 16, %s580, [#allocation22]
        $region52: #{tpu_custom_call.1} parent=11 // pred_fallthru
          _
        // Predicated region
        $region53: #{tpu_custom_call.1} parent=11 // pred_check
          %p583 = pneg %p336
        $region54: #{tpu_custom_call.1} parent=11 // pred_check_branch
          %585 = sbr.rel (%p583) target = $region56
        $region55: #{tpu_custom_call.1} parent=11 // pred_region
          %s587 = ssub.s32 512, 512
          %588 = vsyncadd [#allocation22], %s587
          %s589 = sshll.u32 [#allocation23], 4
          %s590 = int_to_ptr.vmem [resolvable:$true] %s589
          %595 = dma.hbm_to_vmem [thread:$0]  %s12, 512, %s590, [#allocation22], 128, 128, 8
        $region56: #{tpu_custom_call.1} parent=11 // pred_fallthru
          _
        // Predicated region
        $region57: #{tpu_custom_call.1} parent=11 // pred_check
          %p596 = pneg %p357
        $region58: #{tpu_custom_call.1} parent=11 // pred_check_branch
          %598 = sbr.rel (%p596) target = $region60
        $region59: #{tpu_custom_call.1} parent=11 // pred_region
          %s600 = ssub.s32 512, 512
          %601 = vsyncadd [#allocation25], %s600
          %s602 = sshll.u32 [#allocation24], 4
          %s603 = int_to_ptr.vmem [resolvable:$true] %s602
          %608 = dma.hbm_to_vmem [thread:$0]  %s13, 512, %s603, [#allocation25], 128, 128, 8
        $region60: #{tpu_custom_call.1} parent=11 // pred_fallthru
          _
        // Predicated region
        $region61: #{tpu_custom_call.1} parent=11 // pred_check
          %p609 = pneg %p378
        $region62: #{tpu_custom_call.1} parent=11 // pred_check_branch
          %611 = sbr.rel (%p609) target = $region64
        $region63: #{tpu_custom_call.1} parent=11 // pred_region
          %s613 = ssub.s32 16, 16
          %614 = vsyncadd [#allocation25], %s613
          %s616 = sshll.u32 [#allocation26], 4
          %s617 = int_to_ptr.vmem [resolvable:$true] %s616
          %619 = dma.hbm_to_vmem [thread:$0]  %s14, 16, %s617, [#allocation25]
        $region64: #{tpu_custom_call.1} parent=11 // pred_fallthru
          _
        // Predicated region
        $region65: #{tpu_custom_call.1} parent=11 // pred_check
          %p620 = pneg %p399
        $region66: #{tpu_custom_call.1} parent=11 // pred_check_branch
          %622 = sbr.rel (%p620) target = $region68
        $region67: #{tpu_custom_call.1} parent=11 // pred_region
          %s624 = ssub.s32 512, 512
          %625 = vsyncadd [#allocation28], %s624
          %s626 = sshll.u32 [#allocation27], 4
          %s627 = int_to_ptr.vmem [resolvable:$true] %s626
          %632 = dma.hbm_to_vmem [thread:$0]  %s15, 512, %s627, [#allocation28], 128, 128, 8
        $region68: #{tpu_custom_call.1} parent=11 // pred_fallthru
          _
        // Predicated region
        $region69: #{tpu_custom_call.1} parent=11 // pred_check
          %p633 = pneg %p420
        $region70: #{tpu_custom_call.1} parent=11 // pred_check_branch
          %635 = sbr.rel (%p633) target = $region72
        $region71: #{tpu_custom_call.1} parent=11 // pred_region
          %s637 = ssub.s32 16, 16
          %638 = vsyncadd [#allocation28], %s637
          %s640 = sshll.u32 [#allocation29], 4
          %s641 = int_to_ptr.vmem [resolvable:$true] %s640
          %643 = dma.hbm_to_vmem [thread:$0]  %s16, 16, %s641, [#allocation28]
        $region72: #{tpu_custom_call.1} parent=11 // pred_fallthru
          _
      $region12: #{tpu_custom_call.1} parent=5 // pred_fallthru
        _
      %p644 = scmp.lt.s32.totalorder %s39, 6
      // Predicated region
      $region73: #{tpu_custom_call.1} parent=5 // pred_check
        %p645 = pneg %p644
      $region74: #{tpu_custom_call.1} parent=5 // pred_check_branch
        %647 = sbr.rel (%p645) target = $region76
      $region75: #{tpu_custom_call.1} parent=5 // pred_region
        // Predicated region
        $region77: #{tpu_custom_call.1} parent=75 // pred_check
          %p648 = pneg %p73
        $region78: #{tpu_custom_call.1} parent=75 // pred_check_branch
          %650 = sbr.rel (%p648) target = $region80
        $region79: #{tpu_custom_call.1} parent=75 // pred_region
          %s651 = sand.u32 %s63, 1
          %s652 = scalar_lea.sflag [#allocation4], %s651
          %s653 = sand.u32 %s63, 1
          %s654 = smul.addr %s653, 32
          %s655 = scalar_lea.vmem [#allocation3], %s654
          %s656 = smul.u32 4, %s47
          %s658 = ssub.s32 512, 512
          %659 = vsyncadd %s652, %s658
          %s660 = smul.addr %s656, 2
          %s661 = sadd.s32 %s46, %s660
          %s662 = smul.addr %s661, 128
          %s663 = scalar_lea.hbm %s0, %s662
          %s664 = sshll.u32 %s655, 4
          %s665 = int_to_ptr.vmem [resolvable:$true] %s664
          %670 = dma.hbm_to_vmem [thread:$0]  %s663, 512, %s665, %s652, 256, 128, 8
        $region80: #{tpu_custom_call.1} parent=75 // pred_fallthru
          _
        // Predicated region
        $region81: #{tpu_custom_call.1} parent=75 // pred_check
          %p671 = pneg %p99
        $region82: #{tpu_custom_call.1} parent=75 // pred_check_branch
          %673 = sbr.rel (%p671) target = $region84
        $region83: #{tpu_custom_call.1} parent=75 // pred_region
          %s674 = sand.u32 %s39, 1
          %s675 = scalar_lea.sflag [#allocation7], %s674
          %s676 = sand.u32 %s89, 1
          %s677 = smul.addr %s676, 8
          %s678 = scalar_lea.vmem [#allocation6], %s677
          %s680 = ssub.s32 128, 128
          %681 = vsyncadd %s675, %s680
          %s682 = smul.addr %s46, 128
          %s683 = scalar_lea.hbm %s1, %s682
          %s685 = sshll.u32 %s678, 4
          %s686 = int_to_ptr.vmem [resolvable:$true] %s685
          %688 = dma.hbm_to_vmem [thread:$0]  %s683, 128, %s686, %s675
        $region84: #{tpu_custom_call.1} parent=75 // pred_fallthru
          _
      $region76: #{tpu_custom_call.1} parent=5 // pred_fallthru
        _
      %p689 = scmp.le.s32.totalorder 1, %s39
      %p690 = scmp.lt.s32.totalorder %s39, 7
      %p691 = pnand %p689, %p690
      %p692 = pneg %p691
      // Predicated region
      $region85: #{tpu_custom_call.1} parent=5 // pred_check
        _
      $region86: #{tpu_custom_call.1} parent=5 // pred_check_branch
        %694 = sbr.rel (%p691) target = $region88
      $region87: #{tpu_custom_call.1} parent=5 // pred_region
        %s695 = ssub.s32 %s39, 1
        %s696 = sand.u32 %s66, 1
        %s697 = scalar_lea.sflag [#allocation4], %s696
        %s698 = sand.u32 %s66, 1
        %s699 = smul.addr %s698, 32
        %s700 = scalar_lea.vmem [#allocation3], %s699
        // Predicated region
        $region89: #{tpu_custom_call.1} parent=87 // pred_check
          %p701 = pneg %p79
        $region90: #{tpu_custom_call.1} parent=87 // pred_check_branch
          %703 = sbr.rel (%p701) target = $region92
        $region91: #{tpu_custom_call.1} parent=87 // pred_region
          %704 = dma.done %s697, 512
        $region92: #{tpu_custom_call.1} parent=87 // pred_fallthru
          _
        %s705 = sand.u32 %s44, 1
        %s706 = scalar_lea.sflag [#allocation7], %s705
        %s707 = sand.u32 %s92, 1
        %s708 = smul.addr %s707, 8
        %s709 = scalar_lea.vmem [#allocation6], %s708
        // Predicated region
        $region93: #{tpu_custom_call.1} parent=87 // pred_check
          %p710 = pneg %p105
        $region94: #{tpu_custom_call.1} parent=87 // pred_check_branch
          %712 = sbr.rel (%p710) target = $region96
        $region95: #{tpu_custom_call.1} parent=87 // pred_region
          %713 = dma.done %s706, 128
        $region96: #{tpu_custom_call.1} parent=87 // pred_fallthru
          _
        // Predicated region
        $region97: #{tpu_custom_call.1} parent=87 // pred_check
          %p714 = pneg %p126
        $region98: #{tpu_custom_call.1} parent=87 // pred_check_branch
          %716 = sbr.rel (%p714) target = $region100
        $region99: #{tpu_custom_call.1} parent=87 // pred_region
          %717 = dma.done [#allocation7], 768
        $region100: #{tpu_custom_call.1} parent=87 // pred_fallthru
          _
        // Predicated region
        $region101: #{tpu_custom_call.1} parent=87 // pred_check
          %p718 = pneg %p147
        $region102: #{tpu_custom_call.1} parent=87 // pred_check_branch
          %720 = sbr.rel (%p718) target = $region104
        $region103: #{tpu_custom_call.1} parent=87 // pred_region
          %721 = dma.done [#allocation10], 48
        $region104: #{tpu_custom_call.1} parent=87 // pred_fallthru
          _
        // Predicated region
        $region105: #{tpu_custom_call.1} parent=87 // pred_check
          %p722 = pneg %p168
        $region106: #{tpu_custom_call.1} parent=87 // pred_check_branch
          %724 = sbr.rel (%p722) target = $region108
        $region107: #{tpu_custom_call.1} parent=87 // pred_region
          %725 = dma.done [#allocation10], 1536
        $region108: #{tpu_custom_call.1} parent=87 // pred_fallthru
          _
        // Predicated region
        $region109: #{tpu_custom_call.1} parent=87 // pred_check
          %p726 = pneg %p189
        $region110: #{tpu_custom_call.1} parent=87 // pred_check_branch
          %728 = sbr.rel (%p726) target = $region112
        $region111: #{tpu_custom_call.1} parent=87 // pred_region
          %729 = dma.done [#allocation13], 48
        $region112: #{tpu_custom_call.1} parent=87 // pred_fallthru
          _
        // Predicated region
        $region113: #{tpu_custom_call.1} parent=87 // pred_check
          %p730 = pneg %p210
        $region114: #{tpu_custom_call.1} parent=87 // pred_check_branch
          %732 = sbr.rel (%p730) target = $region116
        $region115: #{tpu_custom_call.1} parent=87 // pred_region
          %733 = dma.done [#allocation13], 128
        $region116: #{tpu_custom_call.1} parent=87 // pred_fallthru
          _
        // Predicated region
        $region117: #{tpu_custom_call.1} parent=87 // pred_check
          %p734 = pneg %p231
        $region118: #{tpu_custom_call.1} parent=87 // pred_check_branch
          %736 = sbr.rel (%p734) target = $region120
        $region119: #{tpu_custom_call.1} parent=87 // pred_region
          %737 = dma.done [#allocation16], 16
        $region120: #{tpu_custom_call.1} parent=87 // pred_fallthru
          _
        // Predicated region
        $region121: #{tpu_custom_call.1} parent=87 // pred_check
          %p738 = pneg %p252
        $region122: #{tpu_custom_call.1} parent=87 // pred_check_branch
          %740 = sbr.rel (%p738) target = $region124
        $region123: #{tpu_custom_call.1} parent=87 // pred_region
          %741 = dma.done [#allocation16], 512
        $region124: #{tpu_custom_call.1} parent=87 // pred_fallthru
          _
        // Predicated region
        $region125: #{tpu_custom_call.1} parent=87 // pred_check
          %p742 = pneg %p273
        $region126: #{tpu_custom_call.1} parent=87 // pred_check_branch
          %744 = sbr.rel (%p742) target = $region128
        $region127: #{tpu_custom_call.1} parent=87 // pred_region
          %745 = dma.done [#allocation19], 16
        $region128: #{tpu_custom_call.1} parent=87 // pred_fallthru
          _
        // Predicated region
        $region129: #{tpu_custom_call.1} parent=87 // pred_check
          %p746 = pneg %p294
        $region130: #{tpu_custom_call.1} parent=87 // pred_check_branch
          %748 = sbr.rel (%p746) target = $region132
        $region131: #{tpu_custom_call.1} parent=87 // pred_region
          %749 = dma.done [#allocation19], 512
        $region132: #{tpu_custom_call.1} parent=87 // pred_fallthru
          _
        // Predicated region
        $region133: #{tpu_custom_call.1} parent=87 // pred_check
          %p750 = pneg %p315
        $region134: #{tpu_custom_call.1} parent=87 // pred_check_branch
          %752 = sbr.rel (%p750) target = $region136
        $region135: #{tpu_custom_call.1} parent=87 // pred_region
          %753 = dma.done [#allocation22], 16
        $region136: #{tpu_custom_call.1} parent=87 // pred_fallthru
          _
        // Predicated region
        $region137: #{tpu_custom_call.1} parent=87 // pred_check
          %p754 = pneg %p336
        $region138: #{tpu_custom_call.1} parent=87 // pred_check_branch
          %756 = sbr.rel (%p754) target = $region140
        $region139: #{tpu_custom_call.1} parent=87 // pred_region
          %757 = dma.done [#allocation22], 512
        $region140: #{tpu_custom_call.1} parent=87 // pred_fallthru
          _
        // Predicated region
        $region141: #{tpu_custom_call.1} parent=87 // pred_check
          %p758 = pneg %p357
        $region142: #{tpu_custom_call.1} parent=87 // pred_check_branch
          %760 = sbr.rel (%p758) target = $region144
        $region143: #{tpu_custom_call.1} parent=87 // pred_region
          %761 = dma.done [#allocation25], 512
        $region144: #{tpu_custom_call.1} parent=87 // pred_fallthru
          _
        // Predicated region
        $region145: #{tpu_custom_call.1} parent=87 // pred_check
          %p762 = pneg %p378
        $region146: #{tpu_custom_call.1} parent=87 // pred_check_branch
          %764 = sbr.rel (%p762) target = $region148
        $region147: #{tpu_custom_call.1} parent=87 // pred_region
          %765 = dma.done [#allocation25], 16
        $region148: #{tpu_custom_call.1} parent=87 // pred_fallthru
          _
        // Predicated region
        $region149: #{tpu_custom_call.1} parent=87 // pred_check
          %p766 = pneg %p399
        $region150: #{tpu_custom_call.1} parent=87 // pred_check_branch
          %768 = sbr.rel (%p766) target = $region152
        $region151: #{tpu_custom_call.1} parent=87 // pred_region
          %769 = dma.done [#allocation28], 512
        $region152: #{tpu_custom_call.1} parent=87 // pred_fallthru
          _
        // Predicated region
        $region153: #{tpu_custom_call.1} parent=87 // pred_check
          %p770 = pneg %p420
        $region154: #{tpu_custom_call.1} parent=87 // pred_check_branch
          %772 = sbr.rel (%p770) target = $region156
        $region155: #{tpu_custom_call.1} parent=87 // pred_region
          %773 = dma.done [#allocation28], 16
        $region156: #{tpu_custom_call.1} parent=87 // pred_fallthru
          _
        %s774 = sand.u32 %s66, 1
        %s775 = scalar_lea.sflag [#allocation4], %s774
        %s776 = sand.u32 %s66, 1
        %s777 = smul.addr %s776, 32
        %s778 = scalar_lea.vmem [#allocation3], %s777
        %p779 = pneg %p79
        %p780 = pneg %p76
        %s781 = sand.u32 %s44, 1
        %s782 = scalar_lea.sflag [#allocation7], %s781
        %s783 = sand.u32 %s92, 1
        %s784 = smul.addr %s783, 8
        %s785 = scalar_lea.vmem [#allocation6], %s784
        %p786 = pneg %p105
        %p787 = pneg %p102
        %p788 = pneg %p126
        %p789 = pneg %p123
        %p790 = pneg %p147
        %p791 = pneg %p144
        %p792 = pneg %p168
        %p793 = pneg %p165
        %p794 = pneg %p189
        %p795 = pneg %p186
        %p796 = pneg %p210
        %p797 = pneg %p207
        %p798 = pneg %p231
        %p799 = pneg %p228
        %p800 = pneg %p252
        %p801 = pneg %p249
        %p802 = pneg %p273
        %p803 = pneg %p270
        %p804 = pneg %p294
        %p805 = pneg %p291
        %p806 = pneg %p315
        %p807 = pneg %p312
        %p808 = pneg %p336
        %p809 = pneg %p333
        %p810 = pneg %p357
        %p811 = pneg %p354
        %p812 = pneg %p378
        %p813 = pneg %p375
        %p814 = pneg %p399
        %p815 = pneg %p396
        %p816 = pneg %p420
        %p817 = pneg %p417
        %p818 = pneg %p446
        %p819 = pneg %p443
        %s820 = sand.u32 %s433, 1
        %s821 = scalar_lea.sflag [#allocation5], %s820
        %s822 = sand.u32 %s433, 1
        %s823 = smul.addr %s822, 8
        %s824 = scalar_lea.vmem [#allocation30], %s823
        %s825 = smul.u32 4, %s49
        %p826 = scmp.eq.s32.totalorder %s49, 0
        // Predicated region
        $region157: #{tpu_custom_call.1} parent=87 // pred_check
          %p827 = pneg %p826
        $region158: #{tpu_custom_call.1} parent=87 // pred_check_branch
          %829 = sbr.rel (%p827) target = $region160
        $region159: #{tpu_custom_call.1} parent=87 // pred_region
          %vm830 = vcmask 261120
          %831 = vst.msk [vmem:[#allocation2] sm:$0xff] %vm830, 0.0
        $region160: #{tpu_custom_call.1} parent=87 // pred_fallthru
          _
        %v832 = vld [vmem:[#allocation8] sm:$0xff]
        %v833 = vld [vmem:[#allocation8 + $0x8] sm:$0x1]
        %s834 = scalar_lea.vmem [#allocation8], 16
        %v835 = vld [vmem:[%s834] sm:$0xff]
        %v836 = vld [vmem:[%s834 + $0x8] sm:$0x1]
        %s837 = scalar_lea.vmem [#allocation8], 32
        %v838 = vld [vmem:[%s837] sm:$0xff]
        %v839 = vld [vmem:[%s837 + $0x8] sm:$0x1]
        %v840 = vld [vmem:[#allocation11] sm:$0xff]
        %v841 = vld [vmem:[#allocation11 + $0x8] sm:$0xff]
        %v842 = vld [vmem:[#allocation11 + $0x10] sm:$0xff]
        %v843 = vld [vmem:[#allocation11 + $0x18] sm:$0xff]
        %s844 = scalar_lea.vmem [#allocation11], 32
        %v845 = vld [vmem:[%s844] sm:$0xff]
        %v846 = vld [vmem:[%s844 + $0x8] sm:$0xff]
        %v847 = vld [vmem:[%s844 + $0x10] sm:$0xff]
        %v848 = vld [vmem:[%s844 + $0x18] sm:$0xff]
        %s849 = scalar_lea.vmem [#allocation11], 64
        %v850 = vld [vmem:[%s849] sm:$0xff]
        %v851 = vld [vmem:[%s849 + $0x8] sm:$0xff]
        %v852 = vld [vmem:[%s849 + $0x10] sm:$0xff]
        %v853 = vld [vmem:[%s849 + $0x18] sm:$0xff]
        %v854 = vld [vmem:[#allocation9] sm:$0x1]
        %v856 = vlaneseq
        %v857 = vshrl.u32 %v856, 7
        %v858 = vsub.s32 0, %v857
        %v859 = vrot.slane %v854, %v858
        %s861 = scalar_lea.vmem [#allocation9], 1
        %v862 = vld [vmem:[%s861] sm:$0x1]
        %v864 = vlaneseq
        %v865 = vshrl.u32 %v864, 7
        %v866 = vsub.s32 0, %v865
        %v867 = vrot.slane %v862, %v866
        %s869 = scalar_lea.vmem [#allocation9], 2
        %v870 = vld [vmem:[%s869] sm:$0x1]
        %v872 = vlaneseq
        %v873 = vshrl.u32 %v872, 7
        %v874 = vsub.s32 0, %v873
        %v875 = vrot.slane %v870, %v874
        %v877 = vld [vmem:[#allocation12] sm:$0x1]
        %v879 = vlaneseq
        %v880 = vshrl.u32 %v879, 7
        %v881 = vsub.s32 0, %v880
        %v882 = vrot.slane %v877, %v881
        %s884 = scalar_lea.vmem [#allocation12], 1
        %v885 = vld [vmem:[%s884] sm:$0x1]
        %v887 = vlaneseq
        %v888 = vshrl.u32 %v887, 7
        %v889 = vsub.s32 0, %v888
        %v890 = vrot.slane %v885, %v889
        %s892 = scalar_lea.vmem [#allocation12], 2
        %v893 = vld [vmem:[%s892] sm:$0x1]
        %v895 = vlaneseq
        %v896 = vshrl.u32 %v895, 7
        %v897 = vsub.s32 0, %v896
        %v898 = vrot.slane %v893, %v897
        %v900 = vld [vmem:[#allocation2] sm:$0xff]
        %v901 = vld [vmem:[%s700] sm:$0xff]
        %vm902 = vcmask 64544
        %v903 = vsel %vm902, %v901, -inf
        %904 = vmax.xlane.f32.xlu0 %v903
        %v905 = vpop.xlane.xlu0 %904
        %vm906 = vcmp.gt.f32.partialorder %v905, 0.5
        %v907 = vsel %vm906, 1, 0
        %v908 = vcvt.s32.f32 %v907
        %vm909 = vcmask 72704
        %v911 = vsel %vm909, %v901, 0
        %vm913 = vcmask 1040384
        %v915 = vsel %vm913, %v833, 0
        %917 = vmatprep.subr.mxu0 0.0
        %918 = vmatpush1.msra.mxu0 %v832
        %919 = vmatprep.subr.mxu0 0.0
        %920 = vmatpush1.msra.mxu0 %v915
        %921 = vmatprep.subr.mxu0 0.0
        %922 = vmatpush1.msra.mxu0 0.0
        %923 = vmatprep.subr.mxu0 0.0
        %924 = vmatpush1.msra.mxu0 0.0
        %925 = vmatprep.subr.mxu0 0.0
        %926 = vmatpush1.msra.mxu0 0.0
        %927 = vmatprep.subr.mxu0 0.0
        %928 = vmatpush1.msra.mxu0 0.0
        %929 = vmatprep.subr.mxu0 0.0
        %930 = vmatpush1.msra.mxu0 0.0
        %931 = vmatprep.subr.mxu0 0.0
        %932 = vmatpush1.msra.mxu0 0.0
        %933 = vmatprep.subr.mxu0 0.0
        %934 = vmatpush1.msra.mxu0 0.0
        %935 = vmatprep.subr.mxu0 0.0
        %936 = vmatpush1.msra.mxu0 0.0
        %937 = vmatprep.subr.mxu0 0.0
        %938 = vmatpush1.msra.mxu0 0.0
        %939 = vmatprep.subr.mxu0 0.0
        %940 = vmatpush1.msra.mxu0 0.0
        %941 = vmatprep.subr.mxu0 0.0
        %942 = vmatpush1.msra.mxu0 0.0
        %943 = vmatprep.subr.mxu0 0.0
        %944 = vmatpush1.msra.mxu0 0.0
        %945 = vmatprep.subr.mxu0 0.0
        %946 = vmatpush1.msra.mxu0 0.0
        %947 = vmatprep.subr.mxu0 0.0
        %948 = vmatpush1.msra.mxu0 0.0
        %949 = vmatprep.subr.mxu0 0.0
        %950 = vmatpush1.msra.mxu0 0.0
        %951 = vmatprep.subr.mxu0 0.0
        %952 = vmatpush1.msra.mxu0 0.0
        %953 = vmatprep.subr.mxu0 0.0
        %954 = vmatpush1.msra.mxu0 0.0
        %955 = vmatprep.subr.mxu0 0.0
        %956 = vmatpush1.msra.mxu0 0.0
        %957 = vmatprep.subr.mxu0 0.0
        %958 = vmatpush1.msra.mxu0 0.0
        %959 = vmatprep.subr.mxu0 0.0
        %960 = vmatpush1.msra.mxu0 0.0
        %961 = vmatprep.subr.mxu0 0.0
        %962 = vmatpush1.msra.mxu0 0.0
        %963 = vmatprep.subr.mxu0 0.0
        %964 = vmatpush1.msra.mxu0 0.0
        %965 = vmatprep.subr.mxu0 0.0
        %966 = vmatpush1.msra.mxu0 0.0
        %967 = vmatprep.subr.mxu0 0.0
        %968 = vmatpush1.msra.mxu0 0.0
        %969 = vmatprep.subr.mxu0 0.0
        %970 = vmatpush1.msra.mxu0 0.0
        %971 = vmatprep.subr.mxu0 0.0
        %972 = vmatpush1.msra.mxu0 0.0
        %973 = vmatprep.subr.mxu0 0.0
        %974 = vmatpush1.msra.mxu0 0.0
        %975 = vmatprep.subr.mxu0 0.0
        %976 = vmatpush1.msra.mxu0 0.0
        %977 = vmatprep.subr.mxu0 0.0
        %978 = vmatpush1.msra.mxu0 0.0
        %979 = vmatprep.subr.mxu0 0.0
        %980 = vmatpush1.msra.mxu0 0.0
        %981 = vmatprep.mubr.f32.mxu0 0.0
        %982 = vmatmul.mubr.f32.gmra.mrb[0].mxu0 %v911
        %v983 = vpop.f32.mrb[0].mxu0
        %v984 = vadd.f32 %v859, %v983
        %v985 = vpop.f32.mrb[0].mxu0
        %986 = vdwg.mxu0
        %v988 = vsel %vm913, %v836, 0
        %990 = vmatprep.subr.mxu0 0.0
        %991 = vmatpush1.msra.mxu0 %v835
        %992 = vmatprep.subr.mxu0 0.0
        %993 = vmatpush1.msra.mxu0 %v988
        %994 = vmatprep.subr.mxu0 0.0
        %995 = vmatpush1.msra.mxu0 0.0
        %996 = vmatprep.subr.mxu0 0.0
        %997 = vmatpush1.msra.mxu0 0.0
        %998 = vmatprep.subr.mxu0 0.0
        %999 = vmatpush1.msra.mxu0 0.0
        %1000 = vmatprep.subr.mxu0 0.0
        %1001 = vmatpush1.msra.mxu0 0.0
        %1002 = vmatprep.subr.mxu0 0.0
        %1003 = vmatpush1.msra.mxu0 0.0
        %1004 = vmatprep.subr.mxu0 0.0
        %1005 = vmatpush1.msra.mxu0 0.0
        %1006 = vmatprep.subr.mxu0 0.0
        %1007 = vmatpush1.msra.mxu0 0.0
        %1008 = vmatprep.subr.mxu0 0.0
        %1009 = vmatpush1.msra.mxu0 0.0
        %1010 = vmatprep.subr.mxu0 0.0
        %1011 = vmatpush1.msra.mxu0 0.0
        %1012 = vmatprep.subr.mxu0 0.0
        %1013 = vmatpush1.msra.mxu0 0.0
        %1014 = vmatprep.subr.mxu0 0.0
        %1015 = vmatpush1.msra.mxu0 0.0
        %1016 = vmatprep.subr.mxu0 0.0
        %1017 = vmatpush1.msra.mxu0 0.0
        %1018 = vmatprep.subr.mxu0 0.0
        %1019 = vmatpush1.msra.mxu0 0.0
        %1020 = vmatprep.subr.mxu0 0.0
        %1021 = vmatpush1.msra.mxu0 0.0
        %1022 = vmatprep.subr.mxu0 0.0
        %1023 = vmatpush1.msra.mxu0 0.0
        %1024 = vmatprep.subr.mxu0 0.0
        %1025 = vmatpush1.msra.mxu0 0.0
        %1026 = vmatprep.subr.mxu0 0.0
        %1027 = vmatpush1.msra.mxu0 0.0
        %1028 = vmatprep.subr.mxu0 0.0
        %1029 = vmatpush1.msra.mxu0 0.0
        %1030 = vmatprep.subr.mxu0 0.0
        %1031 = vmatpush1.msra.mxu0 0.0
        %1032 = vmatprep.subr.mxu0 0.0
        %1033 = vmatpush1.msra.mxu0 0.0
        %1034 = vmatprep.subr.mxu0 0.0
        %1035 = vmatpush1.msra.mxu0 0.0
        %1036 = vmatprep.subr.mxu0 0.0
        %1037 = vmatpush1.msra.mxu0 0.0
        %1038 = vmatprep.subr.mxu0 0.0
        %1039 = vmatpush1.msra.mxu0 0.0
        %1040 = vmatprep.subr.mxu0 0.0
        %1041 = vmatpush1.msra.mxu0 0.0
        %1042 = vmatprep.subr.mxu0 0.0
        %1043 = vmatpush1.msra.mxu0 0.0
        %1044 = vmatprep.subr.mxu0 0.0
        %1045 = vmatpush1.msra.mxu0 0.0
        %1046 = vmatprep.subr.mxu0 0.0
        %1047 = vmatpush1.msra.mxu0 0.0
        %1048 = vmatprep.subr.mxu0 0.0
        %1049 = vmatpush1.msra.mxu0 0.0
        %1050 = vmatprep.subr.mxu0 0.0
        %1051 = vmatpush1.msra.mxu0 0.0
        %1052 = vmatprep.subr.mxu0 0.0
        %1053 = vmatpush1.msra.mxu0 0.0
        %1054 = vmatprep.mubr.f32.mxu0 0.0
        %1055 = vmatmul.mubr.f32.gmra.mrb[0].mxu0 %v911
        %v1056 = vpop.f32.mrb[0].mxu0
        %v1057 = vadd.f32 %v867, %v1056
        %v1058 = vpop.f32.mrb[0].mxu0
        %1059 = vdwg.mxu0
        %v1061 = vsel %vm913, %v839, 0
        %1063 = vmatprep.subr.mxu0 0.0
        %1064 = vmatpush1.msra.mxu0 %v838
        %1065 = vmatprep.subr.mxu0 0.0
        %1066 = vmatpush1.msra.mxu0 %v1061
        %1067 = vmatprep.subr.mxu0 0.0
        %1068 = vmatpush1.msra.mxu0 0.0
        %1069 = vmatprep.subr.mxu0 0.0
        %1070 = vmatpush1.msra.mxu0 0.0
        %1071 = vmatprep.subr.mxu0 0.0
        %1072 = vmatpush1.msra.mxu0 0.0
        %1073 = vmatprep.subr.mxu0 0.0
        %1074 = vmatpush1.msra.mxu0 0.0
        %1075 = vmatprep.subr.mxu0 0.0
        %1076 = vmatpush1.msra.mxu0 0.0
        %1077 = vmatprep.subr.mxu0 0.0
        %1078 = vmatpush1.msra.mxu0 0.0
        %1079 = vmatprep.subr.mxu0 0.0
        %1080 = vmatpush1.msra.mxu0 0.0
        %1081 = vmatprep.subr.mxu0 0.0
        %1082 = vmatpush1.msra.mxu0 0.0
        %1083 = vmatprep.subr.mxu0 0.0
        %1084 = vmatpush1.msra.mxu0 0.0
        %1085 = vmatprep.subr.mxu0 0.0
        %1086 = vmatpush1.msra.mxu0 0.0
        %1087 = vmatprep.subr.mxu0 0.0
        %1088 = vmatpush1.msra.mxu0 0.0
        %1089 = vmatprep.subr.mxu0 0.0
        %1090 = vmatpush1.msra.mxu0 0.0
        %1091 = vmatprep.subr.mxu0 0.0
        %1092 = vmatpush1.msra.mxu0 0.0
        %1093 = vmatprep.subr.mxu0 0.0
        %1094 = vmatpush1.msra.mxu0 0.0
        %1095 = vmatprep.subr.mxu0 0.0
        %1096 = vmatpush1.msra.mxu0 0.0
        %1097 = vmatprep.subr.mxu0 0.0
        %1098 = vmatpush1.msra.mxu0 0.0
        %1099 = vmatprep.subr.mxu0 0.0
        %1100 = vmatpush1.msra.mxu0 0.0
        %1101 = vmatprep.subr.mxu0 0.0
        %1102 = vmatpush1.msra.mxu0 0.0
        %1103 = vmatprep.subr.mxu0 0.0
        %1104 = vmatpush1.msra.mxu0 0.0
        %1105 = vmatprep.subr.mxu0 0.0
        %1106 = vmatpush1.msra.mxu0 0.0
        %1107 = vmatprep.subr.mxu0 0.0
        %1108 = vmatpush1.msra.mxu0 0.0
        %1109 = vmatprep.subr.mxu0 0.0
        %1110 = vmatpush1.msra.mxu0 0.0
        %1111 = vmatprep.subr.mxu0 0.0
        %1112 = vmatpush1.msra.mxu0 0.0
        %1113 = vmatprep.subr.mxu0 0.0
        %1114 = vmatpush1.msra.mxu0 0.0
        %1115 = vmatprep.subr.mxu0 0.0
        %1116 = vmatpush1.msra.mxu0 0.0
        %1117 = vmatprep.subr.mxu0 0.0
        %1118 = vmatpush1.msra.mxu0 0.0
        %1119 = vmatprep.subr.mxu0 0.0
        %1120 = vmatpush1.msra.mxu0 0.0
        %1121 = vmatprep.subr.mxu0 0.0
        %1122 = vmatpush1.msra.mxu0 0.0
        %1123 = vmatprep.subr.mxu0 0.0
        %1124 = vmatpush1.msra.mxu0 0.0
        %1125 = vmatprep.subr.mxu0 0.0
        %1126 = vmatpush1.msra.mxu0 0.0
        %1127 = vmatprep.mubr.f32.mxu0 0.0
        %1128 = vmatmul.mubr.f32.gmra.mrb[0].mxu0 %v911
        %v1129 = vpop.f32.mrb[0].mxu0
        %v1130 = vadd.f32 %v875, %v1129
        %v1131 = vpop.f32.mrb[0].mxu0
        %1132 = vdwg.mxu0
        %s1133 = scalar_lea.vmem %s700, 8 [#allocation3]
        %v1134 = vld [vmem:[%s1133] sm:$0xff]
        %v1135 = vsel %vm902, %v1134, -inf
        %1136 = vmax.xlane.f32.xlu0 %v1135
        %v1137 = vpop.xlane.xlu0 %1136
        %vm1138 = vcmp.gt.f32.partialorder %v1137, 0.5
        %v1139 = vsel %vm1138, 1, 0
        %v1140 = vcvt.s32.f32 %v1139
        %v1142 = vsel %vm909, %v1134, 0
        %1144 = vmatprep.subr.mxu0 0.0
        %1145 = vmatpush1.msra.mxu0 %v832
        %1146 = vmatprep.subr.mxu0 0.0
        %1147 = vmatpush1.msra.mxu0 %v915
        %1148 = vmatprep.subr.mxu0 0.0
        %1149 = vmatpush1.msra.mxu0 0.0
        %1150 = vmatprep.subr.mxu0 0.0
        %1151 = vmatpush1.msra.mxu0 0.0
        %1152 = vmatprep.subr.mxu0 0.0
        %1153 = vmatpush1.msra.mxu0 0.0
        %1154 = vmatprep.subr.mxu0 0.0
        %1155 = vmatpush1.msra.mxu0 0.0
        %1156 = vmatprep.subr.mxu0 0.0
        %1157 = vmatpush1.msra.mxu0 0.0
        %1158 = vmatprep.subr.mxu0 0.0
        %1159 = vmatpush1.msra.mxu0 0.0
        %1160 = vmatprep.subr.mxu0 0.0
        %1161 = vmatpush1.msra.mxu0 0.0
        %1162 = vmatprep.subr.mxu0 0.0
        %1163 = vmatpush1.msra.mxu0 0.0
        %1164 = vmatprep.subr.mxu0 0.0
        %1165 = vmatpush1.msra.mxu0 0.0
        %1166 = vmatprep.subr.mxu0 0.0
        %1167 = vmatpush1.msra.mxu0 0.0
        %1168 = vmatprep.subr.mxu0 0.0
        %1169 = vmatpush1.msra.mxu0 0.0
        %1170 = vmatprep.subr.mxu0 0.0
        %1171 = vmatpush1.msra.mxu0 0.0
        %1172 = vmatprep.subr.mxu0 0.0
        %1173 = vmatpush1.msra.mxu0 0.0
        %1174 = vmatprep.subr.mxu0 0.0
        %1175 = vmatpush1.msra.mxu0 0.0
        %1176 = vmatprep.subr.mxu0 0.0
        %1177 = vmatpush1.msra.mxu0 0.0
        %1178 = vmatprep.subr.mxu0 0.0
        %1179 = vmatpush1.msra.mxu0 0.0
        %1180 = vmatprep.subr.mxu0 0.0
        %1181 = vmatpush1.msra.mxu0 0.0
        %1182 = vmatprep.subr.mxu0 0.0
        %1183 = vmatpush1.msra.mxu0 0.0
        %1184 = vmatprep.subr.mxu0 0.0
        %1185 = vmatpush1.msra.mxu0 0.0
        %1186 = vmatprep.subr.mxu0 0.0
        %1187 = vmatpush1.msra.mxu0 0.0
        %1188 = vmatprep.subr.mxu0 0.0
        %1189 = vmatpush1.msra.mxu0 0.0
        %1190 = vmatprep.subr.mxu0 0.0
        %1191 = vmatpush1.msra.mxu0 0.0
        %1192 = vmatprep.subr.mxu0 0.0
        %1193 = vmatpush1.msra.mxu0 0.0
        %1194 = vmatprep.subr.mxu0 0.0
        %1195 = vmatpush1.msra.mxu0 0.0
        %1196 = vmatprep.subr.mxu0 0.0
        %1197 = vmatpush1.msra.mxu0 0.0
        %1198 = vmatprep.subr.mxu0 0.0
        %1199 = vmatpush1.msra.mxu0 0.0
        %1200 = vmatprep.subr.mxu0 0.0
        %1201 = vmatpush1.msra.mxu0 0.0
        %1202 = vmatprep.subr.mxu0 0.0
        %1203 = vmatpush1.msra.mxu0 0.0
        %1204 = vmatprep.subr.mxu0 0.0
        %1205 = vmatpush1.msra.mxu0 0.0
        %1206 = vmatprep.subr.mxu0 0.0
        %1207 = vmatpush1.msra.mxu0 0.0
        %1208 = vmatprep.mubr.f32.mxu0 0.0
        %1209 = vmatmul.mubr.f32.gmra.mrb[0].mxu0 %v1142
        %v1210 = vpop.f32.mrb[0].mxu0
        %v1211 = vadd.f32 %v859, %v1210
        %v1212 = vpop.f32.mrb[0].mxu0
        %1213 = vdwg.mxu0
        %1214 = vmatprep.subr.mxu0 0.0
        %1215 = vmatpush1.msra.mxu0 %v835
        %1216 = vmatprep.subr.mxu0 0.0
        %1217 = vmatpush1.msra.mxu0 %v988
        %1218 = vmatprep.subr.mxu0 0.0
        %1219 = vmatpush1.msra.mxu0 0.0
        %1220 = vmatprep.subr.mxu0 0.0
        %1221 = vmatpush1.msra.mxu0 0.0
        %1222 = vmatprep.subr.mxu0 0.0
        %1223 = vmatpush1.msra.mxu0 0.0
        %1224 = vmatprep.subr.mxu0 0.0
        %1225 = vmatpush1.msra.mxu0 0.0
        %1226 = vmatprep.subr.mxu0 0.0
        %1227 = vmatpush1.msra.mxu0 0.0
        %1228 = vmatprep.subr.mxu0 0.0
        %1229 = vmatpush1.msra.mxu0 0.0
        %1230 = vmatprep.subr.mxu0 0.0
        %1231 = vmatpush1.msra.mxu0 0.0
        %1232 = vmatprep.subr.mxu0 0.0
        %1233 = vmatpush1.msra.mxu0 0.0
        %1234 = vmatprep.subr.mxu0 0.0
        %1235 = vmatpush1.msra.mxu0 0.0
        %1236 = vmatprep.subr.mxu0 0.0
        %1237 = vmatpush1.msra.mxu0 0.0
        %1238 = vmatprep.subr.mxu0 0.0
        %1239 = vmatpush1.msra.mxu0 0.0
        %1240 = vmatprep.subr.mxu0 0.0
        %1241 = vmatpush1.msra.mxu0 0.0
        %1242 = vmatprep.subr.mxu0 0.0
        %1243 = vmatpush1.msra.mxu0 0.0
        %1244 = vmatprep.subr.mxu0 0.0
        %1245 = vmatpush1.msra.mxu0 0.0
        %1246 = vmatprep.subr.mxu0 0.0
        %1247 = vmatpush1.msra.mxu0 0.0
        %1248 = vmatprep.subr.mxu0 0.0
        %1249 = vmatpush1.msra.mxu0 0.0
        %1250 = vmatprep.subr.mxu0 0.0
        %1251 = vmatpush1.msra.mxu0 0.0
        %1252 = vmatprep.subr.mxu0 0.0
        %1253 = vmatpush1.msra.mxu0 0.0
        %1254 = vmatprep.subr.mxu0 0.0
        %1255 = vmatpush1.msra.mxu0 0.0
        %1256 = vmatprep.subr.mxu0 0.0
        %1257 = vmatpush1.msra.mxu0 0.0
        %1258 = vmatprep.subr.mxu0 0.0
        %1259 = vmatpush1.msra.mxu0 0.0
        %1260 = vmatprep.subr.mxu0 0.0
        %1261 = vmatpush1.msra.mxu0 0.0
        %1262 = vmatprep.subr.mxu0 0.0
        %1263 = vmatpush1.msra.mxu0 0.0
        %1264 = vmatprep.subr.mxu0 0.0
        %1265 = vmatpush1.msra.mxu0 0.0
        %1266 = vmatprep.subr.mxu0 0.0
        %1267 = vmatpush1.msra.mxu0 0.0
        %1268 = vmatprep.subr.mxu0 0.0
        %1269 = vmatpush1.msra.mxu0 0.0
        %1270 = vmatprep.subr.mxu0 0.0
        %1271 = vmatpush1.msra.mxu0 0.0
        %1272 = vmatprep.subr.mxu0 0.0
        %1273 = vmatpush1.msra.mxu0 0.0
        %1274 = vmatprep.subr.mxu0 0.0
        %1275 = vmatpush1.msra.mxu0 0.0
        %1276 = vmatprep.subr.mxu0 0.0
        %1277 = vmatpush1.msra.mxu0 0.0
        %1278 = vmatprep.mubr.f32.mxu0 0.0
        %1279 = vmatmul.mubr.f32.gmra.mrb[0].mxu0 %v1142
        %v1280 = vpop.f32.mrb[0].mxu0
        %v1281 = vadd.f32 %v867, %v1280
        %v1282 = vpop.f32.mrb[0].mxu0
        %1283 = vdwg.mxu0
        %1284 = vmatprep.subr.mxu0 0.0
        %1285 = vmatpush1.msra.mxu0 %v838
        %1286 = vmatprep.subr.mxu0 0.0
        %1287 = vmatpush1.msra.mxu0 %v1061
        %1288 = vmatprep.subr.mxu0 0.0
        %1289 = vmatpush1.msra.mxu0 0.0
        %1290 = vmatprep.subr.mxu0 0.0
        %1291 = vmatpush1.msra.mxu0 0.0
        %1292 = vmatprep.subr.mxu0 0.0
        %1293 = vmatpush1.msra.mxu0 0.0
        %1294 = vmatprep.subr.mxu0 0.0
        %1295 = vmatpush1.msra.mxu0 0.0
        %1296 = vmatprep.subr.mxu0 0.0
        %1297 = vmatpush1.msra.mxu0 0.0
        %1298 = vmatprep.subr.mxu0 0.0
        %1299 = vmatpush1.msra.mxu0 0.0
        %1300 = vmatprep.subr.mxu0 0.0
        %1301 = vmatpush1.msra.mxu0 0.0
        %1302 = vmatprep.subr.mxu0 0.0
        %1303 = vmatpush1.msra.mxu0 0.0
        %1304 = vmatprep.subr.mxu0 0.0
        %1305 = vmatpush1.msra.mxu0 0.0
        %1306 = vmatprep.subr.mxu0 0.0
        %1307 = vmatpush1.msra.mxu0 0.0
        %1308 = vmatprep.subr.mxu0 0.0
        %1309 = vmatpush1.msra.mxu0 0.0
        %1310 = vmatprep.subr.mxu0 0.0
        %1311 = vmatpush1.msra.mxu0 0.0
        %1312 = vmatprep.subr.mxu0 0.0
        %1313 = vmatpush1.msra.mxu0 0.0
        %1314 = vmatprep.subr.mxu0 0.0
        %1315 = vmatpush1.msra.mxu0 0.0
        %1316 = vmatprep.subr.mxu0 0.0
        %1317 = vmatpush1.msra.mxu0 0.0
        %1318 = vmatprep.subr.mxu0 0.0
        %1319 = vmatpush1.msra.mxu0 0.0
        %1320 = vmatprep.subr.mxu0 0.0
        %1321 = vmatpush1.msra.mxu0 0.0
        %1322 = vmatprep.subr.mxu0 0.0
        %1323 = vmatpush1.msra.mxu0 0.0
        %1324 = vmatprep.subr.mxu0 0.0
        %1325 = vmatpush1.msra.mxu0 0.0
        %1326 = vmatprep.subr.mxu0 0.0
        %1327 = vmatpush1.msra.mxu0 0.0
        %1328 = vmatprep.subr.mxu0 0.0
        %1329 = vmatpush1.msra.mxu0 0.0
        %1330 = vmatprep.subr.mxu0 0.0
        %1331 = vmatpush1.msra.mxu0 0.0
        %1332 = vmatprep.subr.mxu0 0.0
        %1333 = vmatpush1.msra.mxu0 0.0
        %1334 = vmatprep.subr.mxu0 0.0
        %1335 = vmatpush1.msra.mxu0 0.0
        %1336 = vmatprep.subr.mxu0 0.0
        %1337 = vmatpush1.msra.mxu0 0.0
        %1338 = vmatprep.subr.mxu0 0.0
        %1339 = vmatpush1.msra.mxu0 0.0
        %1340 = vmatprep.subr.mxu0 0.0
        %1341 = vmatpush1.msra.mxu0 0.0
        %1342 = vmatprep.subr.mxu0 0.0
        %1343 = vmatpush1.msra.mxu0 0.0
        %1344 = vmatprep.subr.mxu0 0.0
        %1345 = vmatpush1.msra.mxu0 0.0
        %1346 = vmatprep.subr.mxu0 0.0
        %1347 = vmatpush1.msra.mxu0 0.0
        %1348 = vmatprep.mubr.f32.mxu0 0.0
        %1349 = vmatmul.mubr.f32.gmra.mrb[0].mxu0 %v1142
        %v1350 = vpop.f32.mrb[0].mxu0
        %v1351 = vadd.f32 %v875, %v1350
        %v1352 = vpop.f32.mrb[0].mxu0
        %1353 = vdwg.mxu0
        %vm1354 = vcmask 261120
        %v1356 = vsel %vm1354, %v900, 0
        %1358 = vmatprep.subr.mxu0 0.0
        %1359 = vmatpush1.msra.mxu0 %v840
        %1360 = vmatprep.subr.mxu0 0.0
        %1361 = vmatpush1.msra.mxu0 %v841
        %1362 = vmatprep.subr.mxu0 0.0
        %1363 = vmatpush1.msra.mxu0 %v842
        %1364 = vmatprep.subr.mxu0 0.0
        %1365 = vmatpush1.msra.mxu0 %v843
        %1366 = vmatprep.subr.mxu0 0.0
        %1367 = vmatpush1.msra.mxu0 0.0
        %1368 = vmatprep.subr.mxu0 0.0
        %1369 = vmatpush1.msra.mxu0 0.0
        %1370 = vmatprep.subr.mxu0 0.0
        %1371 = vmatpush1.msra.mxu0 0.0
        %1372 = vmatprep.subr.mxu0 0.0
        %1373 = vmatpush1.msra.mxu0 0.0
        %1374 = vmatprep.subr.mxu0 0.0
        %1375 = vmatpush1.msra.mxu0 0.0
        %1376 = vmatprep.subr.mxu0 0.0
        %1377 = vmatpush1.msra.mxu0 0.0
        %1378 = vmatprep.subr.mxu0 0.0
        %1379 = vmatpush1.msra.mxu0 0.0
        %1380 = vmatprep.subr.mxu0 0.0
        %1381 = vmatpush1.msra.mxu0 0.0
        %1382 = vmatprep.subr.mxu0 0.0
        %1383 = vmatpush1.msra.mxu0 0.0
        %1384 = vmatprep.subr.mxu0 0.0
        %1385 = vmatpush1.msra.mxu0 0.0
        %1386 = vmatprep.subr.mxu0 0.0
        %1387 = vmatpush1.msra.mxu0 0.0
        %1388 = vmatprep.subr.mxu0 0.0
        %1389 = vmatpush1.msra.mxu0 0.0
        %1390 = vmatprep.subr.mxu0 0.0
        %1391 = vmatpush1.msra.mxu0 0.0
        %1392 = vmatprep.subr.mxu0 0.0
        %1393 = vmatpush1.msra.mxu0 0.0
        %1394 = vmatprep.subr.mxu0 0.0
        %1395 = vmatpush1.msra.mxu0 0.0
        %1396 = vmatprep.subr.mxu0 0.0
        %1397 = vmatpush1.msra.mxu0 0.0
        %1398 = vmatprep.subr.mxu0 0.0
        %1399 = vmatpush1.msra.mxu0 0.0
        %1400 = vmatprep.subr.mxu0 0.0
        %1401 = vmatpush1.msra.mxu0 0.0
        %1402 = vmatprep.subr.mxu0 0.0
        %1403 = vmatpush1.msra.mxu0 0.0
        %1404 = vmatprep.subr.mxu0 0.0
        %1405 = vmatpush1.msra.mxu0 0.0
        %1406 = vmatprep.subr.mxu0 0.0
        %1407 = vmatpush1.msra.mxu0 0.0
        %1408 = vmatprep.subr.mxu0 0.0
        %1409 = vmatpush1.msra.mxu0 0.0
        %1410 = vmatprep.subr.mxu0 0.0
        %1411 = vmatpush1.msra.mxu0 0.0
        %1412 = vmatprep.subr.mxu0 0.0
        %1413 = vmatpush1.msra.mxu0 0.0
        %1414 = vmatprep.subr.mxu0 0.0
        %1415 = vmatpush1.msra.mxu0 0.0
        %1416 = vmatprep.subr.mxu0 0.0
        %1417 = vmatpush1.msra.mxu0 0.0
        %1418 = vmatprep.subr.mxu0 0.0
        %1419 = vmatpush1.msra.mxu0 0.0
        %1420 = vmatprep.subr.mxu0 0.0
        %1421 = vmatpush1.msra.mxu0 0.0
        %1422 = vmatprep.mubr.f32.mxu0 0.0
        %1423 = vmatmul.mubr.f32.gmra.mrb[0].mxu0 %v1356
        %v1424 = vpop.f32.mrb[0].mxu0
        %v1425 = vadd.f32 %v882, %v1424
        %v1426 = vpop.f32.mrb[0].mxu0
        %1427 = vdwg.mxu0
        %1428 = vmatprep.subr.mxu0 0.0
        %1429 = vmatpush1.msra.mxu0 %v845
        %1430 = vmatprep.subr.mxu0 0.0
        %1431 = vmatpush1.msra.mxu0 %v846
        %1432 = vmatprep.subr.mxu0 0.0
        %1433 = vmatpush1.msra.mxu0 %v847
        %1434 = vmatprep.subr.mxu0 0.0
        %1435 = vmatpush1.msra.mxu0 %v848
        %1436 = vmatprep.subr.mxu0 0.0
        %1437 = vmatpush1.msra.mxu0 0.0
        %1438 = vmatprep.subr.mxu0 0.0
        %1439 = vmatpush1.msra.mxu0 0.0
        %1440 = vmatprep.subr.mxu0 0.0
        %1441 = vmatpush1.msra.mxu0 0.0
        %1442 = vmatprep.subr.mxu0 0.0
        %1443 = vmatpush1.msra.mxu0 0.0
        %1444 = vmatprep.subr.mxu0 0.0
        %1445 = vmatpush1.msra.mxu0 0.0
        %1446 = vmatprep.subr.mxu0 0.0
        %1447 = vmatpush1.msra.mxu0 0.0
        %1448 = vmatprep.subr.mxu0 0.0
        %1449 = vmatpush1.msra.mxu0 0.0
        %1450 = vmatprep.subr.mxu0 0.0
        %1451 = vmatpush1.msra.mxu0 0.0
        %1452 = vmatprep.subr.mxu0 0.0
        %1453 = vmatpush1.msra.mxu0 0.0
        %1454 = vmatprep.subr.mxu0 0.0
        %1455 = vmatpush1.msra.mxu0 0.0
        %1456 = vmatprep.subr.mxu0 0.0
        %1457 = vmatpush1.msra.mxu0 0.0
        %1458 = vmatprep.subr.mxu0 0.0
        %1459 = vmatpush1.msra.mxu0 0.0
        %1460 = vmatprep.subr.mxu0 0.0
        %1461 = vmatpush1.msra.mxu0 0.0
        %1462 = vmatprep.subr.mxu0 0.0
        %1463 = vmatpush1.msra.mxu0 0.0
        %1464 = vmatprep.subr.mxu0 0.0
        %1465 = vmatpush1.msra.mxu0 0.0
        %1466 = vmatprep.subr.mxu0 0.0
        %1467 = vmatpush1.msra.mxu0 0.0
        %1468 = vmatprep.subr.mxu0 0.0
        %1469 = vmatpush1.msra.mxu0 0.0
        %1470 = vmatprep.subr.mxu0 0.0
        %1471 = vmatpush1.msra.mxu0 0.0
        %1472 = vmatprep.subr.mxu0 0.0
        %1473 = vmatpush1.msra.mxu0 0.0
        %1474 = vmatprep.subr.mxu0 0.0
        %1475 = vmatpush1.msra.mxu0 0.0
        %1476 = vmatprep.subr.mxu0 0.0
        %1477 = vmatpush1.msra.mxu0 0.0
        %1478 = vmatprep.subr.mxu0 0.0
        %1479 = vmatpush1.msra.mxu0 0.0
        %1480 = vmatprep.subr.mxu0 0.0
        %1481 = vmatpush1.msra.mxu0 0.0
        %1482 = vmatprep.subr.mxu0 0.0
        %1483 = vmatpush1.msra.mxu0 0.0
        %1484 = vmatprep.subr.mxu0 0.0
        %1485 = vmatpush1.msra.mxu0 0.0
        %1486 = vmatprep.subr.mxu0 0.0
        %1487 = vmatpush1.msra.mxu0 0.0
        %1488 = vmatprep.subr.mxu0 0.0
        %1489 = vmatpush1.msra.mxu0 0.0
        %1490 = vmatprep.subr.mxu0 0.0
        %1491 = vmatpush1.msra.mxu0 0.0
        %1492 = vmatprep.mubr.f32.mxu0 0.0
        %1493 = vmatmul.mubr.f32.gmra.mrb[0].mxu0 %v1356
        %v1494 = vpop.f32.mrb[0].mxu0
        %v1495 = vadd.f32 %v890, %v1494
        %v1496 = vpop.f32.mrb[0].mxu0
        %1497 = vdwg.mxu0
        %1498 = vmatprep.subr.mxu0 0.0
        %1499 = vmatpush1.msra.mxu0 %v850
        %1500 = vmatprep.subr.mxu0 0.0
        %1501 = vmatpush1.msra.mxu0 %v851
        %1502 = vmatprep.subr.mxu0 0.0
        %1503 = vmatpush1.msra.mxu0 %v852
        %1504 = vmatprep.subr.mxu0 0.0
        %1505 = vmatpush1.msra.mxu0 %v853
        %1506 = vmatprep.subr.mxu0 0.0
        %1507 = vmatpush1.msra.mxu0 0.0
        %1508 = vmatprep.subr.mxu0 0.0
        %1509 = vmatpush1.msra.mxu0 0.0
        %1510 = vmatprep.subr.mxu0 0.0
        %1511 = vmatpush1.msra.mxu0 0.0
        %1512 = vmatprep.subr.mxu0 0.0
        %1513 = vmatpush1.msra.mxu0 0.0
        %1514 = vmatprep.subr.mxu0 0.0
        %1515 = vmatpush1.msra.mxu0 0.0
        %1516 = vmatprep.subr.mxu0 0.0
        %1517 = vmatpush1.msra.mxu0 0.0
        %1518 = vmatprep.subr.mxu0 0.0
        %1519 = vmatpush1.msra.mxu0 0.0
        %1520 = vmatprep.subr.mxu0 0.0
        %1521 = vmatpush1.msra.mxu0 0.0
        %1522 = vmatprep.subr.mxu0 0.0
        %1523 = vmatpush1.msra.mxu0 0.0
        %1524 = vmatprep.subr.mxu0 0.0
        %1525 = vmatpush1.msra.mxu0 0.0
        %1526 = vmatprep.subr.mxu0 0.0
        %1527 = vmatpush1.msra.mxu0 0.0
        %1528 = vmatprep.subr.mxu0 0.0
        %1529 = vmatpush1.msra.mxu0 0.0
        %1530 = vmatprep.subr.mxu0 0.0
        %1531 = vmatpush1.msra.mxu0 0.0
        %1532 = vmatprep.subr.mxu0 0.0
        %1533 = vmatpush1.msra.mxu0 0.0
        %1534 = vmatprep.subr.mxu0 0.0
        %1535 = vmatpush1.msra.mxu0 0.0
        %1536 = vmatprep.subr.mxu0 0.0
        %1537 = vmatpush1.msra.mxu0 0.0
        %1538 = vmatprep.subr.mxu0 0.0
        %1539 = vmatpush1.msra.mxu0 0.0
        %1540 = vmatprep.subr.mxu0 0.0
        %1541 = vmatpush1.msra.mxu0 0.0
        %1542 = vmatprep.subr.mxu0 0.0
        %1543 = vmatpush1.msra.mxu0 0.0
        %1544 = vmatprep.subr.mxu0 0.0
        %1545 = vmatpush1.msra.mxu0 0.0
        %1546 = vmatprep.subr.mxu0 0.0
        %1547 = vmatpush1.msra.mxu0 0.0
        %1548 = vmatprep.subr.mxu0 0.0
        %1549 = vmatpush1.msra.mxu0 0.0
        %1550 = vmatprep.subr.mxu0 0.0
        %1551 = vmatpush1.msra.mxu0 0.0
        %1552 = vmatprep.subr.mxu0 0.0
        %1553 = vmatpush1.msra.mxu0 0.0
        %1554 = vmatprep.subr.mxu0 0.0
        %1555 = vmatpush1.msra.mxu0 0.0
        %1556 = vmatprep.subr.mxu0 0.0
        %1557 = vmatpush1.msra.mxu0 0.0
        %1558 = vmatprep.subr.mxu0 0.0
        %1559 = vmatpush1.msra.mxu0 0.0
        %1560 = vmatprep.subr.mxu0 0.0
        %1561 = vmatpush1.msra.mxu0 0.0
        %1562 = vmatprep.mubr.f32.mxu0 0.0
        %1563 = vmatmul.mubr.f32.gmra.mrb[0].mxu0 %v1356
        %v1564 = vpop.f32.mrb[0].mxu0
        %v1565 = vadd.f32 %v898, %v1564
        %v1566 = vpop.f32.mrb[0].mxu0
        %1567 = vdwg.mxu0
        %v1568 = vadd.f32 %v984, %v1425
        %v1569 = vxor.u32 %v1568, 2147483648
        %v1570 = vmul.f32 %v1569, 1.442695
        %v1571 = vpow.pop %v1570
        %v1572 = vadd.f32 %v1571, 1.0
        %v1573 = vrcp.pop %v1572
        %v1574 = vmul.f32 1.0, %v1573
        %v1575 = vadd.f32 %v1057, %v1495
        %v1576 = vxor.u32 %v1575, 2147483648
        %v1577 = vmul.f32 %v1576, 1.442695
        %v1578 = vpow.pop %v1577
        %v1579 = vadd.f32 %v1578, 1.0
        %v1580 = vrcp.pop %v1579
        %v1581 = vmul.f32 1.0, %v1580
        %v1582 = vmul.f32 %v1574, %v1565
        %v1583 = vadd.f32 %v1130, %v1582
        %v1584 = vtanh.pop %v1583
        %v1585 = vsub.f32 1.0, %v1581
        %v1586 = vmul.f32 %v1585, %v1584
        %v1587 = vmul.f32 %v1581, %v900
        %v1588 = vadd.f32 %v1586, %v1587
        %vm1589 = vcmp.gt.f32.partialorder %v908, 0.5
        %v1590 = vsel %vm1589, 1, 0
        %vm1591 = vcmp.eq.s32.totalorder %v1590, 1
        %v1592 = vsel %vm1591, %v1588, %v900
        %s1593 = scalar_lea.vmem %s700, 16 [#allocation3]
        %v1594 = vld [vmem:[%s1593] sm:$0xff]
        %v1595 = vsel %vm902, %v1594, -inf
        %1596 = vmax.xlane.f32.xlu0 %v1595
        %v1597 = vpop.xlane.xlu0 %1596
        %vm1598 = vcmp.gt.f32.partialorder %v1597, 0.5
        %v1599 = vsel %vm1598, 1, 0
        %v1600 = vcvt.s32.f32 %v1599
        %v1602 = vsel %vm909, %v1594, 0
        %1604 = vmatprep.subr.mxu0 0.0
        %1605 = vmatpush1.msra.mxu0 %v832
        %1606 = vmatprep.subr.mxu0 0.0
        %1607 = vmatpush1.msra.mxu0 %v915
        %1608 = vmatprep.subr.mxu0 0.0
        %1609 = vmatpush1.msra.mxu0 0.0
        %1610 = vmatprep.subr.mxu0 0.0
        %1611 = vmatpush1.msra.mxu0 0.0
        %1612 = vmatprep.subr.mxu0 0.0
        %1613 = vmatpush1.msra.mxu0 0.0
        %1614 = vmatprep.subr.mxu0 0.0
        %1615 = vmatpush1.msra.mxu0 0.0
        %1616 = vmatprep.subr.mxu0 0.0
        %1617 = vmatpush1.msra.mxu0 0.0
        %1618 = vmatprep.subr.mxu0 0.0
        %1619 = vmatpush1.msra.mxu0 0.0
        %1620 = vmatprep.subr.mxu0 0.0
        %1621 = vmatpush1.msra.mxu0 0.0
        %1622 = vmatprep.subr.mxu0 0.0
        %1623 = vmatpush1.msra.mxu0 0.0
        %1624 = vmatprep.subr.mxu0 0.0
        %1625 = vmatpush1.msra.mxu0 0.0
        %1626 = vmatprep.subr.mxu0 0.0
        %1627 = vmatpush1.msra.mxu0 0.0
        %1628 = vmatprep.subr.mxu0 0.0
        %1629 = vmatpush1.msra.mxu0 0.0
        %1630 = vmatprep.subr.mxu0 0.0
        %1631 = vmatpush1.msra.mxu0 0.0
        %1632 = vmatprep.subr.mxu0 0.0
        %1633 = vmatpush1.msra.mxu0 0.0
        %1634 = vmatprep.subr.mxu0 0.0
        %1635 = vmatpush1.msra.mxu0 0.0
        %1636 = vmatprep.subr.mxu0 0.0
        %1637 = vmatpush1.msra.mxu0 0.0
        %1638 = vmatprep.subr.mxu0 0.0
        %1639 = vmatpush1.msra.mxu0 0.0
        %1640 = vmatprep.subr.mxu0 0.0
        %1641 = vmatpush1.msra.mxu0 0.0
        %1642 = vmatprep.subr.mxu0 0.0
        %1643 = vmatpush1.msra.mxu0 0.0
        %1644 = vmatprep.subr.mxu0 0.0
        %1645 = vmatpush1.msra.mxu0 0.0
        %1646 = vmatprep.subr.mxu0 0.0
        %1647 = vmatpush1.msra.mxu0 0.0
        %1648 = vmatprep.subr.mxu0 0.0
        %1649 = vmatpush1.msra.mxu0 0.0
        %1650 = vmatprep.subr.mxu0 0.0
        %1651 = vmatpush1.msra.mxu0 0.0
        %1652 = vmatprep.subr.mxu0 0.0
        %1653 = vmatpush1.msra.mxu0 0.0
        %1654 = vmatprep.subr.mxu0 0.0
        %1655 = vmatpush1.msra.mxu0 0.0
        %1656 = vmatprep.subr.mxu0 0.0
        %1657 = vmatpush1.msra.mxu0 0.0
        %1658 = vmatprep.subr.mxu0 0.0
        %1659 = vmatpush1.msra.mxu0 0.0
        %1660 = vmatprep.subr.mxu0 0.0
        %1661 = vmatpush1.msra.mxu0 0.0
        %1662 = vmatprep.subr.mxu0 0.0
        %1663 = vmatpush1.msra.mxu0 0.0
        %1664 = vmatprep.subr.mxu0 0.0
        %1665 = vmatpush1.msra.mxu0 0.0
        %1666 = vmatprep.subr.mxu0 0.0
        %1667 = vmatpush1.msra.mxu0 0.0
        %1668 = vmatprep.mubr.f32.mxu0 0.0
        %1669 = vmatmul.mubr.f32.gmra.mrb[0].mxu0 %v1602
        %v1670 = vpop.f32.mrb[0].mxu0
        %v1671 = vadd.f32 %v859, %v1670
        %v1672 = vpop.f32.mrb[0].mxu0
        %1673 = vdwg.mxu0
        %1674 = vmatprep.subr.mxu0 0.0
        %1675 = vmatpush1.msra.mxu0 %v835
        %1676 = vmatprep.subr.mxu0 0.0
        %1677 = vmatpush1.msra.mxu0 %v988
        %1678 = vmatprep.subr.mxu0 0.0
        %1679 = vmatpush1.msra.mxu0 0.0
        %1680 = vmatprep.subr.mxu0 0.0
        %1681 = vmatpush1.msra.mxu0 0.0
        %1682 = vmatprep.subr.mxu0 0.0
        %1683 = vmatpush1.msra.mxu0 0.0
        %1684 = vmatprep.subr.mxu0 0.0
        %1685 = vmatpush1.msra.mxu0 0.0
        %1686 = vmatprep.subr.mxu0 0.0
        %1687 = vmatpush1.msra.mxu0 0.0
        %1688 = vmatprep.subr.mxu0 0.0
        %1689 = vmatpush1.msra.mxu0 0.0
        %1690 = vmatprep.subr.mxu0 0.0
        %1691 = vmatpush1.msra.mxu0 0.0
        %1692 = vmatprep.subr.mxu0 0.0
        %1693 = vmatpush1.msra.mxu0 0.0
        %1694 = vmatprep.subr.mxu0 0.0
        %1695 = vmatpush1.msra.mxu0 0.0
        %1696 = vmatprep.subr.mxu0 0.0
        %1697 = vmatpush1.msra.mxu0 0.0
        %1698 = vmatprep.subr.mxu0 0.0
        %1699 = vmatpush1.msra.mxu0 0.0
        %1700 = vmatprep.subr.mxu0 0.0
        %1701 = vmatpush1.msra.mxu0 0.0
        %1702 = vmatprep.subr.mxu0 0.0
        %1703 = vmatpush1.msra.mxu0 0.0
        %1704 = vmatprep.subr.mxu0 0.0
        %1705 = vmatpush1.msra.mxu0 0.0
        %1706 = vmatprep.subr.mxu0 0.0
        %1707 = vmatpush1.msra.mxu0 0.0
        %1708 = vmatprep.subr.mxu0 0.0
        %1709 = vmatpush1.msra.mxu0 0.0
        %1710 = vmatprep.subr.mxu0 0.0
        %1711 = vmatpush1.msra.mxu0 0.0
        %1712 = vmatprep.subr.mxu0 0.0
        %1713 = vmatpush1.msra.mxu0 0.0
        %1714 = vmatprep.subr.mxu0 0.0
        %1715 = vmatpush1.msra.mxu0 0.0
        %1716 = vmatprep.subr.mxu0 0.0
        %1717 = vmatpush1.msra.mxu0 0.0
        %1718 = vmatprep.subr.mxu0 0.0
        %1719 = vmatpush1.msra.mxu0 0.0
        %1720 = vmatprep.subr.mxu0 0.0
        %1721 = vmatpush1.msra.mxu0 0.0
        %1722 = vmatprep.subr.mxu0 0.0
        %1723 = vmatpush1.msra.mxu0 0.0
        %1724 = vmatprep.subr.mxu0 0.0
        %1725 = vmatpush1.msra.mxu0 0.0
        %1726 = vmatprep.subr.mxu0 0.0
        %1727 = vmatpush1.msra.mxu0 0.0
        %1728 = vmatprep.subr.mxu0 0.0
        %1729 = vmatpush1.msra.mxu0 0.0
        %1730 = vmatprep.subr.mxu0 0.0
        %1731 = vmatpush1.msra.mxu0 0.0
        %1732 = vmatprep.subr.mxu0 0.0
        %1733 = vmatpush1.msra.mxu0 0.0
        %1734 = vmatprep.subr.mxu0 0.0
        %1735 = vmatpush1.msra.mxu0 0.0
        %1736 = vmatprep.subr.mxu0 0.0
        %1737 = vmatpush1.msra.mxu0 0.0
        %1738 = vmatprep.mubr.f32.mxu0 0.0
        %1739 = vmatmul.mubr.f32.gmra.mrb[0].mxu0 %v1602
        %v1740 = vpop.f32.mrb[0].mxu0
        %v1741 = vadd.f32 %v867, %v1740
        %v1742 = vpop.f32.mrb[0].mxu0
        %1743 = vdwg.mxu0
        %1744 = vmatprep.subr.mxu0 0.0
        %1745 = vmatpush1.msra.mxu0 %v838
        %1746 = vmatprep.subr.mxu0 0.0
        %1747 = vmatpush1.msra.mxu0 %v1061
        %1748 = vmatprep.subr.mxu0 0.0
        %1749 = vmatpush1.msra.mxu0 0.0
        %1750 = vmatprep.subr.mxu0 0.0
        %1751 = vmatpush1.msra.mxu0 0.0
        %1752 = vmatprep.subr.mxu0 0.0
        %1753 = vmatpush1.msra.mxu0 0.0
        %1754 = vmatprep.subr.mxu0 0.0
        %1755 = vmatpush1.msra.mxu0 0.0
        %1756 = vmatprep.subr.mxu0 0.0
        %1757 = vmatpush1.msra.mxu0 0.0
        %1758 = vmatprep.subr.mxu0 0.0
        %1759 = vmatpush1.msra.mxu0 0.0
        %1760 = vmatprep.subr.mxu0 0.0
        %1761 = vmatpush1.msra.mxu0 0.0
        %1762 = vmatprep.subr.mxu0 0.0
        %1763 = vmatpush1.msra.mxu0 0.0
        %1764 = vmatprep.subr.mxu0 0.0
        %1765 = vmatpush1.msra.mxu0 0.0
        %1766 = vmatprep.subr.mxu0 0.0
        %1767 = vmatpush1.msra.mxu0 0.0
        %1768 = vmatprep.subr.mxu0 0.0
        %1769 = vmatpush1.msra.mxu0 0.0
        %1770 = vmatprep.subr.mxu0 0.0
        %1771 = vmatpush1.msra.mxu0 0.0
        %1772 = vmatprep.subr.mxu0 0.0
        %1773 = vmatpush1.msra.mxu0 0.0
        %1774 = vmatprep.subr.mxu0 0.0
        %1775 = vmatpush1.msra.mxu0 0.0
        %1776 = vmatprep.subr.mxu0 0.0
        %1777 = vmatpush1.msra.mxu0 0.0
        %1778 = vmatprep.subr.mxu0 0.0
        %1779 = vmatpush1.msra.mxu0 0.0
        %1780 = vmatprep.subr.mxu0 0.0
        %1781 = vmatpush1.msra.mxu0 0.0
        %1782 = vmatprep.subr.mxu0 0.0
        %1783 = vmatpush1.msra.mxu0 0.0
        %1784 = vmatprep.subr.mxu0 0.0
        %1785 = vmatpush1.msra.mxu0 0.0
        %1786 = vmatprep.subr.mxu0 0.0
        %1787 = vmatpush1.msra.mxu0 0.0
        %1788 = vmatprep.subr.mxu0 0.0
        %1789 = vmatpush1.msra.mxu0 0.0
        %1790 = vmatprep.subr.mxu0 0.0
        %1791 = vmatpush1.msra.mxu0 0.0
        %1792 = vmatprep.subr.mxu0 0.0
        %1793 = vmatpush1.msra.mxu0 0.0
        %1794 = vmatprep.subr.mxu0 0.0
        %1795 = vmatpush1.msra.mxu0 0.0
        %1796 = vmatprep.subr.mxu0 0.0
        %1797 = vmatpush1.msra.mxu0 0.0
        %1798 = vmatprep.subr.mxu0 0.0
        %1799 = vmatpush1.msra.mxu0 0.0
        %1800 = vmatprep.subr.mxu0 0.0
        %1801 = vmatpush1.msra.mxu0 0.0
        %1802 = vmatprep.subr.mxu0 0.0
        %1803 = vmatpush1.msra.mxu0 0.0
        %1804 = vmatprep.subr.mxu0 0.0
        %1805 = vmatpush1.msra.mxu0 0.0
        %1806 = vmatprep.subr.mxu0 0.0
        %1807 = vmatpush1.msra.mxu0 0.0
        %1808 = vmatprep.mubr.f32.mxu0 0.0
        %1809 = vmatmul.mubr.f32.gmra.mrb[0].mxu0 %v1602
        %v1810 = vpop.f32.mrb[0].mxu0
        %v1811 = vadd.f32 %v875, %v1810
        %v1812 = vpop.f32.mrb[0].mxu0
        %1813 = vdwg.mxu0
        %v1815 = vsel %vm1354, %v1592, 0
        %1817 = vmatprep.subr.mxu0 0.0
        %1818 = vmatpush1.msra.mxu0 %v840
        %1819 = vmatprep.subr.mxu0 0.0
        %1820 = vmatpush1.msra.mxu0 %v841
        %1821 = vmatprep.subr.mxu0 0.0
        %1822 = vmatpush1.msra.mxu0 %v842
        %1823 = vmatprep.subr.mxu0 0.0
        %1824 = vmatpush1.msra.mxu0 %v843
        %1825 = vmatprep.subr.mxu0 0.0
        %1826 = vmatpush1.msra.mxu0 0.0
        %1827 = vmatprep.subr.mxu0 0.0
        %1828 = vmatpush1.msra.mxu0 0.0
        %1829 = vmatprep.subr.mxu0 0.0
        %1830 = vmatpush1.msra.mxu0 0.0
        %1831 = vmatprep.subr.mxu0 0.0
        %1832 = vmatpush1.msra.mxu0 0.0
        %1833 = vmatprep.subr.mxu0 0.0
        %1834 = vmatpush1.msra.mxu0 0.0
        %1835 = vmatprep.subr.mxu0 0.0
        %1836 = vmatpush1.msra.mxu0 0.0
        %1837 = vmatprep.subr.mxu0 0.0
        %1838 = vmatpush1.msra.mxu0 0.0
        %1839 = vmatprep.subr.mxu0 0.0
        %1840 = vmatpush1.msra.mxu0 0.0
        %1841 = vmatprep.subr.mxu0 0.0
        %1842 = vmatpush1.msra.mxu0 0.0
        %1843 = vmatprep.subr.mxu0 0.0
        %1844 = vmatpush1.msra.mxu0 0.0
        %1845 = vmatprep.subr.mxu0 0.0
        %1846 = vmatpush1.msra.mxu0 0.0
        %1847 = vmatprep.subr.mxu0 0.0
        %1848 = vmatpush1.msra.mxu0 0.0
        %1849 = vmatprep.subr.mxu0 0.0
        %1850 = vmatpush1.msra.mxu0 0.0
        %1851 = vmatprep.subr.mxu0 0.0
        %1852 = vmatpush1.msra.mxu0 0.0
        %1853 = vmatprep.subr.mxu0 0.0
        %1854 = vmatpush1.msra.mxu0 0.0
        %1855 = vmatprep.subr.mxu0 0.0
        %1856 = vmatpush1.msra.mxu0 0.0
        %1857 = vmatprep.subr.mxu0 0.0
        %1858 = vmatpush1.msra.mxu0 0.0
        %1859 = vmatprep.subr.mxu0 0.0
        %1860 = vmatpush1.msra.mxu0 0.0
        %1861 = vmatprep.subr.mxu0 0.0
        %1862 = vmatpush1.msra.mxu0 0.0
        %1863 = vmatprep.subr.mxu0 0.0
        %1864 = vmatpush1.msra.mxu0 0.0
        %1865 = vmatprep.subr.mxu0 0.0
        %1866 = vmatpush1.msra.mxu0 0.0
        %1867 = vmatprep.subr.mxu0 0.0
        %1868 = vmatpush1.msra.mxu0 0.0
        %1869 = vmatprep.subr.mxu0 0.0
        %1870 = vmatpush1.msra.mxu0 0.0
        %1871 = vmatprep.subr.mxu0 0.0
        %1872 = vmatpush1.msra.mxu0 0.0
        %1873 = vmatprep.subr.mxu0 0.0
        %1874 = vmatpush1.msra.mxu0 0.0
        %1875 = vmatprep.subr.mxu0 0.0
        %1876 = vmatpush1.msra.mxu0 0.0
        %1877 = vmatprep.subr.mxu0 0.0
        %1878 = vmatpush1.msra.mxu0 0.0
        %1879 = vmatprep.subr.mxu0 0.0
        %1880 = vmatpush1.msra.mxu0 0.0
        %1881 = vmatprep.mubr.f32.mxu0 0.0
        %1882 = vmatmul.mubr.f32.gmra.mrb[0].mxu0 %v1815
        %v1883 = vpop.f32.mrb[0].mxu0
        %v1884 = vadd.f32 %v882, %v1883
        %v1885 = vpop.f32.mrb[0].mxu0
        %1886 = vdwg.mxu0
        %1887 = vmatprep.subr.mxu0 0.0
        %1888 = vmatpush1.msra.mxu0 %v845
        %1889 = vmatprep.subr.mxu0 0.0
        %1890 = vmatpush1.msra.mxu0 %v846
        %1891 = vmatprep.subr.mxu0 0.0
        %1892 = vmatpush1.msra.mxu0 %v847
        %1893 = vmatprep.subr.mxu0 0.0
        %1894 = vmatpush1.msra.mxu0 %v848
        %1895 = vmatprep.subr.mxu0 0.0
        %1896 = vmatpush1.msra.mxu0 0.0
        %1897 = vmatprep.subr.mxu0 0.0
        %1898 = vmatpush1.msra.mxu0 0.0
        %1899 = vmatprep.subr.mxu0 0.0
        %1900 = vmatpush1.msra.mxu0 0.0
        %1901 = vmatprep.subr.mxu0 0.0
        %1902 = vmatpush1.msra.mxu0 0.0
        %1903 = vmatprep.subr.mxu0 0.0
        %1904 = vmatpush1.msra.mxu0 0.0
        %1905 = vmatprep.subr.mxu0 0.0
        %1906 = vmatpush1.msra.mxu0 0.0
        %1907 = vmatprep.subr.mxu0 0.0
        %1908 = vmatpush1.msra.mxu0 0.0
        %1909 = vmatprep.subr.mxu0 0.0
        %1910 = vmatpush1.msra.mxu0 0.0
        %1911 = vmatprep.subr.mxu0 0.0
        %1912 = vmatpush1.msra.mxu0 0.0
        %1913 = vmatprep.subr.mxu0 0.0
        %1914 = vmatpush1.msra.mxu0 0.0
        %1915 = vmatprep.subr.mxu0 0.0
        %1916 = vmatpush1.msra.mxu0 0.0
        %1917 = vmatprep.subr.mxu0 0.0
        %1918 = vmatpush1.msra.mxu0 0.0
        %1919 = vmatprep.subr.mxu0 0.0
        %1920 = vmatpush1.msra.mxu0 0.0
        %1921 = vmatprep.subr.mxu0 0.0
        %1922 = vmatpush1.msra.mxu0 0.0
        %1923 = vmatprep.subr.mxu0 0.0
        %1924 = vmatpush1.msra.mxu0 0.0
        %1925 = vmatprep.subr.mxu0 0.0
        %1926 = vmatpush1.msra.mxu0 0.0
        %1927 = vmatprep.subr.mxu0 0.0
        %1928 = vmatpush1.msra.mxu0 0.0
        %1929 = vmatprep.subr.mxu0 0.0
        %1930 = vmatpush1.msra.mxu0 0.0
        %1931 = vmatprep.subr.mxu0 0.0
        %1932 = vmatpush1.msra.mxu0 0.0
        %1933 = vmatprep.subr.mxu0 0.0
        %1934 = vmatpush1.msra.mxu0 0.0
        %1935 = vmatprep.subr.mxu0 0.0
        %1936 = vmatpush1.msra.mxu0 0.0
        %1937 = vmatprep.subr.mxu0 0.0
        %1938 = vmatpush1.msra.mxu0 0.0
        %1939 = vmatprep.subr.mxu0 0.0
        %1940 = vmatpush1.msra.mxu0 0.0
        %1941 = vmatprep.subr.mxu0 0.0
        %1942 = vmatpush1.msra.mxu0 0.0
        %1943 = vmatprep.subr.mxu0 0.0
        %1944 = vmatpush1.msra.mxu0 0.0
        %1945 = vmatprep.subr.mxu0 0.0
        %1946 = vmatpush1.msra.mxu0 0.0
        %1947 = vmatprep.subr.mxu0 0.0
        %1948 = vmatpush1.msra.mxu0 0.0
        %1949 = vmatprep.subr.mxu0 0.0
        %1950 = vmatpush1.msra.mxu0 0.0
        %1951 = vmatprep.mubr.f32.mxu0 0.0
        %1952 = vmatmul.mubr.f32.gmra.mrb[0].mxu0 %v1815
        %v1953 = vpop.f32.mrb[0].mxu0
        %v1954 = vadd.f32 %v890, %v1953
        %v1955 = vpop.f32.mrb[0].mxu0
        %1956 = vdwg.mxu0
        %1957 = vmatprep.subr.mxu0 0.0
        %1958 = vmatpush1.msra.mxu0 %v850
        %1959 = vmatprep.subr.mxu0 0.0
        %1960 = vmatpush1.msra.mxu0 %v851
        %1961 = vmatprep.subr.mxu0 0.0
        %1962 = vmatpush1.msra.mxu0 %v852
        %1963 = vmatprep.subr.mxu0 0.0
        %1964 = vmatpush1.msra.mxu0 %v853
        %1965 = vmatprep.subr.mxu0 0.0
        %1966 = vmatpush1.msra.mxu0 0.0
        %1967 = vmatprep.subr.mxu0 0.0
        %1968 = vmatpush1.msra.mxu0 0.0
        %1969 = vmatprep.subr.mxu0 0.0
        %1970 = vmatpush1.msra.mxu0 0.0
        %1971 = vmatprep.subr.mxu0 0.0
        %1972 = vmatpush1.msra.mxu0 0.0
        %1973 = vmatprep.subr.mxu0 0.0
        %1974 = vmatpush1.msra.mxu0 0.0
        %1975 = vmatprep.subr.mxu0 0.0
        %1976 = vmatpush1.msra.mxu0 0.0
        %1977 = vmatprep.subr.mxu0 0.0
        %1978 = vmatpush1.msra.mxu0 0.0
        %1979 = vmatprep.subr.mxu0 0.0
        %1980 = vmatpush1.msra.mxu0 0.0
        %1981 = vmatprep.subr.mxu0 0.0
        %1982 = vmatpush1.msra.mxu0 0.0
        %1983 = vmatprep.subr.mxu0 0.0
        %1984 = vmatpush1.msra.mxu0 0.0
        %1985 = vmatprep.subr.mxu0 0.0
        %1986 = vmatpush1.msra.mxu0 0.0
        %1987 = vmatprep.subr.mxu0 0.0
        %1988 = vmatpush1.msra.mxu0 0.0
        %1989 = vmatprep.subr.mxu0 0.0
        %1990 = vmatpush1.msra.mxu0 0.0
        %1991 = vmatprep.subr.mxu0 0.0
        %1992 = vmatpush1.msra.mxu0 0.0
        %1993 = vmatprep.subr.mxu0 0.0
        %1994 = vmatpush1.msra.mxu0 0.0
        %1995 = vmatprep.subr.mxu0 0.0
        %1996 = vmatpush1.msra.mxu0 0.0
        %1997 = vmatprep.subr.mxu0 0.0
        %1998 = vmatpush1.msra.mxu0 0.0
        %1999 = vmatprep.subr.mxu0 0.0
        %2000 = vmatpush1.msra.mxu0 0.0
        %2001 = vmatprep.subr.mxu0 0.0
        %2002 = vmatpush1.msra.mxu0 0.0
        %2003 = vmatprep.subr.mxu0 0.0
        %2004 = vmatpush1.msra.mxu0 0.0
        %2005 = vmatprep.subr.mxu0 0.0
        %2006 = vmatpush1.msra.mxu0 0.0
        %2007 = vmatprep.subr.mxu0 0.0
        %2008 = vmatpush1.msra.mxu0 0.0
        %2009 = vmatprep.subr.mxu0 0.0
        %2010 = vmatpush1.msra.mxu0 0.0
        %2011 = vmatprep.subr.mxu0 0.0
        %2012 = vmatpush1.msra.mxu0 0.0
        %2013 = vmatprep.subr.mxu0 0.0
        %2014 = vmatpush1.msra.mxu0 0.0
        %2015 = vmatprep.subr.mxu0 0.0
        %2016 = vmatpush1.msra.mxu0 0.0
        %2017 = vmatprep.subr.mxu0 0.0
        %2018 = vmatpush1.msra.mxu0 0.0
        %2019 = vmatprep.subr.mxu0 0.0
        %2020 = vmatpush1.msra.mxu0 0.0
        %2021 = vmatprep.mubr.f32.mxu0 0.0
        %2022 = vmatmul.mubr.f32.gmra.mrb[0].mxu0 %v1815
        %v2023 = vpop.f32.mrb[0].mxu0
        %v2024 = vadd.f32 %v898, %v2023
        %v2025 = vpop.f32.mrb[0].mxu0
        %2026 = vdwg.mxu0
        %v2027 = vadd.f32 %v1211, %v1884
        %v2028 = vxor.u32 %v2027, 2147483648
        %v2029 = vmul.f32 %v2028, 1.442695
        %v2030 = vpow.pop %v2029
        %v2031 = vadd.f32 %v2030, 1.0
        %v2032 = vrcp.pop %v2031
        %v2033 = vmul.f32 1.0, %v2032
        %v2034 = vadd.f32 %v1281, %v1954
        %v2035 = vxor.u32 %v2034, 2147483648
        %v2036 = vmul.f32 %v2035, 1.442695
        %v2037 = vpow.pop %v2036
        %v2038 = vadd.f32 %v2037, 1.0
        %v2039 = vrcp.pop %v2038
        %v2040 = vmul.f32 1.0, %v2039
        %v2041 = vmul.f32 %v2033, %v2024
        %v2042 = vadd.f32 %v1351, %v2041
        %v2043 = vtanh.pop %v2042
        %v2044 = vsub.f32 1.0, %v2040
        %v2045 = vmul.f32 %v2044, %v2043
        %v2046 = vmul.f32 %v2040, %v1592
        %v2047 = vadd.f32 %v2045, %v2046
        %vm2048 = vcmp.gt.f32.partialorder %v1140, 0.5
        %v2049 = vsel %vm2048, 1, 0
        %vm2050 = vcmp.eq.s32.totalorder %v2049, 1
        %v2051 = vsel %vm2050, %v2047, %v1592
        %s2052 = scalar_lea.vmem %s700, 24 [#allocation3]
        %v2053 = vld [vmem:[%s2052] sm:$0xff]
        %v2054 = vsel %vm902, %v2053, -inf
        %2055 = vmax.xlane.f32.xlu0 %v2054
        %v2056 = vpop.xlane.xlu0 %2055
        %vm2057 = vcmp.gt.f32.partialorder %v2056, 0.5
        %v2058 = vsel %vm2057, 1, 0
        %v2059 = vcvt.s32.f32 %v2058
        %v2061 = vsel %vm909, %v2053, 0
        %2063 = vmatprep.subr.mxu0 0.0
        %2064 = vmatpush1.msra.mxu0 %v832
        %2065 = vmatprep.subr.mxu0 0.0
        %2066 = vmatpush1.msra.mxu0 %v915
        %2067 = vmatprep.subr.mxu0 0.0
        %2068 = vmatpush1.msra.mxu0 0.0
        %2069 = vmatprep.subr.mxu0 0.0
        %2070 = vmatpush1.msra.mxu0 0.0
        %2071 = vmatprep.subr.mxu0 0.0
        %2072 = vmatpush1.msra.mxu0 0.0
        %2073 = vmatprep.subr.mxu0 0.0
        %2074 = vmatpush1.msra.mxu0 0.0
        %2075 = vmatprep.subr.mxu0 0.0
        %2076 = vmatpush1.msra.mxu0 0.0
        %2077 = vmatprep.subr.mxu0 0.0
        %2078 = vmatpush1.msra.mxu0 0.0
        %2079 = vmatprep.subr.mxu0 0.0
        %2080 = vmatpush1.msra.mxu0 0.0
        %2081 = vmatprep.subr.mxu0 0.0
        %2082 = vmatpush1.msra.mxu0 0.0
        %2083 = vmatprep.subr.mxu0 0.0
        %2084 = vmatpush1.msra.mxu0 0.0
        %2085 = vmatprep.subr.mxu0 0.0
        %2086 = vmatpush1.msra.mxu0 0.0
        %2087 = vmatprep.subr.mxu0 0.0
        %2088 = vmatpush1.msra.mxu0 0.0
        %2089 = vmatprep.subr.mxu0 0.0
        %2090 = vmatpush1.msra.mxu0 0.0
        %2091 = vmatprep.subr.mxu0 0.0
        %2092 = vmatpush1.msra.mxu0 0.0
        %2093 = vmatprep.subr.mxu0 0.0
        %2094 = vmatpush1.msra.mxu0 0.0
        %2095 = vmatprep.subr.mxu0 0.0
        %2096 = vmatpush1.msra.mxu0 0.0
        %2097 = vmatprep.subr.mxu0 0.0
        %2098 = vmatpush1.msra.mxu0 0.0
        %2099 = vmatprep.subr.mxu0 0.0
        %2100 = vmatpush1.msra.mxu0 0.0
        %2101 = vmatprep.subr.mxu0 0.0
        %2102 = vmatpush1.msra.mxu0 0.0
        %2103 = vmatprep.subr.mxu0 0.0
        %2104 = vmatpush1.msra.mxu0 0.0
        %2105 = vmatprep.subr.mxu0 0.0
        %2106 = vmatpush1.msra.mxu0 0.0
        %2107 = vmatprep.subr.mxu0 0.0
        %2108 = vmatpush1.msra.mxu0 0.0
        %2109 = vmatprep.subr.mxu0 0.0
        %2110 = vmatpush1.msra.mxu0 0.0
        %2111 = vmatprep.subr.mxu0 0.0
        %2112 = vmatpush1.msra.mxu0 0.0
        %2113 = vmatprep.subr.mxu0 0.0
        %2114 = vmatpush1.msra.mxu0 0.0
        %2115 = vmatprep.subr.mxu0 0.0
        %2116 = vmatpush1.msra.mxu0 0.0
        %2117 = vmatprep.subr.mxu0 0.0
        %2118 = vmatpush1.msra.mxu0 0.0
        %2119 = vmatprep.subr.mxu0 0.0
        %2120 = vmatpush1.msra.mxu0 0.0
        %2121 = vmatprep.subr.mxu0 0.0
        %2122 = vmatpush1.msra.mxu0 0.0
        %2123 = vmatprep.subr.mxu0 0.0
        %2124 = vmatpush1.msra.mxu0 0.0
        %2125 = vmatprep.subr.mxu0 0.0
        %2126 = vmatpush1.msra.mxu0 0.0
        %2127 = vmatprep.mubr.f32.mxu0 0.0
        %2128 = vmatmul.mubr.f32.gmra.mrb[0].mxu0 %v2061
        %v2129 = vpop.f32.mrb[0].mxu0
        %v2130 = vadd.f32 %v859, %v2129
        %v2131 = vpop.f32.mrb[0].mxu0
        %2132 = vdwg.mxu0
        %2133 = vmatprep.subr.mxu0 0.0
        %2134 = vmatpush1.msra.mxu0 %v835
        %2135 = vmatprep.subr.mxu0 0.0
        %2136 = vmatpush1.msra.mxu0 %v988
        %2137 = vmatprep.subr.mxu0 0.0
        %2138 = vmatpush1.msra.mxu0 0.0
        %2139 = vmatprep.subr.mxu0 0.0
        %2140 = vmatpush1.msra.mxu0 0.0
        %2141 = vmatprep.subr.mxu0 0.0
        %2142 = vmatpush1.msra.mxu0 0.0
        %2143 = vmatprep.subr.mxu0 0.0
        %2144 = vmatpush1.msra.mxu0 0.0
        %2145 = vmatprep.subr.mxu0 0.0
        %2146 = vmatpush1.msra.mxu0 0.0
        %2147 = vmatprep.subr.mxu0 0.0
        %2148 = vmatpush1.msra.mxu0 0.0
        %2149 = vmatprep.subr.mxu0 0.0
        %2150 = vmatpush1.msra.mxu0 0.0
        %2151 = vmatprep.subr.mxu0 0.0
        %2152 = vmatpush1.msra.mxu0 0.0
        %2153 = vmatprep.subr.mxu0 0.0
        %2154 = vmatpush1.msra.mxu0 0.0
        %2155 = vmatprep.subr.mxu0 0.0
        %2156 = vmatpush1.msra.mxu0 0.0
        %2157 = vmatprep.subr.mxu0 0.0
        %2158 = vmatpush1.msra.mxu0 0.0
        %2159 = vmatprep.subr.mxu0 0.0
        %2160 = vmatpush1.msra.mxu0 0.0
        %2161 = vmatprep.subr.mxu0 0.0
        %2162 = vmatpush1.msra.mxu0 0.0
        %2163 = vmatprep.subr.mxu0 0.0
        %2164 = vmatpush1.msra.mxu0 0.0
        %2165 = vmatprep.subr.mxu0 0.0
        %2166 = vmatpush1.msra.mxu0 0.0
        %2167 = vmatprep.subr.mxu0 0.0
        %2168 = vmatpush1.msra.mxu0 0.0
        %2169 = vmatprep.subr.mxu0 0.0
        %2170 = vmatpush1.msra.mxu0 0.0
        %2171 = vmatprep.subr.mxu0 0.0
        %2172 = vmatpush1.msra.mxu0 0.0
        %2173 = vmatprep.subr.mxu0 0.0
        %2174 = vmatpush1.msra.mxu0 0.0
        %2175 = vmatprep.subr.mxu0 0.0
        %2176 = vmatpush1.msra.mxu0 0.0
        %2177 = vmatprep.subr.mxu0 0.0
        %2178 = vmatpush1.msra.mxu0 0.0
        %2179 = vmatprep.subr.mxu0 0.0
        %2180 = vmatpush1.msra.mxu0 0.0
        %2181 = vmatprep.subr.mxu0 0.0
        %2182 = vmatpush1.msra.mxu0 0.0
        %2183 = vmatprep.subr.mxu0 0.0
        %2184 = vmatpush1.msra.mxu0 0.0
        %2185 = vmatprep.subr.mxu0 0.0
        %2186 = vmatpush1.msra.mxu0 0.0
        %2187 = vmatprep.subr.mxu0 0.0
        %2188 = vmatpush1.msra.mxu0 0.0
        %2189 = vmatprep.subr.mxu0 0.0
        %2190 = vmatpush1.msra.mxu0 0.0
        %2191 = vmatprep.subr.mxu0 0.0
        %2192 = vmatpush1.msra.mxu0 0.0
        %2193 = vmatprep.subr.mxu0 0.0
        %2194 = vmatpush1.msra.mxu0 0.0
        %2195 = vmatprep.subr.mxu0 0.0
        %2196 = vmatpush1.msra.mxu0 0.0
        %2197 = vmatprep.mubr.f32.mxu0 0.0
        %2198 = vmatmul.mubr.f32.gmra.mrb[0].mxu0 %v2061
        %v2199 = vpop.f32.mrb[0].mxu0
        %v2200 = vadd.f32 %v867, %v2199
        %v2201 = vpop.f32.mrb[0].mxu0
        %2202 = vdwg.mxu0
        %2203 = vmatprep.subr.mxu0 0.0
        %2204 = vmatpush1.msra.mxu0 %v838
        %2205 = vmatprep.subr.mxu0 0.0
        %2206 = vmatpush1.msra.mxu0 %v1061
        %2207 = vmatprep.subr.mxu0 0.0
        %2208 = vmatpush1.msra.mxu0 0.0
        %2209 = vmatprep.subr.mxu0 0.0
        %2210 = vmatpush1.msra.mxu0 0.0
        %2211 = vmatprep.subr.mxu0 0.0
        %2212 = vmatpush1.msra.mxu0 0.0
        %2213 = vmatprep.subr.mxu0 0.0
        %2214 = vmatpush1.msra.mxu0 0.0
        %2215 = vmatprep.subr.mxu0 0.0
        %2216 = vmatpush1.msra.mxu0 0.0
        %2217 = vmatprep.subr.mxu0 0.0
        %2218 = vmatpush1.msra.mxu0 0.0
        %2219 = vmatprep.subr.mxu0 0.0
        %2220 = vmatpush1.msra.mxu0 0.0
        %2221 = vmatprep.subr.mxu0 0.0
        %2222 = vmatpush1.msra.mxu0 0.0
        %2223 = vmatprep.subr.mxu0 0.0
        %2224 = vmatpush1.msra.mxu0 0.0
        %2225 = vmatprep.subr.mxu0 0.0
        %2226 = vmatpush1.msra.mxu0 0.0
        %2227 = vmatprep.subr.mxu0 0.0
        %2228 = vmatpush1.msra.mxu0 0.0
        %2229 = vmatprep.subr.mxu0 0.0
        %2230 = vmatpush1.msra.mxu0 0.0
        %2231 = vmatprep.subr.mxu0 0.0
        %2232 = vmatpush1.msra.mxu0 0.0
        %2233 = vmatprep.subr.mxu0 0.0
        %2234 = vmatpush1.msra.mxu0 0.0
        %2235 = vmatprep.subr.mxu0 0.0
        %2236 = vmatpush1.msra.mxu0 0.0
        %2237 = vmatprep.subr.mxu0 0.0
        %2238 = vmatpush1.msra.mxu0 0.0
        %2239 = vmatprep.subr.mxu0 0.0
        %2240 = vmatpush1.msra.mxu0 0.0
        %2241 = vmatprep.subr.mxu0 0.0
        %2242 = vmatpush1.msra.mxu0 0.0
        %2243 = vmatprep.subr.mxu0 0.0
        %2244 = vmatpush1.msra.mxu0 0.0
        %2245 = vmatprep.subr.mxu0 0.0
        %2246 = vmatpush1.msra.mxu0 0.0
        %2247 = vmatprep.subr.mxu0 0.0
        %2248 = vmatpush1.msra.mxu0 0.0
        %2249 = vmatprep.subr.mxu0 0.0
        %2250 = vmatpush1.msra.mxu0 0.0
        %2251 = vmatprep.subr.mxu0 0.0
        %2252 = vmatpush1.msra.mxu0 0.0
        %2253 = vmatprep.subr.mxu0 0.0
        %2254 = vmatpush1.msra.mxu0 0.0
        %2255 = vmatprep.subr.mxu0 0.0
        %2256 = vmatpush1.msra.mxu0 0.0
        %2257 = vmatprep.subr.mxu0 0.0
        %2258 = vmatpush1.msra.mxu0 0.0
        %2259 = vmatprep.subr.mxu0 0.0
        %2260 = vmatpush1.msra.mxu0 0.0
        %2261 = vmatprep.subr.mxu0 0.0
        %2262 = vmatpush1.msra.mxu0 0.0
        %2263 = vmatprep.subr.mxu0 0.0
        %2264 = vmatpush1.msra.mxu0 0.0
        %2265 = vmatprep.subr.mxu0 0.0
        %2266 = vmatpush1.msra.mxu0 0.0
        %2267 = vmatprep.mubr.f32.mxu0 0.0
        %2268 = vmatmul.mubr.f32.gmra.mrb[0].mxu0 %v2061
        %v2269 = vpop.f32.mrb[0].mxu0
        %v2270 = vadd.f32 %v875, %v2269
        %v2271 = vpop.f32.mrb[0].mxu0
        %2272 = vdwg.mxu0
        %v2274 = vsel %vm1354, %v2051, 0
        %2276 = vmatprep.subr.mxu0 0.0
        %2277 = vmatpush1.msra.mxu0 %v840
        %2278 = vmatprep.subr.mxu0 0.0
        %2279 = vmatpush1.msra.mxu0 %v841
        %2280 = vmatprep.subr.mxu0 0.0
        %2281 = vmatpush1.msra.mxu0 %v842
        %2282 = vmatprep.subr.mxu0 0.0
        %2283 = vmatpush1.msra.mxu0 %v843
        %2284 = vmatprep.subr.mxu0 0.0
        %2285 = vmatpush1.msra.mxu0 0.0
        %2286 = vmatprep.subr.mxu0 0.0
        %2287 = vmatpush1.msra.mxu0 0.0
        %2288 = vmatprep.subr.mxu0 0.0
        %2289 = vmatpush1.msra.mxu0 0.0
        %2290 = vmatprep.subr.mxu0 0.0
        %2291 = vmatpush1.msra.mxu0 0.0
        %2292 = vmatprep.subr.mxu0 0.0
        %2293 = vmatpush1.msra.mxu0 0.0
        %2294 = vmatprep.subr.mxu0 0.0
        %2295 = vmatpush1.msra.mxu0 0.0
        %2296 = vmatprep.subr.mxu0 0.0
        %2297 = vmatpush1.msra.mxu0 0.0
        %2298 = vmatprep.subr.mxu0 0.0
        %2299 = vmatpush1.msra.mxu0 0.0
        %2300 = vmatprep.subr.mxu0 0.0
        %2301 = vmatpush1.msra.mxu0 0.0
        %2302 = vmatprep.subr.mxu0 0.0
        %2303 = vmatpush1.msra.mxu0 0.0
        %2304 = vmatprep.subr.mxu0 0.0
        %2305 = vmatpush1.msra.mxu0 0.0
        %2306 = vmatprep.subr.mxu0 0.0
        %2307 = vmatpush1.msra.mxu0 0.0
        %2308 = vmatprep.subr.mxu0 0.0
        %2309 = vmatpush1.msra.mxu0 0.0
        %2310 = vmatprep.subr.mxu0 0.0
        %2311 = vmatpush1.msra.mxu0 0.0
        %2312 = vmatprep.subr.mxu0 0.0
        %2313 = vmatpush1.msra.mxu0 0.0
        %2314 = vmatprep.subr.mxu0 0.0
        %2315 = vmatpush1.msra.mxu0 0.0
        %2316 = vmatprep.subr.mxu0 0.0
        %2317 = vmatpush1.msra.mxu0 0.0
        %2318 = vmatprep.subr.mxu0 0.0
        %2319 = vmatpush1.msra.mxu0 0.0
        %2320 = vmatprep.subr.mxu0 0.0
        %2321 = vmatpush1.msra.mxu0 0.0
        %2322 = vmatprep.subr.mxu0 0.0
        %2323 = vmatpush1.msra.mxu0 0.0
        %2324 = vmatprep.subr.mxu0 0.0
        %2325 = vmatpush1.msra.mxu0 0.0
        %2326 = vmatprep.subr.mxu0 0.0
        %2327 = vmatpush1.msra.mxu0 0.0
        %2328 = vmatprep.subr.mxu0 0.0
        %2329 = vmatpush1.msra.mxu0 0.0
        %2330 = vmatprep.subr.mxu0 0.0
        %2331 = vmatpush1.msra.mxu0 0.0
        %2332 = vmatprep.subr.mxu0 0.0
        %2333 = vmatpush1.msra.mxu0 0.0
        %2334 = vmatprep.subr.mxu0 0.0
        %2335 = vmatpush1.msra.mxu0 0.0
        %2336 = vmatprep.subr.mxu0 0.0
        %2337 = vmatpush1.msra.mxu0 0.0
        %2338 = vmatprep.subr.mxu0 0.0
        %2339 = vmatpush1.msra.mxu0 0.0
        %2340 = vmatprep.mubr.f32.mxu0 0.0
        %2341 = vmatmul.mubr.f32.gmra.mrb[0].mxu0 %v2274
        %v2342 = vpop.f32.mrb[0].mxu0
        %v2343 = vadd.f32 %v882, %v2342
        %v2344 = vpop.f32.mrb[0].mxu0
        %2345 = vdwg.mxu0
        %2346 = vmatprep.subr.mxu0 0.0
        %2347 = vmatpush1.msra.mxu0 %v845
        %2348 = vmatprep.subr.mxu0 0.0
        %2349 = vmatpush1.msra.mxu0 %v846
        %2350 = vmatprep.subr.mxu0 0.0
        %2351 = vmatpush1.msra.mxu0 %v847
        %2352 = vmatprep.subr.mxu0 0.0
        %2353 = vmatpush1.msra.mxu0 %v848
        %2354 = vmatprep.subr.mxu0 0.0
        %2355 = vmatpush1.msra.mxu0 0.0
        %2356 = vmatprep.subr.mxu0 0.0
        %2357 = vmatpush1.msra.mxu0 0.0
        %2358 = vmatprep.subr.mxu0 0.0
        %2359 = vmatpush1.msra.mxu0 0.0
        %2360 = vmatprep.subr.mxu0 0.0
        %2361 = vmatpush1.msra.mxu0 0.0
        %2362 = vmatprep.subr.mxu0 0.0
        %2363 = vmatpush1.msra.mxu0 0.0
        %2364 = vmatprep.subr.mxu0 0.0
        %2365 = vmatpush1.msra.mxu0 0.0
        %2366 = vmatprep.subr.mxu0 0.0
        %2367 = vmatpush1.msra.mxu0 0.0
        %2368 = vmatprep.subr.mxu0 0.0
        %2369 = vmatpush1.msra.mxu0 0.0
        %2370 = vmatprep.subr.mxu0 0.0
        %2371 = vmatpush1.msra.mxu0 0.0
        %2372 = vmatprep.subr.mxu0 0.0
        %2373 = vmatpush1.msra.mxu0 0.0
        %2374 = vmatprep.subr.mxu0 0.0
        %2375 = vmatpush1.msra.mxu0 0.0
        %2376 = vmatprep.subr.mxu0 0.0
        %2377 = vmatpush1.msra.mxu0 0.0
        %2378 = vmatprep.subr.mxu0 0.0
        %2379 = vmatpush1.msra.mxu0 0.0
        %2380 = vmatprep.subr.mxu0 0.0
        %2381 = vmatpush1.msra.mxu0 0.0
        %2382 = vmatprep.subr.mxu0 0.0
        %2383 = vmatpush1.msra.mxu0 0.0
        %2384 = vmatprep.subr.mxu0 0.0
        %2385 = vmatpush1.msra.mxu0 0.0
        %2386 = vmatprep.subr.mxu0 0.0
        %2387 = vmatpush1.msra.mxu0 0.0
        %2388 = vmatprep.subr.mxu0 0.0
        %2389 = vmatpush1.msra.mxu0 0.0
        %2390 = vmatprep.subr.mxu0 0.0
        %2391 = vmatpush1.msra.mxu0 0.0
        %2392 = vmatprep.subr.mxu0 0.0
        %2393 = vmatpush1.msra.mxu0 0.0
        %2394 = vmatprep.subr.mxu0 0.0
        %2395 = vmatpush1.msra.mxu0 0.0
        %2396 = vmatprep.subr.mxu0 0.0
        %2397 = vmatpush1.msra.mxu0 0.0
        %2398 = vmatprep.subr.mxu0 0.0
        %2399 = vmatpush1.msra.mxu0 0.0
        %2400 = vmatprep.subr.mxu0 0.0
        %2401 = vmatpush1.msra.mxu0 0.0
        %2402 = vmatprep.subr.mxu0 0.0
        %2403 = vmatpush1.msra.mxu0 0.0
        %2404 = vmatprep.subr.mxu0 0.0
        %2405 = vmatpush1.msra.mxu0 0.0
        %2406 = vmatprep.subr.mxu0 0.0
        %2407 = vmatpush1.msra.mxu0 0.0
        %2408 = vmatprep.subr.mxu0 0.0
        %2409 = vmatpush1.msra.mxu0 0.0
        %2410 = vmatprep.mubr.f32.mxu0 0.0
        %2411 = vmatmul.mubr.f32.gmra.mrb[0].mxu0 %v2274
        %v2412 = vpop.f32.mrb[0].mxu0
        %v2413 = vadd.f32 %v890, %v2412
        %v2414 = vpop.f32.mrb[0].mxu0
        %2415 = vdwg.mxu0
        %2416 = vmatprep.subr.mxu0 0.0
        %2417 = vmatpush1.msra.mxu0 %v850
        %2418 = vmatprep.subr.mxu0 0.0
        %2419 = vmatpush1.msra.mxu0 %v851
        %2420 = vmatprep.subr.mxu0 0.0
        %2421 = vmatpush1.msra.mxu0 %v852
        %2422 = vmatprep.subr.mxu0 0.0
        %2423 = vmatpush1.msra.mxu0 %v853
        %2424 = vmatprep.subr.mxu0 0.0
        %2425 = vmatpush1.msra.mxu0 0.0
        %2426 = vmatprep.subr.mxu0 0.0
        %2427 = vmatpush1.msra.mxu0 0.0
        %2428 = vmatprep.subr.mxu0 0.0
        %2429 = vmatpush1.msra.mxu0 0.0
        %2430 = vmatprep.subr.mxu0 0.0
        %2431 = vmatpush1.msra.mxu0 0.0
        %2432 = vmatprep.subr.mxu0 0.0
        %2433 = vmatpush1.msra.mxu0 0.0
        %2434 = vmatprep.subr.mxu0 0.0
        %2435 = vmatpush1.msra.mxu0 0.0
        %2436 = vmatprep.subr.mxu0 0.0
        %2437 = vmatpush1.msra.mxu0 0.0
        %2438 = vmatprep.subr.mxu0 0.0
        %2439 = vmatpush1.msra.mxu0 0.0
        %2440 = vmatprep.subr.mxu0 0.0
        %2441 = vmatpush1.msra.mxu0 0.0
        %2442 = vmatprep.subr.mxu0 0.0
        %2443 = vmatpush1.msra.mxu0 0.0
        %2444 = vmatprep.subr.mxu0 0.0
        %2445 = vmatpush1.msra.mxu0 0.0
        %2446 = vmatprep.subr.mxu0 0.0
        %2447 = vmatpush1.msra.mxu0 0.0
        %2448 = vmatprep.subr.mxu0 0.0
        %2449 = vmatpush1.msra.mxu0 0.0
        %2450 = vmatprep.subr.mxu0 0.0
        %2451 = vmatpush1.msra.mxu0 0.0
        %2452 = vmatprep.subr.mxu0 0.0
        %2453 = vmatpush1.msra.mxu0 0.0
        %2454 = vmatprep.subr.mxu0 0.0
        %2455 = vmatpush1.msra.mxu0 0.0
        %2456 = vmatprep.subr.mxu0 0.0
        %2457 = vmatpush1.msra.mxu0 0.0
        %2458 = vmatprep.subr.mxu0 0.0
        %2459 = vmatpush1.msra.mxu0 0.0
        %2460 = vmatprep.subr.mxu0 0.0
        %2461 = vmatpush1.msra.mxu0 0.0
        %2462 = vmatprep.subr.mxu0 0.0
        %2463 = vmatpush1.msra.mxu0 0.0
        %2464 = vmatprep.subr.mxu0 0.0
        %2465 = vmatpush1.msra.mxu0 0.0
        %2466 = vmatprep.subr.mxu0 0.0
        %2467 = vmatpush1.msra.mxu0 0.0
        %2468 = vmatprep.subr.mxu0 0.0
        %2469 = vmatpush1.msra.mxu0 0.0
        %2470 = vmatprep.subr.mxu0 0.0
        %2471 = vmatpush1.msra.mxu0 0.0
        %2472 = vmatprep.subr.mxu0 0.0
        %2473 = vmatpush1.msra.mxu0 0.0
        %2474 = vmatprep.subr.mxu0 0.0
        %2475 = vmatpush1.msra.mxu0 0.0
        %2476 = vmatprep.subr.mxu0 0.0
        %2477 = vmatpush1.msra.mxu0 0.0
        %2478 = vmatprep.subr.mxu0 0.0
        %2479 = vmatpush1.msra.mxu0 0.0
        %2480 = vmatprep.mubr.f32.mxu0 0.0
        %2481 = vmatmul.mubr.f32.gmra.mrb[0].mxu0 %v2274
        %v2482 = vpop.f32.mrb[0].mxu0
        %v2483 = vadd.f32 %v898, %v2482
        %v2484 = vpop.f32.mrb[0].mxu0
        %2485 = vdwg.mxu0
        %v2486 = vadd.f32 %v1671, %v2343
        %v2487 = vxor.u32 %v2486, 2147483648
        %v2488 = vmul.f32 %v2487, 1.442695
        %v2489 = vpow.pop %v2488
        %v2490 = vadd.f32 %v2489, 1.0
        %v2491 = vrcp.pop %v2490
        %v2492 = vmul.f32 1.0, %v2491
        %v2493 = vadd.f32 %v1741, %v2413
        %v2494 = vxor.u32 %v2493, 2147483648
        %v2495 = vmul.f32 %v2494, 1.442695
        %v2496 = vpow.pop %v2495
        %v2497 = vadd.f32 %v2496, 1.0
        %v2498 = vrcp.pop %v2497
        %v2499 = vmul.f32 1.0, %v2498
        %v2500 = vmul.f32 %v2492, %v2483
        %v2501 = vadd.f32 %v1811, %v2500
        %v2502 = vtanh.pop %v2501
        %v2503 = vsub.f32 1.0, %v2499
        %v2504 = vmul.f32 %v2503, %v2502
        %v2505 = vmul.f32 %v2499, %v2051
        %v2506 = vadd.f32 %v2504, %v2505
        %vm2507 = vcmp.gt.f32.partialorder %v1600, 0.5
        %v2508 = vsel %vm2507, 1, 0
        %vm2509 = vcmp.eq.s32.totalorder %v2508, 1
        %v2510 = vsel %vm2509, %v2506, %v2051
        %v2512 = vsel %vm1354, %v2510, 0
        %2514 = vmatprep.subr.mxu0 0.0
        %2515 = vmatpush1.msra.mxu0 %v840
        %2516 = vmatprep.subr.mxu0 0.0
        %2517 = vmatpush1.msra.mxu0 %v841
        %2518 = vmatprep.subr.mxu0 0.0
        %2519 = vmatpush1.msra.mxu0 %v842
        %2520 = vmatprep.subr.mxu0 0.0
        %2521 = vmatpush1.msra.mxu0 %v843
        %2522 = vmatprep.subr.mxu0 0.0
        %2523 = vmatpush1.msra.mxu0 0.0
        %2524 = vmatprep.subr.mxu0 0.0
        %2525 = vmatpush1.msra.mxu0 0.0
        %2526 = vmatprep.subr.mxu0 0.0
        %2527 = vmatpush1.msra.mxu0 0.0
        %2528 = vmatprep.subr.mxu0 0.0
        %2529 = vmatpush1.msra.mxu0 0.0
        %2530 = vmatprep.subr.mxu0 0.0
        %2531 = vmatpush1.msra.mxu0 0.0
        %2532 = vmatprep.subr.mxu0 0.0
        %2533 = vmatpush1.msra.mxu0 0.0
        %2534 = vmatprep.subr.mxu0 0.0
        %2535 = vmatpush1.msra.mxu0 0.0
        %2536 = vmatprep.subr.mxu0 0.0
        %2537 = vmatpush1.msra.mxu0 0.0
        %2538 = vmatprep.subr.mxu0 0.0
        %2539 = vmatpush1.msra.mxu0 0.0
        %2540 = vmatprep.subr.mxu0 0.0
        %2541 = vmatpush1.msra.mxu0 0.0
        %2542 = vmatprep.subr.mxu0 0.0
        %2543 = vmatpush1.msra.mxu0 0.0
        %2544 = vmatprep.subr.mxu0 0.0
        %2545 = vmatpush1.msra.mxu0 0.0
        %2546 = vmatprep.subr.mxu0 0.0
        %2547 = vmatpush1.msra.mxu0 0.0
        %2548 = vmatprep.subr.mxu0 0.0
        %2549 = vmatpush1.msra.mxu0 0.0
        %2550 = vmatprep.subr.mxu0 0.0
        %2551 = vmatpush1.msra.mxu0 0.0
        %2552 = vmatprep.subr.mxu0 0.0
        %2553 = vmatpush1.msra.mxu0 0.0
        %2554 = vmatprep.subr.mxu0 0.0
        %2555 = vmatpush1.msra.mxu0 0.0
        %2556 = vmatprep.subr.mxu0 0.0
        %2557 = vmatpush1.msra.mxu0 0.0
        %2558 = vmatprep.subr.mxu0 0.0
        %2559 = vmatpush1.msra.mxu0 0.0
        %2560 = vmatprep.subr.mxu0 0.0
        %2561 = vmatpush1.msra.mxu0 0.0
        %2562 = vmatprep.subr.mxu0 0.0
        %2563 = vmatpush1.msra.mxu0 0.0
        %2564 = vmatprep.subr.mxu0 0.0
        %2565 = vmatpush1.msra.mxu0 0.0
        %2566 = vmatprep.subr.mxu0 0.0
        %2567 = vmatpush1.msra.mxu0 0.0
        %2568 = vmatprep.subr.mxu0 0.0
        %2569 = vmatpush1.msra.mxu0 0.0
        %2570 = vmatprep.subr.mxu0 0.0
        %2571 = vmatpush1.msra.mxu0 0.0
        %2572 = vmatprep.subr.mxu0 0.0
        %2573 = vmatpush1.msra.mxu0 0.0
        %2574 = vmatprep.subr.mxu0 0.0
        %2575 = vmatpush1.msra.mxu0 0.0
        %2576 = vmatprep.subr.mxu0 0.0
        %2577 = vmatpush1.msra.mxu0 0.0
        %2578 = vmatprep.mubr.f32.mxu0 0.0
        %2579 = vmatmul.mubr.f32.gmra.mrb[0].mxu0 %v2512
        %v2580 = vpop.f32.mrb[0].mxu0
        %v2581 = vadd.f32 %v882, %v2580
        %v2582 = vpop.f32.mrb[0].mxu0
        %2583 = vdwg.mxu0
        %2584 = vmatprep.subr.mxu0 0.0
        %2585 = vmatpush1.msra.mxu0 %v845
        %2586 = vmatprep.subr.mxu0 0.0
        %2587 = vmatpush1.msra.mxu0 %v846
        %2588 = vmatprep.subr.mxu0 0.0
        %2589 = vmatpush1.msra.mxu0 %v847
        %2590 = vmatprep.subr.mxu0 0.0
        %2591 = vmatpush1.msra.mxu0 %v848
        %2592 = vmatprep.subr.mxu0 0.0
        %2593 = vmatpush1.msra.mxu0 0.0
        %2594 = vmatprep.subr.mxu0 0.0
        %2595 = vmatpush1.msra.mxu0 0.0
        %2596 = vmatprep.subr.mxu0 0.0
        %2597 = vmatpush1.msra.mxu0 0.0
        %2598 = vmatprep.subr.mxu0 0.0
        %2599 = vmatpush1.msra.mxu0 0.0
        %2600 = vmatprep.subr.mxu0 0.0
        %2601 = vmatpush1.msra.mxu0 0.0
        %2602 = vmatprep.subr.mxu0 0.0
        %2603 = vmatpush1.msra.mxu0 0.0
        %2604 = vmatprep.subr.mxu0 0.0
        %2605 = vmatpush1.msra.mxu0 0.0
        %2606 = vmatprep.subr.mxu0 0.0
        %2607 = vmatpush1.msra.mxu0 0.0
        %2608 = vmatprep.subr.mxu0 0.0
        %2609 = vmatpush1.msra.mxu0 0.0
        %2610 = vmatprep.subr.mxu0 0.0
        %2611 = vmatpush1.msra.mxu0 0.0
        %2612 = vmatprep.subr.mxu0 0.0
        %2613 = vmatpush1.msra.mxu0 0.0
        %2614 = vmatprep.subr.mxu0 0.0
        %2615 = vmatpush1.msra.mxu0 0.0
        %2616 = vmatprep.subr.mxu0 0.0
        %2617 = vmatpush1.msra.mxu0 0.0
        %2618 = vmatprep.subr.mxu0 0.0
        %2619 = vmatpush1.msra.mxu0 0.0
        %2620 = vmatprep.subr.mxu0 0.0
        %2621 = vmatpush1.msra.mxu0 0.0
        %2622 = vmatprep.subr.mxu0 0.0
        %2623 = vmatpush1.msra.mxu0 0.0
        %2624 = vmatprep.subr.mxu0 0.0
        %2625 = vmatpush1.msra.mxu0 0.0
        %2626 = vmatprep.subr.mxu0 0.0
        %2627 = vmatpush1.msra.mxu0 0.0
        %2628 = vmatprep.subr.mxu0 0.0
        %2629 = vmatpush1.msra.mxu0 0.0
        %2630 = vmatprep.subr.mxu0 0.0
        %2631 = vmatpush1.msra.mxu0 0.0
        %2632 = vmatprep.subr.mxu0 0.0
        %2633 = vmatpush1.msra.mxu0 0.0
        %2634 = vmatprep.subr.mxu0 0.0
        %2635 = vmatpush1.msra.mxu0 0.0
        %2636 = vmatprep.subr.mxu0 0.0
        %2637 = vmatpush1.msra.mxu0 0.0
        %2638 = vmatprep.subr.mxu0 0.0
        %2639 = vmatpush1.msra.mxu0 0.0
        %2640 = vmatprep.subr.mxu0 0.0
        %2641 = vmatpush1.msra.mxu0 0.0
        %2642 = vmatprep.subr.mxu0 0.0
        %2643 = vmatpush1.msra.mxu0 0.0
        %2644 = vmatprep.subr.mxu0 0.0
        %2645 = vmatpush1.msra.mxu0 0.0
        %2646 = vmatprep.subr.mxu0 0.0
        %2647 = vmatpush1.msra.mxu0 0.0
        %2648 = vmatprep.mubr.f32.mxu0 0.0
        %2649 = vmatmul.mubr.f32.gmra.mrb[0].mxu0 %v2512
        %v2650 = vpop.f32.mrb[0].mxu0
        %v2651 = vadd.f32 %v890, %v2650
        %v2652 = vpop.f32.mrb[0].mxu0
        %2653 = vdwg.mxu0
        %2654 = vmatprep.subr.mxu0 0.0
        %2655 = vmatpush1.msra.mxu0 %v850
        %2656 = vmatprep.subr.mxu0 0.0
        %2657 = vmatpush1.msra.mxu0 %v851
        %2658 = vmatprep.subr.mxu0 0.0
        %2659 = vmatpush1.msra.mxu0 %v852
        %2660 = vmatprep.subr.mxu0 0.0
        %2661 = vmatpush1.msra.mxu0 %v853
        %2662 = vmatprep.subr.mxu0 0.0
        %2663 = vmatpush1.msra.mxu0 0.0
        %2664 = vmatprep.subr.mxu0 0.0
        %2665 = vmatpush1.msra.mxu0 0.0
        %2666 = vmatprep.subr.mxu0 0.0
        %2667 = vmatpush1.msra.mxu0 0.0
        %2668 = vmatprep.subr.mxu0 0.0
        %2669 = vmatpush1.msra.mxu0 0.0
        %2670 = vmatprep.subr.mxu0 0.0
        %2671 = vmatpush1.msra.mxu0 0.0
        %2672 = vmatprep.subr.mxu0 0.0
        %2673 = vmatpush1.msra.mxu0 0.0
        %2674 = vmatprep.subr.mxu0 0.0
        %2675 = vmatpush1.msra.mxu0 0.0
        %2676 = vmatprep.subr.mxu0 0.0
        %2677 = vmatpush1.msra.mxu0 0.0
        %2678 = vmatprep.subr.mxu0 0.0
        %2679 = vmatpush1.msra.mxu0 0.0
        %2680 = vmatprep.subr.mxu0 0.0
        %2681 = vmatpush1.msra.mxu0 0.0
        %2682 = vmatprep.subr.mxu0 0.0
        %2683 = vmatpush1.msra.mxu0 0.0
        %2684 = vmatprep.subr.mxu0 0.0
        %2685 = vmatpush1.msra.mxu0 0.0
        %2686 = vmatprep.subr.mxu0 0.0
        %2687 = vmatpush1.msra.mxu0 0.0
        %2688 = vmatprep.subr.mxu0 0.0
        %2689 = vmatpush1.msra.mxu0 0.0
        %2690 = vmatprep.subr.mxu0 0.0
        %2691 = vmatpush1.msra.mxu0 0.0
        %2692 = vmatprep.subr.mxu0 0.0
        %2693 = vmatpush1.msra.mxu0 0.0
        %2694 = vmatprep.subr.mxu0 0.0
        %2695 = vmatpush1.msra.mxu0 0.0
        %2696 = vmatprep.subr.mxu0 0.0
        %2697 = vmatpush1.msra.mxu0 0.0
        %2698 = vmatprep.subr.mxu0 0.0
        %2699 = vmatpush1.msra.mxu0 0.0
        %2700 = vmatprep.subr.mxu0 0.0
        %2701 = vmatpush1.msra.mxu0 0.0
        %2702 = vmatprep.subr.mxu0 0.0
        %2703 = vmatpush1.msra.mxu0 0.0
        %2704 = vmatprep.subr.mxu0 0.0
        %2705 = vmatpush1.msra.mxu0 0.0
        %2706 = vmatprep.subr.mxu0 0.0
        %2707 = vmatpush1.msra.mxu0 0.0
        %2708 = vmatprep.subr.mxu0 0.0
        %2709 = vmatpush1.msra.mxu0 0.0
        %2710 = vmatprep.subr.mxu0 0.0
        %2711 = vmatpush1.msra.mxu0 0.0
        %2712 = vmatprep.subr.mxu0 0.0
        %2713 = vmatpush1.msra.mxu0 0.0
        %2714 = vmatprep.subr.mxu0 0.0
        %2715 = vmatpush1.msra.mxu0 0.0
        %2716 = vmatprep.subr.mxu0 0.0
        %2717 = vmatpush1.msra.mxu0 0.0
        %2718 = vmatprep.mubr.f32.mxu0 0.0
        %2719 = vmatmul.mubr.f32.gmra.mrb[0].mxu0 %v2512
        %v2720 = vpop.f32.mrb[0].mxu0
        %v2721 = vadd.f32 %v898, %v2720
        %v2722 = vpop.f32.mrb[0].mxu0
        %2723 = vdwg.mxu0
        %v2724 = vadd.f32 %v2130, %v2581
        %v2725 = vxor.u32 %v2724, 2147483648
        %v2726 = vmul.f32 %v2725, 1.442695
        %v2727 = vpow.pop %v2726
        %v2728 = vadd.f32 %v2727, 1.0
        %v2729 = vrcp.pop %v2728
        %v2730 = vmul.f32 1.0, %v2729
        %v2731 = vadd.f32 %v2200, %v2651
        %v2732 = vxor.u32 %v2731, 2147483648
        %v2733 = vmul.f32 %v2732, 1.442695
        %v2734 = vpow.pop %v2733
        %v2735 = vadd.f32 %v2734, 1.0
        %v2736 = vrcp.pop %v2735
        %v2737 = vmul.f32 1.0, %v2736
        %v2738 = vmul.f32 %v2730, %v2721
        %v2739 = vadd.f32 %v2270, %v2738
        %v2740 = vtanh.pop %v2739
        %v2741 = vsub.f32 1.0, %v2737
        %v2742 = vmul.f32 %v2741, %v2740
        %v2743 = vmul.f32 %v2737, %v2510
        %v2744 = vadd.f32 %v2742, %v2743
        %vm2745 = vcmp.gt.f32.partialorder %v2059, 0.5
        %v2746 = vsel %vm2745, 1, 0
        %vm2747 = vcmp.eq.s32.totalorder %v2746, 1
        %v2748 = vsel %vm2747, %v2744, %v2510
        %2749 = vst.msk [vmem:[#allocation2] sm:$0xff] %vm1354, %v2748
        %p2750 = scmp.eq.s32.totalorder %s49, 2
        // Predicated region
        $region161: #{tpu_custom_call.1} parent=87 // pred_check
          %p2751 = pneg %p2750
        $region162: #{tpu_custom_call.1} parent=87 // pred_check_branch
          %2753 = sbr.rel (%p2751) target = $region164
        $region163: #{tpu_custom_call.1} parent=87 // pred_region
          %v2754 = vld [vmem:[%s709] sm:$0xff]
          %v2755 = vld [vmem:[#allocation14] sm:$0x1f]
          %v2756 = vld [vmem:[#allocation15] sm:$0x1]
          %v2758 = vlaneseq
          %v2759 = vshrl.u32 %v2758, 7
          %v2760 = vsub.s32 0, %v2759
          %v2761 = vrot.slane %v2756, %v2760
          %vm2763 = vcmask 39936
          %v2765 = vsel %vm2763, %v2754, 0
          %vm2767 = vcmask 1044480
          %v2769 = vsel %vm2767, %v2755, 0
          %2771 = vmatprep.subr.mxu0 0.0
          %2772 = vmatpush1.msra.mxu0 %v2769
          %2773 = vmatprep.subr.mxu0 0.0
          %2774 = vmatpush1.msra.mxu0 0.0
          %2775 = vmatprep.subr.mxu0 0.0
          %2776 = vmatpush1.msra.mxu0 0.0
          %2777 = vmatprep.subr.mxu0 0.0
          %2778 = vmatpush1.msra.mxu0 0.0
          %2779 = vmatprep.subr.mxu0 0.0
          %2780 = vmatpush1.msra.mxu0 0.0
          %2781 = vmatprep.subr.mxu0 0.0
          %2782 = vmatpush1.msra.mxu0 0.0
          %2783 = vmatprep.subr.mxu0 0.0
          %2784 = vmatpush1.msra.mxu0 0.0
          %2785 = vmatprep.subr.mxu0 0.0
          %2786 = vmatpush1.msra.mxu0 0.0
          %2787 = vmatprep.subr.mxu0 0.0
          %2788 = vmatpush1.msra.mxu0 0.0
          %2789 = vmatprep.subr.mxu0 0.0
          %2790 = vmatpush1.msra.mxu0 0.0
          %2791 = vmatprep.subr.mxu0 0.0
          %2792 = vmatpush1.msra.mxu0 0.0
          %2793 = vmatprep.subr.mxu0 0.0
          %2794 = vmatpush1.msra.mxu0 0.0
          %2795 = vmatprep.subr.mxu0 0.0
          %2796 = vmatpush1.msra.mxu0 0.0
          %2797 = vmatprep.subr.mxu0 0.0
          %2798 = vmatpush1.msra.mxu0 0.0
          %2799 = vmatprep.subr.mxu0 0.0
          %2800 = vmatpush1.msra.mxu0 0.0
          %2801 = vmatprep.subr.mxu0 0.0
          %2802 = vmatpush1.msra.mxu0 0.0
          %2803 = vmatprep.subr.mxu0 0.0
          %2804 = vmatpush1.msra.mxu0 0.0
          %2805 = vmatprep.subr.mxu0 0.0
          %2806 = vmatpush1.msra.mxu0 0.0
          %2807 = vmatprep.subr.mxu0 0.0
          %2808 = vmatpush1.msra.mxu0 0.0
          %2809 = vmatprep.subr.mxu0 0.0
          %2810 = vmatpush1.msra.mxu0 0.0
          %2811 = vmatprep.subr.mxu0 0.0
          %2812 = vmatpush1.msra.mxu0 0.0
          %2813 = vmatprep.subr.mxu0 0.0
          %2814 = vmatpush1.msra.mxu0 0.0
          %2815 = vmatprep.subr.mxu0 0.0
          %2816 = vmatpush1.msra.mxu0 0.0
          %2817 = vmatprep.subr.mxu0 0.0
          %2818 = vmatpush1.msra.mxu0 0.0
          %2819 = vmatprep.subr.mxu0 0.0
          %2820 = vmatpush1.msra.mxu0 0.0
          %2821 = vmatprep.subr.mxu0 0.0
          %2822 = vmatpush1.msra.mxu0 0.0
          %2823 = vmatprep.subr.mxu0 0.0
          %2824 = vmatpush1.msra.mxu0 0.0
          %2825 = vmatprep.subr.mxu0 0.0
          %2826 = vmatpush1.msra.mxu0 0.0
          %2827 = vmatprep.subr.mxu0 0.0
          %2828 = vmatpush1.msra.mxu0 0.0
          %2829 = vmatprep.subr.mxu0 0.0
          %2830 = vmatpush1.msra.mxu0 0.0
          %2831 = vmatprep.subr.mxu0 0.0
          %2832 = vmatpush1.msra.mxu0 0.0
          %2833 = vmatprep.subr.mxu0 0.0
          %2834 = vmatpush1.msra.mxu0 0.0
          %2835 = vmatprep.mubr.f32.mxu0 0.0
          %2836 = vmatmul.mubr.f32.gmra.mrb[0].mxu0 %v2765
          %v2837 = vpop.f32.mrb[0].mxu0
          %v2838 = vadd.f32 %v2761, %v2837
          %v2839 = vpop.f32.mrb[0].mxu0
          %2840 = vdwg.mxu0
          %v2841 = vmax.f32 %v2838, 0.0
          %v2842 = vld [vmem:[#allocation17] sm:$0xff]
          %v2843 = vld [vmem:[#allocation17 + $0x8] sm:$0xff]
          %v2844 = vld [vmem:[#allocation17 + $0x10] sm:$0xff]
          %v2845 = vld [vmem:[#allocation17 + $0x18] sm:$0xff]
          %v2846 = vld [vmem:[#allocation18] sm:$0x1]
          %v2848 = vlaneseq
          %v2849 = vshrl.u32 %v2848, 7
          %v2850 = vsub.s32 0, %v2849
          %v2851 = vrot.slane %v2846, %v2850
          %v2854 = vsel %vm1354, %v2841, 0
          %2856 = vmatprep.subr.mxu0 0.0
          %2857 = vmatpush1.msra.mxu0 %v2842
          %2858 = vmatprep.subr.mxu0 0.0
          %2859 = vmatpush1.msra.mxu0 %v2843
          %2860 = vmatprep.subr.mxu0 0.0
          %2861 = vmatpush1.msra.mxu0 %v2844
          %2862 = vmatprep.subr.mxu0 0.0
          %2863 = vmatpush1.msra.mxu0 %v2845
          %2864 = vmatprep.subr.mxu0 0.0
          %2865 = vmatpush1.msra.mxu0 0.0
          %2866 = vmatprep.subr.mxu0 0.0
          %2867 = vmatpush1.msra.mxu0 0.0
          %2868 = vmatprep.subr.mxu0 0.0
          %2869 = vmatpush1.msra.mxu0 0.0
          %2870 = vmatprep.subr.mxu0 0.0
          %2871 = vmatpush1.msra.mxu0 0.0
          %2872 = vmatprep.subr.mxu0 0.0
          %2873 = vmatpush1.msra.mxu0 0.0
          %2874 = vmatprep.subr.mxu0 0.0
          %2875 = vmatpush1.msra.mxu0 0.0
          %2876 = vmatprep.subr.mxu0 0.0
          %2877 = vmatpush1.msra.mxu0 0.0
          %2878 = vmatprep.subr.mxu0 0.0
          %2879 = vmatpush1.msra.mxu0 0.0
          %2880 = vmatprep.subr.mxu0 0.0
          %2881 = vmatpush1.msra.mxu0 0.0
          %2882 = vmatprep.subr.mxu0 0.0
          %2883 = vmatpush1.msra.mxu0 0.0
          %2884 = vmatprep.subr.mxu0 0.0
          %2885 = vmatpush1.msra.mxu0 0.0
          %2886 = vmatprep.subr.mxu0 0.0
          %2887 = vmatpush1.msra.mxu0 0.0
          %2888 = vmatprep.subr.mxu0 0.0
          %2889 = vmatpush1.msra.mxu0 0.0
          %2890 = vmatprep.subr.mxu0 0.0
          %2891 = vmatpush1.msra.mxu0 0.0
          %2892 = vmatprep.subr.mxu0 0.0
          %2893 = vmatpush1.msra.mxu0 0.0
          %2894 = vmatprep.subr.mxu0 0.0
          %2895 = vmatpush1.msra.mxu0 0.0
          %2896 = vmatprep.subr.mxu0 0.0
          %2897 = vmatpush1.msra.mxu0 0.0
          %2898 = vmatprep.subr.mxu0 0.0
          %2899 = vmatpush1.msra.mxu0 0.0
          %2900 = vmatprep.subr.mxu0 0.0
          %2901 = vmatpush1.msra.mxu0 0.0
          %2902 = vmatprep.subr.mxu0 0.0
          %2903 = vmatpush1.msra.mxu0 0.0
          %2904 = vmatprep.subr.mxu0 0.0
          %2905 = vmatpush1.msra.mxu0 0.0
          %2906 = vmatprep.subr.mxu0 0.0
          %2907 = vmatpush1.msra.mxu0 0.0
          %2908 = vmatprep.subr.mxu0 0.0
          %2909 = vmatpush1.msra.mxu0 0.0
          %2910 = vmatprep.subr.mxu0 0.0
          %2911 = vmatpush1.msra.mxu0 0.0
          %2912 = vmatprep.subr.mxu0 0.0
          %2913 = vmatpush1.msra.mxu0 0.0
          %2914 = vmatprep.subr.mxu0 0.0
          %2915 = vmatpush1.msra.mxu0 0.0
          %2916 = vmatprep.subr.mxu0 0.0
          %2917 = vmatpush1.msra.mxu0 0.0
          %2918 = vmatprep.subr.mxu0 0.0
          %2919 = vmatpush1.msra.mxu0 0.0
          %2920 = vmatprep.mubr.f32.mxu0 0.0
          %2921 = vmatmul.mubr.f32.gmra.mrb[0].mxu0 %v2854
          %v2922 = vpop.f32.mrb[0].mxu0
          %v2923 = vadd.f32 %v2851, %v2922
          %v2924 = vpop.f32.mrb[0].mxu0
          %2925 = vdwg.mxu0
          %v2926 = vmax.f32 %v2923, 0.0
          %v2927 = vld [vmem:[#allocation20] sm:$0xff]
          %v2928 = vld [vmem:[#allocation20 + $0x8] sm:$0xff]
          %v2929 = vld [vmem:[#allocation20 + $0x10] sm:$0xff]
          %v2930 = vld [vmem:[#allocation20 + $0x18] sm:$0xff]
          %v2931 = vld [vmem:[#allocation21] sm:$0x1]
          %v2933 = vlaneseq
          %v2934 = vshrl.u32 %v2933, 7
          %v2935 = vsub.s32 0, %v2934
          %v2936 = vrot.slane %v2931, %v2935
          %v2939 = vsel %vm1354, %v2748, 0
          %2941 = vmatprep.subr.mxu0 0.0
          %2942 = vmatpush1.msra.mxu0 %v2927
          %2943 = vmatprep.subr.mxu0 0.0
          %2944 = vmatpush1.msra.mxu0 %v2928
          %2945 = vmatprep.subr.mxu0 0.0
          %2946 = vmatpush1.msra.mxu0 %v2929
          %2947 = vmatprep.subr.mxu0 0.0
          %2948 = vmatpush1.msra.mxu0 %v2930
          %2949 = vmatprep.subr.mxu0 0.0
          %2950 = vmatpush1.msra.mxu0 0.0
          %2951 = vmatprep.subr.mxu0 0.0
          %2952 = vmatpush1.msra.mxu0 0.0
          %2953 = vmatprep.subr.mxu0 0.0
          %2954 = vmatpush1.msra.mxu0 0.0
          %2955 = vmatprep.subr.mxu0 0.0
          %2956 = vmatpush1.msra.mxu0 0.0
          %2957 = vmatprep.subr.mxu0 0.0
          %2958 = vmatpush1.msra.mxu0 0.0
          %2959 = vmatprep.subr.mxu0 0.0
          %2960 = vmatpush1.msra.mxu0 0.0
          %2961 = vmatprep.subr.mxu0 0.0
          %2962 = vmatpush1.msra.mxu0 0.0
          %2963 = vmatprep.subr.mxu0 0.0
          %2964 = vmatpush1.msra.mxu0 0.0
          %2965 = vmatprep.subr.mxu0 0.0
          %2966 = vmatpush1.msra.mxu0 0.0
          %2967 = vmatprep.subr.mxu0 0.0
          %2968 = vmatpush1.msra.mxu0 0.0
          %2969 = vmatprep.subr.mxu0 0.0
          %2970 = vmatpush1.msra.mxu0 0.0
          %2971 = vmatprep.subr.mxu0 0.0
          %2972 = vmatpush1.msra.mxu0 0.0
          %2973 = vmatprep.subr.mxu0 0.0
          %2974 = vmatpush1.msra.mxu0 0.0
          %2975 = vmatprep.subr.mxu0 0.0
          %2976 = vmatpush1.msra.mxu0 0.0
          %2977 = vmatprep.subr.mxu0 0.0
          %2978 = vmatpush1.msra.mxu0 0.0
          %2979 = vmatprep.subr.mxu0 0.0
          %2980 = vmatpush1.msra.mxu0 0.0
          %2981 = vmatprep.subr.mxu0 0.0
          %2982 = vmatpush1.msra.mxu0 0.0
          %2983 = vmatprep.subr.mxu0 0.0
          %2984 = vmatpush1.msra.mxu0 0.0
          %2985 = vmatprep.subr.mxu0 0.0
          %2986 = vmatpush1.msra.mxu0 0.0
          %2987 = vmatprep.subr.mxu0 0.0
          %2988 = vmatpush1.msra.mxu0 0.0
          %2989 = vmatprep.subr.mxu0 0.0
          %2990 = vmatpush1.msra.mxu0 0.0
          %2991 = vmatprep.subr.mxu0 0.0
          %2992 = vmatpush1.msra.mxu0 0.0
          %2993 = vmatprep.subr.mxu0 0.0
          %2994 = vmatpush1.msra.mxu0 0.0
          %2995 = vmatprep.subr.mxu0 0.0
          %2996 = vmatpush1.msra.mxu0 0.0
          %2997 = vmatprep.subr.mxu0 0.0
          %2998 = vmatpush1.msra.mxu0 0.0
          %2999 = vmatprep.subr.mxu0 0.0
          %3000 = vmatpush1.msra.mxu0 0.0
          %3001 = vmatprep.subr.mxu0 0.0
          %3002 = vmatpush1.msra.mxu0 0.0
          %3003 = vmatprep.subr.mxu0 0.0
          %3004 = vmatpush1.msra.mxu0 0.0
          %3005 = vmatprep.mubr.f32.mxu0 0.0
          %3006 = vmatmul.mubr.f32.gmra.mrb[0].mxu0 %v2939
          %v3007 = vpop.f32.mrb[0].mxu0
          %v3008 = vadd.f32 %v2936, %v3007
          %v3009 = vpop.f32.mrb[0].mxu0
          %3010 = vdwg.mxu0
          %v3011 = vld [vmem:[#allocation23] sm:$0xff]
          %v3012 = vld [vmem:[#allocation23 + $0x8] sm:$0xff]
          %v3013 = vld [vmem:[#allocation23 + $0x10] sm:$0xff]
          %v3014 = vld [vmem:[#allocation23 + $0x18] sm:$0xff]
          %v3015 = vld [vmem:[#allocation24] sm:$0xff]
          %v3016 = vld [vmem:[#allocation24 + $0x8] sm:$0xff]
          %v3017 = vld [vmem:[#allocation24 + $0x10] sm:$0xff]
          %v3018 = vld [vmem:[#allocation24 + $0x18] sm:$0xff]
          %v3020 = vsel %vm1354, %v3008, 0
          %3022 = vmatprep.subr.mxu0 0.0
          %3023 = vmatpush1.msra.mxu0 %v3015
          %3024 = vmatprep.subr.mxu0 0.0
          %3025 = vmatpush1.msra.mxu0 %v3016
          %3026 = vmatprep.subr.mxu0 0.0
          %3027 = vmatpush1.msra.mxu0 %v3017
          %3028 = vmatprep.subr.mxu0 0.0
          %3029 = vmatpush1.msra.mxu0 %v3018
          %3030 = vmatprep.subr.mxu0 0.0
          %3031 = vmatpush1.msra.mxu0 0.0
          %3032 = vmatprep.subr.mxu0 0.0
          %3033 = vmatpush1.msra.mxu0 0.0
          %3034 = vmatprep.subr.mxu0 0.0
          %3035 = vmatpush1.msra.mxu0 0.0
          %3036 = vmatprep.subr.mxu0 0.0
          %3037 = vmatpush1.msra.mxu0 0.0
          %3038 = vmatprep.subr.mxu0 0.0
          %3039 = vmatpush1.msra.mxu0 0.0
          %3040 = vmatprep.subr.mxu0 0.0
          %3041 = vmatpush1.msra.mxu0 0.0
          %3042 = vmatprep.subr.mxu0 0.0
          %3043 = vmatpush1.msra.mxu0 0.0
          %3044 = vmatprep.subr.mxu0 0.0
          %3045 = vmatpush1.msra.mxu0 0.0
          %3046 = vmatprep.subr.mxu0 0.0
          %3047 = vmatpush1.msra.mxu0 0.0
          %3048 = vmatprep.subr.mxu0 0.0
          %3049 = vmatpush1.msra.mxu0 0.0
          %3050 = vmatprep.subr.mxu0 0.0
          %3051 = vmatpush1.msra.mxu0 0.0
          %3052 = vmatprep.subr.mxu0 0.0
          %3053 = vmatpush1.msra.mxu0 0.0
          %3054 = vmatprep.subr.mxu0 0.0
          %3055 = vmatpush1.msra.mxu0 0.0
          %3056 = vmatprep.subr.mxu0 0.0
          %3057 = vmatpush1.msra.mxu0 0.0
          %3058 = vmatprep.subr.mxu0 0.0
          %3059 = vmatpush1.msra.mxu0 0.0
          %3060 = vmatprep.subr.mxu0 0.0
          %3061 = vmatpush1.msra.mxu0 0.0
          %3062 = vmatprep.subr.mxu0 0.0
          %3063 = vmatpush1.msra.mxu0 0.0
          %3064 = vmatprep.subr.mxu0 0.0
          %3065 = vmatpush1.msra.mxu0 0.0
          %3066 = vmatprep.subr.mxu0 0.0
          %3067 = vmatpush1.msra.mxu0 0.0
          %3068 = vmatprep.subr.mxu0 0.0
          %3069 = vmatpush1.msra.mxu0 0.0
          %3070 = vmatprep.subr.mxu0 0.0
          %3071 = vmatpush1.msra.mxu0 0.0
          %3072 = vmatprep.subr.mxu0 0.0
          %3073 = vmatpush1.msra.mxu0 0.0
          %3074 = vmatprep.subr.mxu0 0.0
          %3075 = vmatpush1.msra.mxu0 0.0
          %3076 = vmatprep.subr.mxu0 0.0
          %3077 = vmatpush1.msra.mxu0 0.0
          %3078 = vmatprep.subr.mxu0 0.0
          %3079 = vmatpush1.msra.mxu0 0.0
          %3080 = vmatprep.subr.mxu0 0.0
          %3081 = vmatpush1.msra.mxu0 0.0
          %3082 = vmatprep.subr.mxu0 0.0
          %3083 = vmatpush1.msra.mxu0 0.0
          %3084 = vmatprep.subr.mxu0 0.0
          %3085 = vmatpush1.msra.mxu0 0.0
          %3086 = vmatprep.mubr.f32.mxu0 0.0
          %3087 = vmatmul.mubr.f32.gmra.mrb[0].mxu0 %v3020
          %v3088 = vpop.f32.mrb[0].mxu0
          %v3089 = vadd.f32 0.0, %v3088
          %v3090 = vpop.f32.mrb[0].mxu0
          %3091 = vdwg.mxu0
          %v3093 = vsel %vm1354, %v2926, 0
          %3095 = vmatprep.subr.mxu0 0.0
          %3096 = vmatpush1.msra.mxu0 %v3011
          %3097 = vmatprep.subr.mxu0 0.0
          %3098 = vmatpush1.msra.mxu0 %v3012
          %3099 = vmatprep.subr.mxu0 0.0
          %3100 = vmatpush1.msra.mxu0 %v3013
          %3101 = vmatprep.subr.mxu0 0.0
          %3102 = vmatpush1.msra.mxu0 %v3014
          %3103 = vmatprep.subr.mxu0 0.0
          %3104 = vmatpush1.msra.mxu0 0.0
          %3105 = vmatprep.subr.mxu0 0.0
          %3106 = vmatpush1.msra.mxu0 0.0
          %3107 = vmatprep.subr.mxu0 0.0
          %3108 = vmatpush1.msra.mxu0 0.0
          %3109 = vmatprep.subr.mxu0 0.0
          %3110 = vmatpush1.msra.mxu0 0.0
          %3111 = vmatprep.subr.mxu0 0.0
          %3112 = vmatpush1.msra.mxu0 0.0
          %3113 = vmatprep.subr.mxu0 0.0
          %3114 = vmatpush1.msra.mxu0 0.0
          %3115 = vmatprep.subr.mxu0 0.0
          %3116 = vmatpush1.msra.mxu0 0.0
          %3117 = vmatprep.subr.mxu0 0.0
          %3118 = vmatpush1.msra.mxu0 0.0
          %3119 = vmatprep.subr.mxu0 0.0
          %3120 = vmatpush1.msra.mxu0 0.0
          %3121 = vmatprep.subr.mxu0 0.0
          %3122 = vmatpush1.msra.mxu0 0.0
          %3123 = vmatprep.subr.mxu0 0.0
          %3124 = vmatpush1.msra.mxu0 0.0
          %3125 = vmatprep.subr.mxu0 0.0
          %3126 = vmatpush1.msra.mxu0 0.0
          %3127 = vmatprep.subr.mxu0 0.0
          %3128 = vmatpush1.msra.mxu0 0.0
          %3129 = vmatprep.subr.mxu0 0.0
          %3130 = vmatpush1.msra.mxu0 0.0
          %3131 = vmatprep.subr.mxu0 0.0
          %3132 = vmatpush1.msra.mxu0 0.0
          %3133 = vmatprep.subr.mxu0 0.0
          %3134 = vmatpush1.msra.mxu0 0.0
          %3135 = vmatprep.subr.mxu0 0.0
          %3136 = vmatpush1.msra.mxu0 0.0
          %3137 = vmatprep.subr.mxu0 0.0
          %3138 = vmatpush1.msra.mxu0 0.0
          %3139 = vmatprep.subr.mxu0 0.0
          %3140 = vmatpush1.msra.mxu0 0.0
          %3141 = vmatprep.subr.mxu0 0.0
          %3142 = vmatpush1.msra.mxu0 0.0
          %3143 = vmatprep.subr.mxu0 0.0
          %3144 = vmatpush1.msra.mxu0 0.0
          %3145 = vmatprep.subr.mxu0 0.0
          %3146 = vmatpush1.msra.mxu0 0.0
          %3147 = vmatprep.subr.mxu0 0.0
          %3148 = vmatpush1.msra.mxu0 0.0
          %3149 = vmatprep.subr.mxu0 0.0
          %3150 = vmatpush1.msra.mxu0 0.0
          %3151 = vmatprep.subr.mxu0 0.0
          %3152 = vmatpush1.msra.mxu0 0.0
          %3153 = vmatprep.subr.mxu0 0.0
          %3154 = vmatpush1.msra.mxu0 0.0
          %3155 = vmatprep.subr.mxu0 0.0
          %3156 = vmatpush1.msra.mxu0 0.0
          %3157 = vmatprep.subr.mxu0 0.0
          %3158 = vmatpush1.msra.mxu0 0.0
          %3159 = vmatprep.mubr.f32.mxu0 0.0
          %3160 = vmatmul.mubr.f32.gmra.mrb[0].mxu0 %v3093
          %v3161 = vpop.f32.mrb[0].mxu0
          %v3162 = vadd.f32 %v3089, %v3161
          %v3163 = vpop.f32.mrb[0].mxu0
          %3164 = vdwg.mxu0
          %v3165 = vld [vmem:[#allocation26] sm:$0x1]
          %v3167 = vlaneseq
          %v3168 = vshrl.u32 %v3167, 7
          %v3169 = vsub.s32 0, %v3168
          %v3170 = vrot.slane %v3165, %v3169
          %v3172 = vadd.f32 %v3162, %v3170
          %v3173 = vmax.f32 %v3172, 0.0
          %v3174 = vld [vmem:[#allocation27] sm:$0xff]
          %v3175 = vld [vmem:[#allocation27 + $0x8] sm:$0xff]
          %v3176 = vld [vmem:[#allocation27 + $0x10] sm:$0xff]
          %v3177 = vld [vmem:[#allocation27 + $0x18] sm:$0xff]
          %v3178 = vld [vmem:[#allocation29] sm:$0x1]
          %v3180 = vlaneseq
          %v3181 = vshrl.u32 %v3180, 7
          %v3182 = vsub.s32 0, %v3181
          %v3183 = vrot.slane %v3178, %v3182
          %v3186 = vsel %vm1354, %v3173, 0
          %3188 = vmatprep.subr.mxu0 0.0
          %3189 = vmatpush1.msra.mxu0 %v3174
          %3190 = vmatprep.subr.mxu0 0.0
          %3191 = vmatpush1.msra.mxu0 %v3175
          %3192 = vmatprep.subr.mxu0 0.0
          %3193 = vmatpush1.msra.mxu0 %v3176
          %3194 = vmatprep.subr.mxu0 0.0
          %3195 = vmatpush1.msra.mxu0 %v3177
          %3196 = vmatprep.subr.mxu0 0.0
          %3197 = vmatpush1.msra.mxu0 0.0
          %3198 = vmatprep.subr.mxu0 0.0
          %3199 = vmatpush1.msra.mxu0 0.0
          %3200 = vmatprep.subr.mxu0 0.0
          %3201 = vmatpush1.msra.mxu0 0.0
          %3202 = vmatprep.subr.mxu0 0.0
          %3203 = vmatpush1.msra.mxu0 0.0
          %3204 = vmatprep.subr.mxu0 0.0
          %3205 = vmatpush1.msra.mxu0 0.0
          %3206 = vmatprep.subr.mxu0 0.0
          %3207 = vmatpush1.msra.mxu0 0.0
          %3208 = vmatprep.subr.mxu0 0.0
          %3209 = vmatpush1.msra.mxu0 0.0
          %3210 = vmatprep.subr.mxu0 0.0
          %3211 = vmatpush1.msra.mxu0 0.0
          %3212 = vmatprep.subr.mxu0 0.0
          %3213 = vmatpush1.msra.mxu0 0.0
          %3214 = vmatprep.subr.mxu0 0.0
          %3215 = vmatpush1.msra.mxu0 0.0
          %3216 = vmatprep.subr.mxu0 0.0
          %3217 = vmatpush1.msra.mxu0 0.0
          %3218 = vmatprep.subr.mxu0 0.0
          %3219 = vmatpush1.msra.mxu0 0.0
          %3220 = vmatprep.subr.mxu0 0.0
          %3221 = vmatpush1.msra.mxu0 0.0
          %3222 = vmatprep.subr.mxu0 0.0
          %3223 = vmatpush1.msra.mxu0 0.0
          %3224 = vmatprep.subr.mxu0 0.0
          %3225 = vmatpush1.msra.mxu0 0.0
          %3226 = vmatprep.subr.mxu0 0.0
          %3227 = vmatpush1.msra.mxu0 0.0
          %3228 = vmatprep.subr.mxu0 0.0
          %3229 = vmatpush1.msra.mxu0 0.0
          %3230 = vmatprep.subr.mxu0 0.0
          %3231 = vmatpush1.msra.mxu0 0.0
          %3232 = vmatprep.subr.mxu0 0.0
          %3233 = vmatpush1.msra.mxu0 0.0
          %3234 = vmatprep.subr.mxu0 0.0
          %3235 = vmatpush1.msra.mxu0 0.0
          %3236 = vmatprep.subr.mxu0 0.0
          %3237 = vmatpush1.msra.mxu0 0.0
          %3238 = vmatprep.subr.mxu0 0.0
          %3239 = vmatpush1.msra.mxu0 0.0
          %3240 = vmatprep.subr.mxu0 0.0
          %3241 = vmatpush1.msra.mxu0 0.0
          %3242 = vmatprep.subr.mxu0 0.0
          %3243 = vmatpush1.msra.mxu0 0.0
          %3244 = vmatprep.subr.mxu0 0.0
          %3245 = vmatpush1.msra.mxu0 0.0
          %3246 = vmatprep.subr.mxu0 0.0
          %3247 = vmatpush1.msra.mxu0 0.0
          %3248 = vmatprep.subr.mxu0 0.0
          %3249 = vmatpush1.msra.mxu0 0.0
          %3250 = vmatprep.subr.mxu0 0.0
          %3251 = vmatpush1.msra.mxu0 0.0
          %3252 = vmatprep.mubr.f32.mxu0 0.0
          %3253 = vmatmul.mubr.f32.gmra.mrb[0].mxu0 %v3186
          %v3254 = vpop.f32.mrb[0].mxu0
          %v3255 = vadd.f32 %v3183, %v3254
          %v3256 = vpop.f32.mrb[0].mxu0
          %3257 = vdwg.mxu0
          %vm3258 = vcmask 23552
          %3259 = vst.msk [vmem:[%s824] sm:$0xff] %vm3258, %v3255
        $region164: #{tpu_custom_call.1} parent=87 // pred_fallthru
          _
        %s3260 = sand.u32 %s433, 1
        %s3261 = scalar_lea.sflag [#allocation5], %s3260
        %s3262 = sand.u32 %s433, 1
        %s3263 = smul.addr %s3262, 8
        %s3264 = scalar_lea.vmem [#allocation30], %s3263
        // Predicated region
        $region165: #{tpu_custom_call.1} parent=87 // pred_check
          %p3265 = pneg %p443
        $region166: #{tpu_custom_call.1} parent=87 // pred_check_branch
          %3267 = sbr.rel (%p3265) target = $region168
        $region167: #{tpu_custom_call.1} parent=87 // pred_region
          %s3269 = ssub.s32 128, 128
          %3270 = vsyncadd %s3261, %s3269
          %s3271 = smul.addr %s48, 128
          %s3272 = scalar_lea.hbm %s17, %s3271
          %s3274 = sshll.u32 %s3264, 4
          %s3275 = int_to_ptr.vmem [resolvable:$true] %s3274
          %3277 = dma.vmem_to_hbm [thread:$0]  %s3275, 128, %s3272, %s3261
        $region168: #{tpu_custom_call.1} parent=87 // pred_fallthru
          _
      $region88: #{tpu_custom_call.1} parent=5 // pred_fallthru
        _
      %p3278 = scmp.le.s32.totalorder 2, %s39
      // Predicated region
      $region169: #{tpu_custom_call.1} parent=5 // pred_check
        %p3279 = pneg %p3278
      $region170: #{tpu_custom_call.1} parent=5 // pred_check_branch
        %3281 = sbr.rel (%p3279) target = $region172
      $region171: #{tpu_custom_call.1} parent=5 // pred_region
        %s3282 = ssub.s32 %s39, 2
        // Predicated region
        $region173: #{tpu_custom_call.1} parent=171 // pred_check
          %p3283 = pneg %p449
        $region174: #{tpu_custom_call.1} parent=171 // pred_check_branch
          %3285 = sbr.rel (%p3283) target = $region176
        $region175: #{tpu_custom_call.1} parent=171 // pred_region
          %s3286 = sand.u32 %s434, 1
          %s3287 = scalar_lea.sflag [#allocation5], %s3286
          %s3288 = sand.u32 %s434, 1
          %s3289 = smul.addr %s3288, 8
          %s3290 = scalar_lea.vmem [#allocation30], %s3289
          %3291 = dma.done %s3287, 128
        $region176: #{tpu_custom_call.1} parent=171 // pred_fallthru
          _
      $region172: #{tpu_custom_call.1} parent=5 // pred_fallthru
        _
    $region6: #{tpu_custom_call.1} parent=1 // loop_footer
      %s43 = sadd.s32 1, %s39
    $region7: #{tpu_custom_call.1} parent=1 // loop_footer_branch
      %38 = sbr.rel target = $region3
    $region8: #{tpu_custom_call.1} parent=1 // loop_exit
      _
    %3292 = vsyncpa [#allocation4], 1
    %s3293 = scalar_lea.sflag [#allocation4], 1
    %3294 = vsyncpa %s3293, 1
    %3295 = vsyncpa [#allocation7], 1
    %s3296 = scalar_lea.sflag [#allocation7], 1
    %3297 = vsyncpa %s3296, 1
    %3298 = vsyncpa [#allocation10], 1
    %3299 = vsyncpa [#allocation13], 1
    %3300 = vsyncpa [#allocation16], 1
    %3301 = vsyncpa [#allocation19], 1
    %3302 = vsyncpa [#allocation22], 1
    %3303 = vsyncpa [#allocation25], 1
    %3304 = vsyncpa [#allocation28], 1
    %3305 = vsyncpa [#allocation5], 1
    %s3306 = scalar_lea.sflag [#allocation5], 1
    %3307 = vsyncpa %s3306, 1

</llo_original>
